<compile_context>
chip_gen: v5e
topology: v5e:2x2
jax: 0.10.0
libtpu: 0.0.40
codegen_flags: <defaults>
</compile_context>

<pallas_src>
import jax
import jax.numpy as jnp
import numpy as np
from jax.experimental import pallas as pl
from jax.experimental.pallas import tpu as pltpu


def _round_up(a, m):
    return ((a + m - 1) // m) * m


# ----------------------------------------------------------------------------
# Kernel 1: fused MLP stem   h2 = relu(relu(z@w1+b1) @ w2 + b2)
# ----------------------------------------------------------------------------
def _stem_kernel(z_ref, w1_ref, b1_ref, w2_ref, b2_ref, o_ref):
    h1 = jnp.dot(z_ref[...].astype(jnp.bfloat16), w1_ref[...],
                 preferred_element_type=jnp.float32)
    h1 = jnp.maximum(h1 + b1_ref[...], 0.0)
    h2 = jnp.dot(h1.astype(jnp.bfloat16), w2_ref[...],
                 preferred_element_type=jnp.float32)
    h2 = jnp.maximum(h2 + b2_ref[...], 0.0)
    o_ref[...] = h2.astype(o_ref.dtype)


def pallas_stem(z, w1, b1, w2, b2):
    B = z.shape[0]
    N = w2.shape[1]
    return pl.pallas_call(
        _stem_kernel,
        out_shape=jax.ShapeDtypeStruct((B, N), jnp.bfloat16),
        in_specs=[pl.BlockSpec(memory_space=pltpu.MemorySpace.VMEM)] * 5,
        out_specs=pl.BlockSpec(memory_space=pltpu.MemorySpace.VMEM),
    )(z, w1, b1, w2, b2)


# ----------------------------------------------------------------------------
# Kernel 2: row-tiled GEMM + bias + ReLU (deconv-1 phase GEMM)
# ----------------------------------------------------------------------------
def _gemm_bias_relu_kernel(a_ref, w_ref, b_ref, o_ref):
    y = jnp.dot(a_ref[...], w_ref[...], preferred_element_type=jnp.float32)
    o_ref[...] = jnp.maximum(y + b_ref[...], 0.0).astype(o_ref.dtype)


def pallas_deconv_gemm(a, w, b, *, tile_m=512):
    """a:[M,K] bf16, w:[K,N] bf16 (VMEM-resident), b:[1,N] f32 -> relu(a@w+b):[M,N] bf16."""
    M, K = a.shape
    Kw, N = w.shape
    assert K == Kw and b.shape == (1, N)
    tm = min(tile_m, _round_up(M, 128))
    m_pad = _round_up(M, tm)
    if m_pad != M:
        a = jnp.pad(a, ((0, m_pad - M), (0, 0)))
    out = pl.pallas_call(
        _gemm_bias_relu_kernel,
        out_shape=jax.ShapeDtypeStruct((m_pad, N), jnp.bfloat16),
        grid=(m_pad // tm,),
        in_specs=[
            pl.BlockSpec((tm, K), lambda i: (i, 0)),
            pl.BlockSpec((K, N), lambda i: (0, 0)),   # weights stay resident
            pl.BlockSpec((1, N), lambda i: (0, 0)),   # bias stays resident
        ],
        out_specs=pl.BlockSpec((tm, N), lambda i: (i, 0)),
        compiler_params=pltpu.CompilerParams(dimension_semantics=("parallel",)),
        cost_estimate=pl.CostEstimate(
            flops=2 * m_pad * K * N,
            transcendentals=0,
            bytes_accessed=(m_pad * K + K * N + m_pad * N) * 2 + N * 4),
    )(a, w, b)
    return out[:M]


# ----------------------------------------------------------------------------
# Kernel 3: deconv-2 phase GEMM fused with Bernoulli log-prob reduction.
# One grid step == one image; emits a single scalar log p(x|z) per image.
# ----------------------------------------------------------------------------
def _deconv2_bernoulli_kernel(p_ref, x_ref, w_ref, b_ref, o_ref):
    # p_ref:(1,HW,K) bf16   x_ref:(1,HW,4) f32   w_ref:(K,128) bf16   b_ref:(1,128) f32
    logits = jnp.dot(p_ref[0], w_ref[...], preferred_element_type=jnp.float32)
    logits = logits + b_ref[...]
    l4 = logits[:, 0:4]                 # only 4 real columns (4 phases x Cout=1)
    x4 = x_ref[0]
    softplus = jnp.maximum(l4, 0.0) + jnp.log(1.0 + jnp.exp(-jnp.abs(l4)))
    lp = x4 * l4 - softplus             # Bernoulli(logits=l).log_prob(x)
    o_ref[...] = jnp.broadcast_to(jnp.sum(lp), (1, 1, 128))


def pallas_deconv2_bernoulli(p, x_r, w, b):
    """p:[B,HW,K] bf16 patches, x_r:[B,HW,4] f32 phase-grouped pixels -> log p(x|z):[B]."""
    B, HW, K = p.shape
    out = pl.pallas_call(
        _deconv2_bernoulli_kernel,
        out_shape=jax.ShapeDtypeStruct((B, 1, 128), jnp.float32),
        grid=(B,),
        in_specs=[
            pl.BlockSpec((1, HW, K), lambda i: (i, 0, 0)),
            pl.BlockSpec((1, HW, 4), lambda i: (i, 0, 0)),
            pl.BlockSpec((K, 128), lambda i: (0, 0)),
            pl.BlockSpec((1, 128), lambda i: (0, 0)),
        ],
        out_specs=pl.BlockSpec((1, 1, 128), lambda i: (i, 0, 0)),
        compiler_params=pltpu.CompilerParams(dimension_semantics=("parallel",)),
        cost_estimate=pl.CostEstimate(
            flops=2 * B * HW * K * 128,
            transcendentals=B * HW * 4,
            bytes_accessed=B * (HW * K * 2 + HW * 4 * 4 + 128 * 4) + K * 128 * 2 + 128 * 4),
    )(p, x_r, w, b)
    return out[:, 0, 0]


# ----------------------------------------------------------------------------
# Host-side glue for the 4-phase ConvTranspose2d(k=4, s=2, p=1) decomposition.
# Each output parity (py,px) is a 2x2 stride-1 conv over the (pad-1) input;
# all 4 phases are computed by ONE GEMM whose K is the 3x3 neighborhood.
# ----------------------------------------------------------------------------
def im2col_3x3(x_nhwc):
    """3x3 / stride-1 / pad-1 patches -> [B, H*W, 9*C], tap-major / channel-minor cols."""
    B, H, W, C = x_nhwc.shape
    xp = jnp.pad(x_nhwc, ((0, 0), (1, 1), (1, 1), (0, 0)))
    taps = [xp[:, ty:ty + H, tx:tx + W, :] for ty in range(3) for tx in range(3)]
    return jnp.stack(taps, axis=3).reshape(B, H * W, 9 * C)


# (parity p, 3x3 tap t) -> kernel index k of the 4-tap ConvTranspose kernel; rest are zero.
_PHASE_TAP_TO_K = {(0, 0): 3, (0, 1): 1, (1, 1): 2, (1, 2): 0}


def deconv_phase_weight(w_ct):
    """torch ConvTranspose2d weight [Cin,Cout,4,4] -> phase-GEMM weight [9*Cin, 4*Cout]
    (rows = (tap ty*3+tx, ci), cols = (phase py*2+px, co))."""
    Cin, Cout = w_ct.shape[0], w_ct.shape[1]
    wg = jnp.zeros((3, 3, Cin, 2, 2, Cout), jnp.float32)
    for (py, ty), ky in _PHASE_TAP_TO_K.items():
        for (px, tx), kx in _PHASE_TAP_TO_K.items():
            wg = wg.at[ty, tx, :, py, px, :].set(w_ct[:, :, ky, kx])
    return wg.reshape(9 * Cin, 4 * Cout)


def phase_to_image(y, B, H, W, Cout):
    """[B*H*W, 4*Cout] phase-GEMM output -> [B, 2H, 2W, Cout] (depth-to-space)."""
    y = y.reshape(B, H, W, 2, 2, Cout).transpose(0, 1, 3, 2, 4, 5)
    return y.reshape(B, 2 * H, 2 * W, Cout)


# ----------------------------------------------------------------------------
# Parameter init (deterministic, synthetic) and kernel-layout preparation
# ----------------------------------------------------------------------------
def _init_linear(key, fan_in, fan_out):
    kw, kb = jax.random.split(key)
    bound = 1.0 / np.sqrt(fan_in)
    w = jax.random.uniform(kw, (fan_in, fan_out), jnp.float32, -bound, bound)
    b = jax.random.uniform(kb, (1, fan_out), jnp.float32, -bound, bound)
    return w, b


def _init_deconv(key, cin, cout, k):
    kw, kb = jax.random.split(key)
    bound = 1.0 / np.sqrt(cin * k * k)
    w = jax.random.uniform(kw, (cin, cout, k, k), jnp.float32, -bound, bound)
    b = jax.random.uniform(kb, (1, cout), jnp.float32, -bound, bound)
    return w, b


def init_raw_params(z_dim, key):
    k = jax.random.split(key, 4)
    w1, b1 = _init_linear(k[0], z_dim, 128)
    w2, b2 = _init_linear(k[1], 128, 128 * 7 * 7)
    wd1, bd1 = _init_deconv(k[2], 128, 64, 4)
    wd2, bd2 = _init_deconv(k[3], 64, 1, 4)
    return dict(w1=w1, b1=b1, w2=w2, b2=b2, wd1=wd1, bd1=bd1, wd2=wd2, bd2=bd2)


def prepare_params(raw):
    wg1 = deconv_phase_weight(raw["wd1"])                          # [1152, 256]
    bg1 = jnp.tile(raw["bd1"], (1, 4))                             # [1, 256]
    wg2 = deconv_phase_weight(raw["wd2"])                          # [576, 4]
    wg2_p = jnp.zeros((wg2.shape[0], 128), jnp.float32).at[:, :4].set(wg2)
    bg2_p = jnp.zeros((1, 128), jnp.float32).at[:, :4].set(jnp.tile(raw["bd2"], (1, 4)))
    bf = jnp.bfloat16
    return dict(
        w1=raw["w1"].astype(bf), b1=raw["b1"],
        w2=raw["w2"].astype(bf), b2=raw["b2"],
        wg1=wg1.astype(bf), bg1=bg1,
        wg2=wg2_p.astype(bf), bg2=bg2_p,
    )


# ----------------------------------------------------------------------------
# Forward pass:  log p(x|z)  (matches ConvDecoder.forward)
# ----------------------------------------------------------------------------
def conv_decoder_forward(params, x, z):
    B = z.shape[0]

    # Fused MLP stem (one pallas_call): z -> [B, 128*7*7] (bf16)
    h2 = pallas_stem(z, params["w1"], params["b1"], params["w2"], params["b2"])
    feat = h2.reshape(B, 7, 7, 128)    # NHWC / channel-minor feature map
    # TODO(synk): if real torch Decoder weights are ever loaded, permute w2/b2
    # columns from NCHW (c,h,w) ordering to this (h,w,c) ordering.

    # ConvTranspose2d(128->64), 7x7 -> 14x14, 4-phase decomposition + tiled GEMM.
    p1 = im2col_3x3(feat).reshape(B * 49, 9 * 128)                  # [B*49, 1152] bf16
    y1 = pallas_deconv_gemm(p1, params["wg1"], params["bg1"])       # [B*49, 256]  bf16
    img1 = phase_to_image(y1, B, 7, 7, 64)                          # [B, 14, 14, 64]

    # ConvTranspose2d(64->1), 14x14 -> 28x28, fused with the Bernoulli reduction.
    p2 = im2col_3x3(img1)                                           # [B, 196, 576] bf16
    x_r = (x.reshape(B, 28, 28)                                     # pixels grouped by 2x2 phase
            .reshape(B, 14, 2, 14, 2)
            .transpose(0, 1, 3, 2, 4)
            .reshape(B, 196, 4)
            .astype(jnp.float32))
    return pallas_deconv2_bernoulli(p2, x_r, params["wg2"], params["bg2"])   # [B]


# ----------------------------------------------------------------------------
# Pure-JAX f32 reference (lhs-dilated conv == ConvTranspose) for validation
# ----------------------------------------------------------------------------
def _ref_deconv(x_nhwc, w_ct, b):
    w_hwio = jnp.flip(w_ct, axis=(2, 3)).transpose(2, 3, 0, 1)      # [k,k,Cin,Cout]
    y = jax.lax.conv_general_dilated(
        x_nhwc, w_hwio, window_strides=(1, 1), padding=[(2, 2), (2, 2)],
        lhs_dilation=(2, 2), dimension_numbers=("NHWC", "HWIO", "NHWC"))
    return y + b.reshape(1, 1, 1, -1)


def reference_forward(raw, x, z):
    B = z.shape[0]
    h1 = jax.nn.relu(z @ raw["w1"] + raw["b1"])
    h2 = jax.nn.relu(h1 @ raw["w2"] + raw["b2"])
    feat = h2.reshape(B, 7, 7, 128)
    y1 = jax.nn.relu(_ref_deconv(feat, raw["wd1"], raw["bd1"]))
    logits = _ref_deconv(y1, raw["wd2"], raw["bd2"])[..., 0].reshape(B, 784)
    x_flat = x.reshape(B, 784)
    sp = jnp.maximum(logits, 0.0) + jnp.log1p(jnp.exp(-jnp.abs(logits)))
    return jnp.sum(x_flat * logits - sp, axis=-1)


if __name__ == "__main__":
    B, Z_DIM = 2, 16
    key = jax.random.PRNGKey(0)
    kp, kz, kx = jax.random.split(key, 3)

    raw = init_raw_params(Z_DIM, kp)
    params = prepare_params(raw)
    z = jax.random.normal(kz, (B, Z_DIM), dtype=jnp.float32)
    x = jax.random.bernoulli(kx, 0.5, (B, 1, 28, 28)).astype(jnp.float32)  # NCHW like torch

    log_px_z = jax.jit(conv_decoder_forward)(params, x, z)
    log_px_z = jax.block_until_ready(log_px_z)

    assert log_px_z.shape == (B,), log_px_z.shape
    assert bool(jnp.all(jnp.isfinite(log_px_z)))

    # Validate against an f32 XLA reference (kernel path uses bf16 GEMM inputs).
    ref = reference_forward(raw, x, z)
    np.testing.assert_allclose(np.asarray(log_px_z), np.asarray(ref), rtol=2e-2, atol=5.0)

    print("KERNEL_OK")
</pallas_src>

<mosaic_0001>
module attributes {stable_mosaic.version = 11 : i64} {
  func.func @_stem_kernel(%arg0: memref<2x16xf32, #tpu.memory_space<vmem>>, %arg1: memref<16x128xbf16, #tpu.memory_space<vmem>>, %arg2: memref<1x128xf32, #tpu.memory_space<vmem>>, %arg3: memref<128x6272xbf16, #tpu.memory_space<vmem>>, %arg4: memref<1x6272xf32, #tpu.memory_space<vmem>>, %arg5: memref<2x6272xbf16, #tpu.memory_space<vmem>>) attributes {dimension_semantics = [], scalar_prefetch = 0 : i64, scratch_operands = 0 : i64, tpu.core_type = #tpu.core_type<tc>} {
    %c0 = arith.constant 0 : index
    %c0_0 = arith.constant 0 : index
    %0 = vector.load %arg0[%c0, %c0_0] : memref<2x16xf32, #tpu.memory_space<vmem>>, vector<2x16xf32>
    %1 = arith.truncf %0 : vector<2x16xf32> to vector<2x16xbf16>
    %c0_1 = arith.constant 0 : index
    %c0_2 = arith.constant 0 : index
    %2 = vector.load %arg1[%c0_1, %c0_2] : memref<16x128xbf16, #tpu.memory_space<vmem>>, vector<16x128xbf16>
    %cst = arith.constant dense<0.000000e+00> : vector<2x128xf32>
    %3 = tpu.matmul %1, %2, %cst {dimension_numbers = #tpu.dot_dimension_numbers<[1], [0], [0], [1], [0, 0, 1, 1], [], []>} : vector<2x16xbf16>, vector<16x128xbf16>, vector<2x128xf32> -> vector<2x128xf32>
    %c0_3 = arith.constant 0 : index
    %c0_4 = arith.constant 0 : index
    %4 = vector.load %arg2[%c0_3, %c0_4] : memref<1x128xf32, #tpu.memory_space<vmem>>, vector<1x128xf32>
    %5 = vector.broadcast %4 : vector<1x128xf32> to vector<2x128xf32>
    %6 = arith.addf %3, %5 : vector<2x128xf32>
    %cst_5 = arith.constant 0.000000e+00 : f32
    %7 = vector.broadcast %cst_5 : f32 to vector<2x128xf32>
    %8 = arith.maximumf %6, %7 : vector<2x128xf32>
    %9 = arith.truncf %8 : vector<2x128xf32> to vector<2x128xbf16>
    %c0_6 = arith.constant 0 : index
    %c0_7 = arith.constant 0 : index
    %10 = vector.load %arg3[%c0_6, %c0_7] : memref<128x6272xbf16, #tpu.memory_space<vmem>>, vector<128x6272xbf16>
    %cst_8 = arith.constant dense<0.000000e+00> : vector<2x6272xf32>
    %11 = tpu.matmul %9, %10, %cst_8 {dimension_numbers = #tpu.dot_dimension_numbers<[1], [0], [0], [1], [0, 0, 1, 1], [], []>} : vector<2x128xbf16>, vector<128x6272xbf16>, vector<2x6272xf32> -> vector<2x6272xf32>
    %c0_9 = arith.constant 0 : index
    %c0_10 = arith.constant 0 : index
    %12 = vector.load %arg4[%c0_9, %c0_10] : memref<1x6272xf32, #tpu.memory_space<vmem>>, vector<1x6272xf32>
    %13 = vector.broadcast %12 : vector<1x6272xf32> to vector<2x6272xf32>
    %14 = arith.addf %11, %13 : vector<2x6272xf32>
    %cst_11 = arith.constant 0.000000e+00 : f32
    %15 = vector.broadcast %cst_11 : f32 to vector<2x6272xf32>
    %16 = arith.maximumf %14, %15 : vector<2x6272xf32>
    %17 = arith.truncf %16 : vector<2x6272xf32> to vector<2x6272xbf16>
    %c0_12 = arith.constant 0 : index
    %c0_13 = arith.constant 0 : index
    %18 = vector.load %arg5[%c0_12, %c0_13] : memref<2x6272xbf16, #tpu.memory_space<vmem>>, vector<2x6272xbf16>
    tpu.vector_store %arg5[%c0_12, %c0_13], %17 {strides = array<i32>} : memref<2x6272xbf16, #tpu.memory_space<vmem>>, vector<2x6272xbf16>,
    return
  }
}

module attributes {stable_mosaic.version = 11 : i64} {
  func.func @_gemm_bias_relu_kernel(%arg0: i32, %arg1: memref<128x1152xbf16, #tpu.memory_space<vmem>>, %arg2: memref<1152x256xbf16, #tpu.memory_space<vmem>>, %arg3: memref<1x256xf32, #tpu.memory_space<vmem>>, %arg4: memref<128x256xbf16, #tpu.memory_space<vmem>>) attributes {dimension_semantics = [#tpu.dimension_semantics<parallel>], iteration_bounds = array<i64: 1>, scalar_prefetch = 0 : i64, scratch_operands = 0 : i64, tpu.core_type = #tpu.core_type<tc>, window_params = [{transform_indices = @transform_0, window_bounds = array<i64: 128, 1152>}, {pipeline_mode = #tpu.pipeline_mode<synchronous>, transform_indices = @transform_1, window_bounds = array<i64: 1152, 256>}, {pipeline_mode = #tpu.pipeline_mode<synchronous>, transform_indices = @transform_2, window_bounds = array<i64: 1, 256>}, {transform_indices = @transform_3, window_bounds = array<i64: 128, 256>}]} {
    %c0 = arith.constant 0 : index
    %c0_0 = arith.constant 0 : index
    %0 = vector.load %arg1[%c0, %c0_0] : memref<128x1152xbf16, #tpu.memory_space<vmem>>, vector<128x1152xbf16>
    %c0_1 = arith.constant 0 : index
    %c0_2 = arith.constant 0 : index
    %1 = vector.load %arg2[%c0_1, %c0_2] : memref<1152x256xbf16, #tpu.memory_space<vmem>>, vector<1152x256xbf16>
    %cst = arith.constant dense<0.000000e+00> : vector<128x256xf32>
    %2 = tpu.matmul %0, %1, %cst {dimension_numbers = #tpu.dot_dimension_numbers<[1], [0], [0], [1], [0, 0, 1, 1], [], []>} : vector<128x1152xbf16>, vector<1152x256xbf16>, vector<128x256xf32> -> vector<128x256xf32>
    %c0_3 = arith.constant 0 : index
    %c0_4 = arith.constant 0 : index
    %3 = vector.load %arg3[%c0_3, %c0_4] : memref<1x256xf32, #tpu.memory_space<vmem>>, vector<1x256xf32>
    %4 = vector.broadcast %3 : vector<1x256xf32> to vector<128x256xf32>
    %5 = arith.addf %2, %4 : vector<128x256xf32>
    %cst_5 = arith.constant 0.000000e+00 : f32
    %6 = vector.broadcast %cst_5 : f32 to vector<128x256xf32>
    %7 = arith.maximumf %5, %6 : vector<128x256xf32>
    %8 = arith.truncf %7 : vector<128x256xf32> to vector<128x256xbf16>
    %c0_6 = arith.constant 0 : index
    %c0_7 = arith.constant 0 : index
    %9 = vector.load %arg4[%c0_6, %c0_7] : memref<128x256xbf16, #tpu.memory_space<vmem>>, vector<128x256xbf16>
    tpu.vector_store %arg4[%c0_6, %c0_7], %8 {strides = array<i32>} : memref<128x256xbf16, #tpu.memory_space<vmem>>, vector<128x256xbf16>,
    return
  }
  func.func @transform_0(%arg0: i32) -> (i32, i32) {
    %c0_i32 = arith.constant 0 : i32
    %c0_i32_0 = arith.constant 0 : i32
    return %arg0, %c0_i32 : i32, i32
  }
  func.func @transform_1(%arg0: i32) -> (i32, i32) {
    %c0_i32 = arith.constant 0 : i32
    %c0_i32_0 = arith.constant 0 : i32
    %c0_i32_1 = arith.constant 0 : i32
    return %c0_i32, %c0_i32_0 : i32, i32
  }
  func.func @transform_2(%arg0: i32) -> (i32, i32) {
    %c0_i32 = arith.constant 0 : i32
    %c0_i32_0 = arith.constant 0 : i32
    %c0_i32_1 = arith.constant 0 : i32
    return %c0_i32, %c0_i32_0 : i32, i32
  }
  func.func @transform_3(%arg0: i32) -> (i32, i32) {
    %c0_i32 = arith.constant 0 : i32
    %c0_i32_0 = arith.constant 0 : i32
    return %arg0, %c0_i32 : i32, i32
  }
}

module attributes {stable_mosaic.version = 11 : i64} {
  func.func @_deconv2_bernoulli_kernel(%arg0: i32, %arg1: memref<1x196x576xbf16, #tpu.memory_space<vmem>>, %arg2: memref<1x196x4xf32, #tpu.memory_space<vmem>>, %arg3: memref<576x128xbf16, #tpu.memory_space<vmem>>, %arg4: memref<1x128xf32, #tpu.memory_space<vmem>>, %arg5: memref<1x1x128xf32, #tpu.memory_space<vmem>>) attributes {dimension_semantics = [#tpu.dimension_semantics<parallel>], iteration_bounds = array<i64: 2>, scalar_prefetch = 0 : i64, scratch_operands = 0 : i64, tpu.core_type = #tpu.core_type<tc>, window_params = [{transform_indices = @transform_0, window_bounds = array<i64: 1, 196, 576>}, {transform_indices = @transform_1, window_bounds = array<i64: 1, 196, 4>}, {pipeline_mode = #tpu.pipeline_mode<synchronous>, transform_indices = @transform_2, window_bounds = array<i64: 576, 128>}, {pipeline_mode = #tpu.pipeline_mode<synchronous>, transform_indices = @transform_3, window_bounds = array<i64: 1, 128>}, {transform_indices = @transform_4, window_bounds = array<i64: 1, 1, 128>}]} {
    %c0 = arith.constant 0 : index
    %c0_0 = arith.constant 0 : index
    %c0_1 = arith.constant 0 : index
    %0 = vector.load %arg1[%c0, %c0_0, %c0_1] : memref<1x196x576xbf16, #tpu.memory_space<vmem>>, vector<1x196x576xbf16>
    %1 = vector.shape_cast %0 : vector<1x196x576xbf16> to vector<196x576xbf16>
    %c0_2 = arith.constant 0 : index
    %c0_3 = arith.constant 0 : index
    %2 = vector.load %arg3[%c0_2, %c0_3] : memref<576x128xbf16, #tpu.memory_space<vmem>>, vector<576x128xbf16>
    %cst = arith.constant dense<0.000000e+00> : vector<196x128xf32>
    %3 = tpu.matmul %1, %2, %cst {dimension_numbers = #tpu.dot_dimension_numbers<[1], [0], [0], [1], [0, 0, 1, 1], [], []>} : vector<196x576xbf16>, vector<576x128xbf16>, vector<196x128xf32> -> vector<196x128xf32>
    %c0_4 = arith.constant 0 : index
    %c0_5 = arith.constant 0 : index
    %4 = vector.load %arg4[%c0_4, %c0_5] : memref<1x128xf32, #tpu.memory_space<vmem>>, vector<1x128xf32>
    %5 = vector.broadcast %4 : vector<1x128xf32> to vector<196x128xf32>
    %6 = arith.addf %3, %5 : vector<196x128xf32>
    %7 = vector.extract_strided_slice %6 {offsets = [0, 0], sizes = [196, 4], strides = [1, 1]} : vector<196x128xf32> to vector<196x4xf32>
    %c0_6 = arith.constant 0 : index
    %c0_7 = arith.constant 0 : index
    %c0_8 = arith.constant 0 : index
    %8 = vector.load %arg2[%c0_6, %c0_7, %c0_8] : memref<1x196x4xf32, #tpu.memory_space<vmem>>, vector<1x196x4xf32>
    %9 = vector.shape_cast %8 : vector<1x196x4xf32> to vector<196x4xf32>
    %cst_9 = arith.constant 0.000000e+00 : f32
    %10 = vector.broadcast %cst_9 : f32 to vector<196x4xf32>
    %11 = arith.maximumf %7, %10 : vector<196x4xf32>
    %12 = math.absf %7 : vector<196x4xf32>
    %cst_10 = arith.constant 0.000000e+00 : f32
    %13 = vector.broadcast %cst_10 : f32 to vector<196x4xf32>
    %14 = arith.subf %13, %12 : vector<196x4xf32>
    %15 = math.exp %14 : vector<196x4xf32>
    %cst_11 = arith.constant 1.000000e+00 : f32
    %16 = vector.broadcast %cst_11 : f32 to vector<196x4xf32>
    %17 = arith.addf %16, %15 : vector<196x4xf32>
    %18 = math.log %17 : vector<196x4xf32>
    %19 = arith.addf %11, %18 : vector<196x4xf32>
    %20 = arith.mulf %9, %7 : vector<196x4xf32>
    %21 = arith.subf %20, %19 : vector<196x4xf32>
    %22 = vector.shape_cast %21 : vector<196x4xf32> to vector<1x196x4xf32>
    %cst_12 = arith.constant dense<0.000000e+00> : vector<1xf32>
    %23 = vector.multi_reduction <add>, %22, %cst_12 [1, 2] : vector<1x196x4xf32> to vector<1xf32>
    %24 = vector.shape_cast %23 : vector<1xf32> to vector<1x1x1xf32>
    %25 = vector.extract %24[0, 0, 0] : f32 from vector<1x1x1xf32>
    %26 = vector.broadcast %25 : f32 to vector<1x1x128xf32>
    %c0_13 = arith.constant 0 : index
    %c0_14 = arith.constant 0 : index
    %c0_15 = arith.constant 0 : index
    %27 = vector.load %arg5[%c0_13, %c0_14, %c0_15] : memref<1x1x128xf32, #tpu.memory_space<vmem>>, vector<1x1x128xf32>
    tpu.vector_store %arg5[%c0_13, %c0_14, %c0_15], %26 {strides = array<i32>} : memref<1x1x128xf32, #tpu.memory_space<vmem>>, vector<1x1x128xf32>,
    return
  }
  func.func @transform_0(%arg0: i32) -> (i32, i32, i32) {
    %c0_i32 = arith.constant 0 : i32
    %c0_i32_0 = arith.constant 0 : i32
    %c0_i32_1 = arith.constant 0 : i32
    return %arg0, %c0_i32, %c0_i32_0 : i32, i32, i32
  }
  func.func @transform_1(%arg0: i32) -> (i32, i32, i32) {
    %c0_i32 = arith.constant 0 : i32
    %c0_i32_0 = arith.constant 0 : i32
    %c0_i32_1 = arith.constant 0 : i32
    return %arg0, %c0_i32, %c0_i32_0 : i32, i32, i32
  }
  func.func @transform_2(%arg0: i32) -> (i32, i32) {
    %c0_i32 = arith.constant 0 : i32
    %c0_i32_0 = arith.constant 0 : i32
    %c0_i32_1 = arith.constant 0 : i32
    return %c0_i32, %c0_i32_0 : i32, i32
  }
  func.func @transform_3(%arg0: i32) -> (i32, i32) {
    %c0_i32 = arith.constant 0 : i32
    %c0_i32_0 = arith.constant 0 : i32
    %c0_i32_1 = arith.constant 0 : i32
    return %c0_i32, %c0_i32_0 : i32, i32
  }
  func.func @transform_4(%arg0: i32) -> (i32, i32, i32) {
    %c0_i32 = arith.constant 0 : i32
    %c0_i32_0 = arith.constant 0 : i32
    %c0_i32_1 = arith.constant 0 : i32
    return %arg0, %c0_i32, %c0_i32_0 : i32, i32, i32
  }
}

</mosaic_0001>

<llo_original>
// kernel: conv_decoder_forward.4
$region0: #{conv_decoder_forward.4}
  #allocation0 [shape = 'u32[]', space=smem, size = 0x4, offset = 0x4, fixed_abs, tag = 'smem constant byte address 0x4 - core index']
  #allocation1 [shape = 'u32[72,128]{1,0:T(1,128)}', space=vmem, size = 0x9000, scoped, tag = 'internal scratch']
  %s0 = inlined_call_operand.vmem [shape: bf16[128,1152], index: 0, kind: input, shape index: {}]
  %s1 = inlined_call_operand.vmem [shape: bf16[1152,256], index: 1, kind: input, shape index: {}]
  %s2 = inlined_call_operand.vmem [shape: f32[1,256], index: 2, kind: input, shape index: {}]
  %s3 = inlined_call_operand.vmem [shape: bf16[128,256], index: 3, kind: output, shape index: {}]
  %s4 = sld [smem:[#allocation0]]
  $region22: #{conv_decoder_forward.4} parent=0
    _
  %s6 = ssub.s32 1, %s4
  %s7 = scalar_select 0, %s6, %s4
  // Predicated region
  $region2: #{conv_decoder_forward.4} parent=0 // pred_check
    _
  $region3: #{conv_decoder_forward.4} parent=0 // pred_check_branch
    %9 = sbr.rel (0) target = $region5
  $region4: #{conv_decoder_forward.4} parent=0 // pred_region
    _
  $region5: #{conv_decoder_forward.4} parent=0 // pred_fallthru
    _
  // Predicated region
  $region6: #{conv_decoder_forward.4} parent=0 // pred_check
    _
  $region7: #{conv_decoder_forward.4} parent=0 // pred_check_branch
    %11 = sbr.rel (0) target = $region9
  $region8: #{conv_decoder_forward.4} parent=0 // pred_region
    _
  $region9: #{conv_decoder_forward.4} parent=0 // pred_fallthru
    _
  // Predicated region
  $region10: #{conv_decoder_forward.4} parent=0 // pred_check
    _
  $region11: #{conv_decoder_forward.4} parent=0 // pred_check_branch
    %13 = sbr.rel (0) target = $region13
  $region12: #{conv_decoder_forward.4} parent=0 // pred_region
    _
  $region13: #{conv_decoder_forward.4} parent=0 // pred_fallthru
    _
  %v14 = vld [vmem:[%s0] sm:$0xff]
  %v15 = vld [vmem:[%s0 + $0x8] sm:$0xff]
  %v16 = vld [vmem:[%s0 + $0x10] sm:$0xff]
  %v17 = vld [vmem:[%s0 + $0x18] sm:$0xff]
  %v18 = vld [vmem:[%s0 + $0x20] sm:$0xf]
  %v19 = vld [vmem:[%s0 + $0x24] sm:$0xff]
  %v20 = vld [vmem:[%s0 + $0x2c] sm:$0xff]
  %v21 = vld [vmem:[%s0 + $0x34] sm:$0xff]
  %v22 = vld [vmem:[%s0 + $0x3c] sm:$0xff]
  %v23 = vld [vmem:[%s0 + $0x44] sm:$0xf]
  %v24 = vld [vmem:[%s0 + $0x48] sm:$0xff]
  %v25 = vld [vmem:[%s0 + $0x50] sm:$0xff]
  %v26 = vld [vmem:[%s0 + $0x58] sm:$0xff]
  %v27 = vld [vmem:[%s0 + $0x60] sm:$0xff]
  %v28 = vld [vmem:[%s0 + $0x68] sm:$0xf]
  %v29 = vld [vmem:[%s0 + $0x6c] sm:$0xff]
  %v30 = vld [vmem:[%s0 + $0x74] sm:$0xff]
  %v31 = vld [vmem:[%s0 + $0x7c] sm:$0xff]
  %v32 = vld [vmem:[%s0 + $0x84] sm:$0xff]
  %v33 = vld [vmem:[%s0 + $0x8c] sm:$0xf]
  %v34 = vld [vmem:[%s0 + $0x90] sm:$0xff]
  %v35 = vld [vmem:[%s0 + $0x98] sm:$0xff]
  %v36 = vld [vmem:[%s0 + $0xa0] sm:$0xff]
  %v37 = vld [vmem:[%s0 + $0xa8] sm:$0xff]
  %v38 = vld [vmem:[%s0 + $0xb0] sm:$0xf]
  %v39 = vld [vmem:[%s0 + $0xb4] sm:$0xff]
  %v40 = vld [vmem:[%s0 + $0xbc] sm:$0xff]
  %v41 = vld [vmem:[%s0 + $0xc4] sm:$0xff]
  %v42 = vld [vmem:[%s0 + $0xcc] sm:$0xff]
  %v43 = vld [vmem:[%s0 + $0xd4] sm:$0xf]
  %v44 = vld [vmem:[%s0 + $0xd8] sm:$0xff]
  %v45 = vld [vmem:[%s0 + $0xe0] sm:$0xff]
  %v46 = vld [vmem:[%s0 + $0xe8] sm:$0xff]
  %v47 = vld [vmem:[%s0 + $0xf0] sm:$0xff]
  %v48 = vld [vmem:[%s0 + $0xf8] sm:$0xf]
  %v49 = vld [vmem:[%s0 + $0xfc] sm:$0xff]
  %v50 = vld [vmem:[%s0 + $0x104] sm:$0xff]
  %v51 = vld [vmem:[%s0 + $0x10c] sm:$0xff]
  %v52 = vld [vmem:[%s0 + $0x114] sm:$0xff]
  %v53 = vld [vmem:[%s0 + $0x11c] sm:$0xf]
  %v54 = vld [vmem:[%s0 + $0x120] sm:$0xff]
  %v55 = vld [vmem:[%s0 + $0x128] sm:$0xff]
  %v56 = vld [vmem:[%s0 + $0x130] sm:$0xff]
  %v57 = vld [vmem:[%s0 + $0x138] sm:$0xff]
  %v58 = vld [vmem:[%s0 + $0x140] sm:$0xf]
  %v59 = vld [vmem:[%s0 + $0x144] sm:$0xff]
  %v60 = vld [vmem:[%s0 + $0x14c] sm:$0xff]
  %v61 = vld [vmem:[%s0 + $0x154] sm:$0xff]
  %v62 = vld [vmem:[%s0 + $0x15c] sm:$0xff]
  %v63 = vld [vmem:[%s0 + $0x164] sm:$0xf]
  %v64 = vld [vmem:[%s0 + $0x168] sm:$0xff]
  %v65 = vld [vmem:[%s0 + $0x170] sm:$0xff]
  %v66 = vld [vmem:[%s0 + $0x178] sm:$0xff]
  %v67 = vld [vmem:[%s0 + $0x180] sm:$0xff]
  %v68 = vld [vmem:[%s0 + $0x188] sm:$0xf]
  %v69 = vld [vmem:[%s0 + $0x18c] sm:$0xff]
  %v70 = vld [vmem:[%s0 + $0x194] sm:$0xff]
  %v71 = vld [vmem:[%s0 + $0x19c] sm:$0xff]
  %v72 = vld [vmem:[%s0 + $0x1a4] sm:$0xff]
  %v73 = vld [vmem:[%s0 + $0x1ac] sm:$0xf]
  %v74 = vld [vmem:[%s0 + $0x1b0] sm:$0xff]
  %v75 = vld [vmem:[%s0 + $0x1b8] sm:$0xff]
  %v76 = vld [vmem:[%s0 + $0x1c0] sm:$0xff]
  %v77 = vld [vmem:[%s0 + $0x1c8] sm:$0xff]
  %v78 = vld [vmem:[%s0 + $0x1d0] sm:$0xf]
  %v79 = vld [vmem:[%s0 + $0x1d4] sm:$0xff]
  %v80 = vld [vmem:[%s0 + $0x1dc] sm:$0xff]
  %v81 = vld [vmem:[%s0 + $0x1e4] sm:$0xff]
  %v82 = vld [vmem:[%s0 + $0x1ec] sm:$0xff]
  %v83 = vld [vmem:[%s0 + $0x1f4] sm:$0xf]
  %v84 = vld [vmem:[%s0 + $0x1f8] sm:$0xff]
  %v85 = vld [vmem:[%s0 + $0x200] sm:$0xff]
  %v86 = vld [vmem:[%s0 + $0x208] sm:$0xff]
  %v87 = vld [vmem:[%s0 + $0x210] sm:$0xff]
  %v88 = vld [vmem:[%s0 + $0x218] sm:$0xf]
  %v89 = vld [vmem:[%s0 + $0x21c] sm:$0xff]
  %v90 = vld [vmem:[%s0 + $0x224] sm:$0xff]
  %v91 = vld [vmem:[%s0 + $0x22c] sm:$0xff]
  %v92 = vld [vmem:[%s0 + $0x234] sm:$0xff]
  %v93 = vld [vmem:[%s0 + $0x23c] sm:$0xf]
  %v94 = vld [vmem:[%s1] sm:$0xff]
  %v95 = vld [vmem:[%s1 + $0x8] sm:$0xff]
  %v96 = vld [vmem:[%s1 + $0x10] sm:$0xff]
  %v97 = vld [vmem:[%s1 + $0x18] sm:$0xff]
  %v98 = vld [vmem:[%s1 + $0x20] sm:$0xff]
  %v99 = vld [vmem:[%s1 + $0x28] sm:$0xff]
  %v100 = vld [vmem:[%s1 + $0x30] sm:$0xff]
  %v101 = vld [vmem:[%s1 + $0x38] sm:$0xff]
  %v102 = vld [vmem:[%s1 + $0x40] sm:$0xff]
  %v103 = vld [vmem:[%s1 + $0x48] sm:$0xff]
  %v104 = vld [vmem:[%s1 + $0x50] sm:$0xff]
  %v105 = vld [vmem:[%s1 + $0x58] sm:$0xff]
  %v106 = vld [vmem:[%s1 + $0x60] sm:$0xff]
  %v107 = vld [vmem:[%s1 + $0x68] sm:$0xff]
  %v108 = vld [vmem:[%s1 + $0x70] sm:$0xff]
  %v109 = vld [vmem:[%s1 + $0x78] sm:$0xff]
  %v110 = vld [vmem:[%s1 + $0x80] sm:$0xff]
  %v111 = vld [vmem:[%s1 + $0x88] sm:$0xff]
  %v112 = vld [vmem:[%s1 + $0x90] sm:$0xff]
  %v113 = vld [vmem:[%s1 + $0x98] sm:$0xff]
  %v114 = vld [vmem:[%s1 + $0xa0] sm:$0xff]
  %v115 = vld [vmem:[%s1 + $0xa8] sm:$0xff]
  %v116 = vld [vmem:[%s1 + $0xb0] sm:$0xff]
  %v117 = vld [vmem:[%s1 + $0xb8] sm:$0xff]
  %v118 = vld [vmem:[%s1 + $0xc0] sm:$0xff]
  %v119 = vld [vmem:[%s1 + $0xc8] sm:$0xff]
  %v120 = vld [vmem:[%s1 + $0xd0] sm:$0xff]
  %v121 = vld [vmem:[%s1 + $0xd8] sm:$0xff]
  %v122 = vld [vmem:[%s1 + $0xe0] sm:$0xff]
  %v123 = vld [vmem:[%s1 + $0xe8] sm:$0xff]
  %v124 = vld [vmem:[%s1 + $0xf0] sm:$0xff]
  %v125 = vld [vmem:[%s1 + $0xf8] sm:$0xff]
  %v126 = vld [vmem:[%s1 + $0x100] sm:$0xff]
  %v127 = vld [vmem:[%s1 + $0x108] sm:$0xff]
  %v128 = vld [vmem:[%s1 + $0x110] sm:$0xff]
  %v129 = vld [vmem:[%s1 + $0x118] sm:$0xff]
  %v130 = vld [vmem:[%s1 + $0x120] sm:$0xff]
  %v131 = vld [vmem:[%s1 + $0x128] sm:$0xff]
  %v132 = vld [vmem:[%s1 + $0x130] sm:$0xff]
  %v133 = vld [vmem:[%s1 + $0x138] sm:$0xff]
  %v134 = vld [vmem:[%s1 + $0x140] sm:$0xff]
  %v135 = vld [vmem:[%s1 + $0x148] sm:$0xff]
  %v136 = vld [vmem:[%s1 + $0x150] sm:$0xff]
  %v137 = vld [vmem:[%s1 + $0x158] sm:$0xff]
  %v138 = vld [vmem:[%s1 + $0x160] sm:$0xff]
  %v139 = vld [vmem:[%s1 + $0x168] sm:$0xff]
  %v140 = vld [vmem:[%s1 + $0x170] sm:$0xff]
  %v141 = vld [vmem:[%s1 + $0x178] sm:$0xff]
  %v142 = vld [vmem:[%s1 + $0x180] sm:$0xff]
  %v143 = vld [vmem:[%s1 + $0x188] sm:$0xff]
  %v144 = vld [vmem:[%s1 + $0x190] sm:$0xff]
  %v145 = vld [vmem:[%s1 + $0x198] sm:$0xff]
  %v146 = vld [vmem:[%s1 + $0x1a0] sm:$0xff]
  %v147 = vld [vmem:[%s1 + $0x1a8] sm:$0xff]
  %v148 = vld [vmem:[%s1 + $0x1b0] sm:$0xff]
  %v149 = vld [vmem:[%s1 + $0x1b8] sm:$0xff]
  %v150 = vld [vmem:[%s1 + $0x1c0] sm:$0xff]
  %v151 = vld [vmem:[%s1 + $0x1c8] sm:$0xff]
  %v152 = vld [vmem:[%s1 + $0x1d0] sm:$0xff]
  %v153 = vld [vmem:[%s1 + $0x1d8] sm:$0xff]
  %v154 = vld [vmem:[%s1 + $0x1e0] sm:$0xff]
  %v155 = vld [vmem:[%s1 + $0x1e8] sm:$0xff]
  %v156 = vld [vmem:[%s1 + $0x1f0] sm:$0xff]
  %v157 = vld [vmem:[%s1 + $0x1f8] sm:$0xff]
  %v158 = vld [vmem:[%s1 + $0x200] sm:$0xff]
  %v159 = vld [vmem:[%s1 + $0x208] sm:$0xff]
  %v160 = vld [vmem:[%s1 + $0x210] sm:$0xff]
  %v161 = vld [vmem:[%s1 + $0x218] sm:$0xff]
  %v162 = vld [vmem:[%s1 + $0x220] sm:$0xff]
  %v163 = vld [vmem:[%s1 + $0x228] sm:$0xff]
  %v164 = vld [vmem:[%s1 + $0x230] sm:$0xff]
  %v165 = vld [vmem:[%s1 + $0x238] sm:$0xff]
  %v166 = vld [vmem:[%s1 + $0x240] sm:$0xff]
  %v167 = vld [vmem:[%s1 + $0x248] sm:$0xff]
  %v168 = vld [vmem:[%s1 + $0x250] sm:$0xff]
  %v169 = vld [vmem:[%s1 + $0x258] sm:$0xff]
  %v170 = vld [vmem:[%s1 + $0x260] sm:$0xff]
  %v171 = vld [vmem:[%s1 + $0x268] sm:$0xff]
  %v172 = vld [vmem:[%s1 + $0x270] sm:$0xff]
  %v173 = vld [vmem:[%s1 + $0x278] sm:$0xff]
  %v174 = vld [vmem:[%s1 + $0x280] sm:$0xff]
  %v175 = vld [vmem:[%s1 + $0x288] sm:$0xff]
  %v176 = vld [vmem:[%s1 + $0x290] sm:$0xff]
  %v177 = vld [vmem:[%s1 + $0x298] sm:$0xff]
  %v178 = vld [vmem:[%s1 + $0x2a0] sm:$0xff]
  %v179 = vld [vmem:[%s1 + $0x2a8] sm:$0xff]
  %v180 = vld [vmem:[%s1 + $0x2b0] sm:$0xff]
  %v181 = vld [vmem:[%s1 + $0x2b8] sm:$0xff]
  %v182 = vld [vmem:[%s1 + $0x2c0] sm:$0xff]
  %v183 = vld [vmem:[%s1 + $0x2c8] sm:$0xff]
  %v184 = vld [vmem:[%s1 + $0x2d0] sm:$0xff]
  %v185 = vld [vmem:[%s1 + $0x2d8] sm:$0xff]
  %v186 = vld [vmem:[%s1 + $0x2e0] sm:$0xff]
  %v187 = vld [vmem:[%s1 + $0x2e8] sm:$0xff]
  %v188 = vld [vmem:[%s1 + $0x2f0] sm:$0xff]
  %v189 = vld [vmem:[%s1 + $0x2f8] sm:$0xff]
  %v190 = vld [vmem:[%s1 + $0x300] sm:$0xff]
  %v191 = vld [vmem:[%s1 + $0x308] sm:$0xff]
  %v192 = vld [vmem:[%s1 + $0x310] sm:$0xff]
  %v193 = vld [vmem:[%s1 + $0x318] sm:$0xff]
  %v194 = vld [vmem:[%s1 + $0x320] sm:$0xff]
  %v195 = vld [vmem:[%s1 + $0x328] sm:$0xff]
  %v196 = vld [vmem:[%s1 + $0x330] sm:$0xff]
  %v197 = vld [vmem:[%s1 + $0x338] sm:$0xff]
  %v198 = vld [vmem:[%s1 + $0x340] sm:$0xff]
  %v199 = vld [vmem:[%s1 + $0x348] sm:$0xff]
  %v200 = vld [vmem:[%s1 + $0x350] sm:$0xff]
  %v201 = vld [vmem:[%s1 + $0x358] sm:$0xff]
  %v202 = vld [vmem:[%s1 + $0x360] sm:$0xff]
  %v203 = vld [vmem:[%s1 + $0x368] sm:$0xff]
  %v204 = vld [vmem:[%s1 + $0x370] sm:$0xff]
  %v205 = vld [vmem:[%s1 + $0x378] sm:$0xff]
  %v206 = vld [vmem:[%s1 + $0x380] sm:$0xff]
  %v207 = vld [vmem:[%s1 + $0x388] sm:$0xff]
  %v208 = vld [vmem:[%s1 + $0x390] sm:$0xff]
  %v209 = vld [vmem:[%s1 + $0x398] sm:$0xff]
  %v210 = vld [vmem:[%s1 + $0x3a0] sm:$0xff]
  %v211 = vld [vmem:[%s1 + $0x3a8] sm:$0xff]
  %v212 = vld [vmem:[%s1 + $0x3b0] sm:$0xff]
  %v213 = vld [vmem:[%s1 + $0x3b8] sm:$0xff]
  %v214 = vld [vmem:[%s1 + $0x3c0] sm:$0xff]
  %v215 = vld [vmem:[%s1 + $0x3c8] sm:$0xff]
  %v216 = vld [vmem:[%s1 + $0x3d0] sm:$0xff]
  %v217 = vld [vmem:[%s1 + $0x3d8] sm:$0xff]
  %v218 = vld [vmem:[%s1 + $0x3e0] sm:$0xff]
  %v219 = vld [vmem:[%s1 + $0x3e8] sm:$0xff]
  %v220 = vld [vmem:[%s1 + $0x3f0] sm:$0xff]
  %v221 = vld [vmem:[%s1 + $0x3f8] sm:$0xff]
  %v222 = vld [vmem:[%s1 + $0x400] sm:$0xff]
  %v223 = vld [vmem:[%s1 + $0x408] sm:$0xff]
  %v224 = vld [vmem:[%s1 + $0x410] sm:$0xff]
  %v225 = vld [vmem:[%s1 + $0x418] sm:$0xff]
  %v226 = vld [vmem:[%s1 + $0x420] sm:$0xff]
  %v227 = vld [vmem:[%s1 + $0x428] sm:$0xff]
  %v228 = vld [vmem:[%s1 + $0x430] sm:$0xff]
  %v229 = vld [vmem:[%s1 + $0x438] sm:$0xff]
  %v230 = vld [vmem:[%s1 + $0x440] sm:$0xff]
  %v231 = vld [vmem:[%s1 + $0x448] sm:$0xff]
  %v232 = vld [vmem:[%s1 + $0x450] sm:$0xff]
  %v233 = vld [vmem:[%s1 + $0x458] sm:$0xff]
  %v234 = vld [vmem:[%s1 + $0x460] sm:$0xff]
  %v235 = vld [vmem:[%s1 + $0x468] sm:$0xff]
  %v236 = vld [vmem:[%s1 + $0x470] sm:$0xff]
  %v237 = vld [vmem:[%s1 + $0x478] sm:$0xff]
  %v238 = vld [vmem:[%s2] sm:$0x3]
  %v240 = vperm.slane %v238, 0
  %v241 = vperm.slane %v238, 1
  %v324 = vunpack.c.l.b16 %v14
  %v325 = vunpack.c.h.b16 %v14
  %v326 = vunpack.c.l.b16 %v15
  %v327 = vunpack.c.h.b16 %v15
  %v328 = vunpack.c.l.b16 %v16
  %v329 = vunpack.c.h.b16 %v16
  %v330 = vunpack.c.l.b16 %v17
  %v331 = vunpack.c.h.b16 %v17
  %v332 = vunpack.c.l.b16 %v18
  %v333 = vunpack.c.l.b16 %v19
  %v334 = vunpack.c.h.b16 %v19
  %v335 = vunpack.c.l.b16 %v20
  %v336 = vunpack.c.h.b16 %v20
  %v337 = vunpack.c.l.b16 %v21
  %v338 = vunpack.c.h.b16 %v21
  %v339 = vunpack.c.l.b16 %v22
  %v340 = vunpack.c.h.b16 %v22
  %v341 = vunpack.c.l.b16 %v23
  %v342 = vunpack.c.l.b16 %v24
  %v343 = vunpack.c.h.b16 %v24
  %v344 = vunpack.c.l.b16 %v25
  %v345 = vunpack.c.h.b16 %v25
  %v346 = vunpack.c.l.b16 %v26
  %v347 = vunpack.c.h.b16 %v26
  %v348 = vunpack.c.l.b16 %v27
  %v349 = vunpack.c.h.b16 %v27
  %v350 = vunpack.c.l.b16 %v28
  %v351 = vunpack.c.l.b16 %v29
  %v352 = vunpack.c.h.b16 %v29
  %v353 = vunpack.c.l.b16 %v30
  %v354 = vunpack.c.h.b16 %v30
  %v355 = vunpack.c.l.b16 %v31
  %v356 = vunpack.c.h.b16 %v31
  %v357 = vunpack.c.l.b16 %v32
  %v358 = vunpack.c.h.b16 %v32
  %v359 = vunpack.c.l.b16 %v33
  %v360 = vunpack.c.l.b16 %v34
  %v361 = vunpack.c.h.b16 %v34
  %v362 = vunpack.c.l.b16 %v35
  %v363 = vunpack.c.h.b16 %v35
  %v364 = vunpack.c.l.b16 %v36
  %v365 = vunpack.c.h.b16 %v36
  %v366 = vunpack.c.l.b16 %v37
  %v367 = vunpack.c.h.b16 %v37
  %v368 = vunpack.c.l.b16 %v38
  %v369 = vunpack.c.l.b16 %v39
  %v370 = vunpack.c.h.b16 %v39
  %v371 = vunpack.c.l.b16 %v40
  %v372 = vunpack.c.h.b16 %v40
  %v373 = vunpack.c.l.b16 %v41
  %v374 = vunpack.c.h.b16 %v41
  %v375 = vunpack.c.l.b16 %v42
  %v376 = vunpack.c.h.b16 %v42
  %v377 = vunpack.c.l.b16 %v43
  %v378 = vunpack.c.l.b16 %v44
  %v379 = vunpack.c.h.b16 %v44
  %v380 = vunpack.c.l.b16 %v45
  %v381 = vunpack.c.h.b16 %v45
  %v382 = vunpack.c.l.b16 %v46
  %v383 = vunpack.c.h.b16 %v46
  %v384 = vunpack.c.l.b16 %v47
  %v385 = vunpack.c.h.b16 %v47
  %v386 = vunpack.c.l.b16 %v48
  %v387 = vunpack.c.l.b16 %v49
  %v388 = vunpack.c.h.b16 %v49
  %v389 = vunpack.c.l.b16 %v50
  %v390 = vunpack.c.h.b16 %v50
  %v391 = vunpack.c.l.b16 %v51
  %v392 = vunpack.c.h.b16 %v51
  %v393 = vunpack.c.l.b16 %v52
  %v394 = vunpack.c.h.b16 %v52
  %v395 = vunpack.c.l.b16 %v53
  %v396 = vunpack.c.l.b16 %v54
  %v397 = vunpack.c.h.b16 %v54
  %v398 = vunpack.c.l.b16 %v55
  %v399 = vunpack.c.h.b16 %v55
  %v400 = vunpack.c.l.b16 %v56
  %v401 = vunpack.c.h.b16 %v56
  %v402 = vunpack.c.l.b16 %v57
  %v403 = vunpack.c.h.b16 %v57
  %v404 = vunpack.c.l.b16 %v58
  %v405 = vunpack.c.l.b16 %v59
  %v406 = vunpack.c.h.b16 %v59
  %v407 = vunpack.c.l.b16 %v60
  %v408 = vunpack.c.h.b16 %v60
  %v409 = vunpack.c.l.b16 %v61
  %v410 = vunpack.c.h.b16 %v61
  %v411 = vunpack.c.l.b16 %v62
  %v412 = vunpack.c.h.b16 %v62
  %v413 = vunpack.c.l.b16 %v63
  %v414 = vunpack.c.l.b16 %v64
  %v415 = vunpack.c.h.b16 %v64
  %v416 = vunpack.c.l.b16 %v65
  %v417 = vunpack.c.h.b16 %v65
  %v418 = vunpack.c.l.b16 %v66
  %v419 = vunpack.c.h.b16 %v66
  %v420 = vunpack.c.l.b16 %v67
  %v421 = vunpack.c.h.b16 %v67
  %v422 = vunpack.c.l.b16 %v68
  %v423 = vunpack.c.l.b16 %v69
  %v424 = vunpack.c.h.b16 %v69
  %v425 = vunpack.c.l.b16 %v70
  %v426 = vunpack.c.h.b16 %v70
  %v427 = vunpack.c.l.b16 %v71
  %v428 = vunpack.c.h.b16 %v71
  %v429 = vunpack.c.l.b16 %v72
  %v430 = vunpack.c.h.b16 %v72
  %v431 = vunpack.c.l.b16 %v73
  %v432 = vunpack.c.l.b16 %v74
  %v433 = vunpack.c.h.b16 %v74
  %v434 = vunpack.c.l.b16 %v75
  %v435 = vunpack.c.h.b16 %v75
  %v436 = vunpack.c.l.b16 %v76
  %v437 = vunpack.c.h.b16 %v76
  %v438 = vunpack.c.l.b16 %v77
  %v439 = vunpack.c.h.b16 %v77
  %v440 = vunpack.c.l.b16 %v78
  %v441 = vunpack.c.l.b16 %v79
  %v442 = vunpack.c.h.b16 %v79
  %v443 = vunpack.c.l.b16 %v80
  %v444 = vunpack.c.h.b16 %v80
  %v445 = vunpack.c.l.b16 %v81
  %v446 = vunpack.c.h.b16 %v81
  %v447 = vunpack.c.l.b16 %v82
  %v448 = vunpack.c.h.b16 %v82
  %v449 = vunpack.c.l.b16 %v83
  %v450 = vunpack.c.l.b16 %v84
  %v451 = vunpack.c.h.b16 %v84
  %v452 = vunpack.c.l.b16 %v85
  %v453 = vunpack.c.h.b16 %v85
  %v454 = vunpack.c.l.b16 %v86
  %v455 = vunpack.c.h.b16 %v86
  %v456 = vunpack.c.l.b16 %v87
  %v457 = vunpack.c.h.b16 %v87
  %v458 = vunpack.c.l.b16 %v88
  %v459 = vunpack.c.l.b16 %v89
  %v460 = vunpack.c.h.b16 %v89
  %v461 = vunpack.c.l.b16 %v90
  %v462 = vunpack.c.h.b16 %v90
  %v463 = vunpack.c.l.b16 %v91
  %v464 = vunpack.c.h.b16 %v91
  %v465 = vunpack.c.l.b16 %v92
  %v466 = vunpack.c.h.b16 %v92
  %v467 = vunpack.c.l.b16 %v93
  %v468 = vpack.c.b16 %v333, %v324
  %v469 = vpack.c.b16 %v334, %v325
  %v470 = vpack.c.b16 %v335, %v326
  %v471 = vpack.c.b16 %v336, %v327
  %v472 = vpack.c.b16 %v337, %v328
  %v473 = vpack.c.b16 %v338, %v329
  %v474 = vpack.c.b16 %v339, %v330
  %v475 = vpack.c.b16 %v340, %v331
  %v476 = vpack.c.b16 %v341, %v332
  %v477 = vpack.c.b16 %v351, %v342
  %v478 = vpack.c.b16 %v352, %v343
  %v479 = vpack.c.b16 %v353, %v344
  %v480 = vpack.c.b16 %v354, %v345
  %v481 = vpack.c.b16 %v355, %v346
  %v482 = vpack.c.b16 %v356, %v347
  %v483 = vpack.c.b16 %v357, %v348
  %v484 = vpack.c.b16 %v358, %v349
  %v485 = vpack.c.b16 %v359, %v350
  %v486 = vpack.c.b16 %v369, %v360
  %v487 = vpack.c.b16 %v370, %v361
  %v488 = vpack.c.b16 %v371, %v362
  %v489 = vpack.c.b16 %v372, %v363
  %v490 = vpack.c.b16 %v373, %v364
  %v491 = vpack.c.b16 %v374, %v365
  %v492 = vpack.c.b16 %v375, %v366
  %v493 = vpack.c.b16 %v376, %v367
  %v494 = vpack.c.b16 %v377, %v368
  %v495 = vpack.c.b16 %v387, %v378
  %v496 = vpack.c.b16 %v388, %v379
  %v497 = vpack.c.b16 %v389, %v380
  %v498 = vpack.c.b16 %v390, %v381
  %v499 = vpack.c.b16 %v391, %v382
  %v500 = vpack.c.b16 %v392, %v383
  %v501 = vpack.c.b16 %v393, %v384
  %v502 = vpack.c.b16 %v394, %v385
  %v503 = vpack.c.b16 %v395, %v386
  %v504 = vpack.c.b16 %v405, %v396
  %v505 = vpack.c.b16 %v406, %v397
  %v506 = vpack.c.b16 %v407, %v398
  %v507 = vpack.c.b16 %v408, %v399
  %v508 = vpack.c.b16 %v409, %v400
  %v509 = vpack.c.b16 %v410, %v401
  %v510 = vpack.c.b16 %v411, %v402
  %v511 = vpack.c.b16 %v412, %v403
  %v512 = vpack.c.b16 %v413, %v404
  %v513 = vpack.c.b16 %v423, %v414
  %v514 = vpack.c.b16 %v424, %v415
  %v515 = vpack.c.b16 %v425, %v416
  %v516 = vpack.c.b16 %v426, %v417
  %v517 = vpack.c.b16 %v427, %v418
  %v518 = vpack.c.b16 %v428, %v419
  %v519 = vpack.c.b16 %v429, %v420
  %v520 = vpack.c.b16 %v430, %v421
  %v521 = vpack.c.b16 %v431, %v422
  %v522 = vpack.c.b16 %v441, %v432
  %v523 = vpack.c.b16 %v442, %v433
  %v524 = vpack.c.b16 %v443, %v434
  %v525 = vpack.c.b16 %v444, %v435
  %v526 = vpack.c.b16 %v445, %v436
  %v527 = vpack.c.b16 %v446, %v437
  %v528 = vpack.c.b16 %v447, %v438
  %v529 = vpack.c.b16 %v448, %v439
  %v530 = vpack.c.b16 %v449, %v440
  %v531 = vpack.c.b16 %v459, %v450
  %v532 = vpack.c.b16 %v460, %v451
  %v533 = vpack.c.b16 %v461, %v452
  %v534 = vpack.c.b16 %v462, %v453
  %v535 = vpack.c.b16 %v463, %v454
  %v536 = vpack.c.b16 %v464, %v455
  %v537 = vpack.c.b16 %v465, %v456
  %v538 = vpack.c.b16 %v466, %v457
  %v539 = vpack.c.b16 %v467, %v458
  %v756 = vunpack.c.l.b16 %v94
  %v757 = vunpack.c.h.b16 %v94
  %v758 = vunpack.c.l.b16 %v95
  %v759 = vunpack.c.h.b16 %v95
  %v760 = vunpack.c.l.b16 %v96
  %v761 = vunpack.c.h.b16 %v96
  %v762 = vunpack.c.l.b16 %v97
  %v763 = vunpack.c.h.b16 %v97
  %v764 = vunpack.c.l.b16 %v98
  %v765 = vunpack.c.h.b16 %v98
  %v766 = vunpack.c.l.b16 %v99
  %v767 = vunpack.c.h.b16 %v99
  %v768 = vunpack.c.l.b16 %v100
  %v769 = vunpack.c.h.b16 %v100
  %v770 = vunpack.c.l.b16 %v101
  %v771 = vunpack.c.h.b16 %v101
  %v772 = vunpack.c.l.b16 %v102
  %v773 = vunpack.c.h.b16 %v102
  %v774 = vunpack.c.l.b16 %v103
  %v775 = vunpack.c.h.b16 %v103
  %v776 = vunpack.c.l.b16 %v104
  %v777 = vunpack.c.h.b16 %v104
  %v778 = vunpack.c.l.b16 %v105
  %v779 = vunpack.c.h.b16 %v105
  %v780 = vunpack.c.l.b16 %v106
  %v781 = vunpack.c.h.b16 %v106
  %v782 = vunpack.c.l.b16 %v107
  %v783 = vunpack.c.h.b16 %v107
  %v784 = vunpack.c.l.b16 %v108
  %v785 = vunpack.c.h.b16 %v108
  %v786 = vunpack.c.l.b16 %v109
  %v787 = vunpack.c.h.b16 %v109
  %v788 = vunpack.c.l.b16 %v110
  %v789 = vunpack.c.h.b16 %v110
  %v790 = vunpack.c.l.b16 %v111
  %v791 = vunpack.c.h.b16 %v111
  %v792 = vunpack.c.l.b16 %v112
  %v793 = vunpack.c.h.b16 %v112
  %v794 = vunpack.c.l.b16 %v113
  %v795 = vunpack.c.h.b16 %v113
  %v796 = vunpack.c.l.b16 %v114
  %v797 = vunpack.c.h.b16 %v114
  %v798 = vunpack.c.l.b16 %v115
  %v799 = vunpack.c.h.b16 %v115
  %v800 = vunpack.c.l.b16 %v116
  %v801 = vunpack.c.h.b16 %v116
  %v802 = vunpack.c.l.b16 %v117
  %v803 = vunpack.c.h.b16 %v117
  %v804 = vunpack.c.l.b16 %v118
  %v805 = vunpack.c.h.b16 %v118
  %v806 = vunpack.c.l.b16 %v119
  %v807 = vunpack.c.h.b16 %v119
  %v808 = vunpack.c.l.b16 %v120
  %v809 = vunpack.c.h.b16 %v120
  %v810 = vunpack.c.l.b16 %v121
  %v811 = vunpack.c.h.b16 %v121
  %v812 = vunpack.c.l.b16 %v122
  %v813 = vunpack.c.h.b16 %v122
  %v814 = vunpack.c.l.b16 %v123
  %v815 = vunpack.c.h.b16 %v123
  %v816 = vunpack.c.l.b16 %v124
  %v817 = vunpack.c.h.b16 %v124
  %v818 = vunpack.c.l.b16 %v125
  %v819 = vunpack.c.h.b16 %v125
  %v820 = vunpack.c.l.b16 %v126
  %v821 = vunpack.c.h.b16 %v126
  %v822 = vunpack.c.l.b16 %v127
  %v823 = vunpack.c.h.b16 %v127
  %v824 = vunpack.c.l.b16 %v128
  %v825 = vunpack.c.h.b16 %v128
  %v826 = vunpack.c.l.b16 %v129
  %v827 = vunpack.c.h.b16 %v129
  %v828 = vunpack.c.l.b16 %v130
  %v829 = vunpack.c.h.b16 %v130
  %v830 = vunpack.c.l.b16 %v131
  %v831 = vunpack.c.h.b16 %v131
  %v832 = vunpack.c.l.b16 %v132
  %v833 = vunpack.c.h.b16 %v132
  %v834 = vunpack.c.l.b16 %v133
  %v835 = vunpack.c.h.b16 %v133
  %v836 = vunpack.c.l.b16 %v134
  %v837 = vunpack.c.h.b16 %v134
  %v838 = vunpack.c.l.b16 %v135
  %v839 = vunpack.c.h.b16 %v135
  %v840 = vunpack.c.l.b16 %v136
  %v841 = vunpack.c.h.b16 %v136
  %v842 = vunpack.c.l.b16 %v137
  %v843 = vunpack.c.h.b16 %v137
  %v844 = vunpack.c.l.b16 %v138
  %v845 = vunpack.c.h.b16 %v138
  %v846 = vunpack.c.l.b16 %v139
  %v847 = vunpack.c.h.b16 %v139
  %v848 = vunpack.c.l.b16 %v140
  %v849 = vunpack.c.h.b16 %v140
  %v850 = vunpack.c.l.b16 %v141
  %v851 = vunpack.c.h.b16 %v141
  %v852 = vunpack.c.l.b16 %v142
  %v853 = vunpack.c.h.b16 %v142
  %v854 = vunpack.c.l.b16 %v143
  %v855 = vunpack.c.h.b16 %v143
  %v856 = vunpack.c.l.b16 %v144
  %v857 = vunpack.c.h.b16 %v144
  %v858 = vunpack.c.l.b16 %v145
  %v859 = vunpack.c.h.b16 %v145
  %v860 = vunpack.c.l.b16 %v146
  %v861 = vunpack.c.h.b16 %v146
  %v862 = vunpack.c.l.b16 %v147
  %v863 = vunpack.c.h.b16 %v147
  %v864 = vunpack.c.l.b16 %v148
  %v865 = vunpack.c.h.b16 %v148
  %v866 = vunpack.c.l.b16 %v149
  %v867 = vunpack.c.h.b16 %v149
  %v868 = vunpack.c.l.b16 %v150
  %v869 = vunpack.c.h.b16 %v150
  %v870 = vunpack.c.l.b16 %v151
  %v871 = vunpack.c.h.b16 %v151
  %v872 = vunpack.c.l.b16 %v152
  %v873 = vunpack.c.h.b16 %v152
  %v874 = vunpack.c.l.b16 %v153
  %v875 = vunpack.c.h.b16 %v153
  %v876 = vunpack.c.l.b16 %v154
  %v877 = vunpack.c.h.b16 %v154
  %v878 = vunpack.c.l.b16 %v155
  %v879 = vunpack.c.h.b16 %v155
  %v880 = vunpack.c.l.b16 %v156
  %v881 = vunpack.c.h.b16 %v156
  %v882 = vunpack.c.l.b16 %v157
  %v883 = vunpack.c.h.b16 %v157
  %v884 = vunpack.c.l.b16 %v158
  %v885 = vunpack.c.h.b16 %v158
  %v886 = vunpack.c.l.b16 %v159
  %v887 = vunpack.c.h.b16 %v159
  %v888 = vunpack.c.l.b16 %v160
  %v889 = vunpack.c.h.b16 %v160
  %v890 = vunpack.c.l.b16 %v161
  %v891 = vunpack.c.h.b16 %v161
  %v892 = vunpack.c.l.b16 %v162
  %v893 = vunpack.c.h.b16 %v162
  %v894 = vunpack.c.l.b16 %v163
  %v895 = vunpack.c.h.b16 %v163
  %v896 = vunpack.c.l.b16 %v164
  %v897 = vunpack.c.h.b16 %v164
  %v898 = vunpack.c.l.b16 %v165
  %v899 = vunpack.c.h.b16 %v165
  %v900 = vunpack.c.l.b16 %v166
  %v901 = vunpack.c.h.b16 %v166
  %v902 = vunpack.c.l.b16 %v167
  %v903 = vunpack.c.h.b16 %v167
  %v904 = vunpack.c.l.b16 %v168
  %v905 = vunpack.c.h.b16 %v168
  %v906 = vunpack.c.l.b16 %v169
  %v907 = vunpack.c.h.b16 %v169
  %v908 = vunpack.c.l.b16 %v170
  %v909 = vunpack.c.h.b16 %v170
  %v910 = vunpack.c.l.b16 %v171
  %v911 = vunpack.c.h.b16 %v171
  %v912 = vunpack.c.l.b16 %v172
  %v913 = vunpack.c.h.b16 %v172
  %v914 = vunpack.c.l.b16 %v173
  %v915 = vunpack.c.h.b16 %v173
  %v916 = vunpack.c.l.b16 %v174
  %v917 = vunpack.c.h.b16 %v174
  %v918 = vunpack.c.l.b16 %v175
  %v919 = vunpack.c.h.b16 %v175
  %v920 = vunpack.c.l.b16 %v176
  %v921 = vunpack.c.h.b16 %v176
  %v922 = vunpack.c.l.b16 %v177
  %v923 = vunpack.c.h.b16 %v177
  %v924 = vunpack.c.l.b16 %v178
  %v925 = vunpack.c.h.b16 %v178
  %v926 = vunpack.c.l.b16 %v179
  %v927 = vunpack.c.h.b16 %v179
  %v928 = vunpack.c.l.b16 %v180
  %v929 = vunpack.c.h.b16 %v180
  %v930 = vunpack.c.l.b16 %v181
  %v931 = vunpack.c.h.b16 %v181
  %v932 = vunpack.c.l.b16 %v182
  %v933 = vunpack.c.h.b16 %v182
  %v934 = vunpack.c.l.b16 %v183
  %v935 = vunpack.c.h.b16 %v183
  %v936 = vunpack.c.l.b16 %v184
  %v937 = vunpack.c.h.b16 %v184
  %v938 = vunpack.c.l.b16 %v185
  %v939 = vunpack.c.h.b16 %v185
  %v940 = vunpack.c.l.b16 %v186
  %v941 = vunpack.c.h.b16 %v186
  %v942 = vunpack.c.l.b16 %v187
  %v943 = vunpack.c.h.b16 %v187
  %v944 = vunpack.c.l.b16 %v188
  %v945 = vunpack.c.h.b16 %v188
  %v946 = vunpack.c.l.b16 %v189
  %v947 = vunpack.c.h.b16 %v189
  %v948 = vunpack.c.l.b16 %v190
  %v949 = vunpack.c.h.b16 %v190
  %v950 = vunpack.c.l.b16 %v191
  %v951 = vunpack.c.h.b16 %v191
  %v952 = vunpack.c.l.b16 %v192
  %v953 = vunpack.c.h.b16 %v192
  %v954 = vunpack.c.l.b16 %v193
  %v955 = vunpack.c.h.b16 %v193
  %v956 = vunpack.c.l.b16 %v194
  %v957 = vunpack.c.h.b16 %v194
  %v958 = vunpack.c.l.b16 %v195
  %v959 = vunpack.c.h.b16 %v195
  %v960 = vunpack.c.l.b16 %v196
  %v961 = vunpack.c.h.b16 %v196
  %v962 = vunpack.c.l.b16 %v197
  %v963 = vunpack.c.h.b16 %v197
  %v964 = vunpack.c.l.b16 %v198
  %v965 = vunpack.c.h.b16 %v198
  %v966 = vunpack.c.l.b16 %v199
  %v967 = vunpack.c.h.b16 %v199
  %v968 = vunpack.c.l.b16 %v200
  %v969 = vunpack.c.h.b16 %v200
  %v970 = vunpack.c.l.b16 %v201
  %v971 = vunpack.c.h.b16 %v201
  %v972 = vunpack.c.l.b16 %v202
  %v973 = vunpack.c.h.b16 %v202
  %v974 = vunpack.c.l.b16 %v203
  %v975 = vunpack.c.h.b16 %v203
  %v976 = vunpack.c.l.b16 %v204
  %v977 = vunpack.c.h.b16 %v204
  %v978 = vunpack.c.l.b16 %v205
  %v979 = vunpack.c.h.b16 %v205
  %v980 = vunpack.c.l.b16 %v206
  %v981 = vunpack.c.h.b16 %v206
  %v982 = vunpack.c.l.b16 %v207
  %v983 = vunpack.c.h.b16 %v207
  %v984 = vunpack.c.l.b16 %v208
  %v985 = vunpack.c.h.b16 %v208
  %v986 = vunpack.c.l.b16 %v209
  %v987 = vunpack.c.h.b16 %v209
  %v988 = vunpack.c.l.b16 %v210
  %v989 = vunpack.c.h.b16 %v210
  %v990 = vunpack.c.l.b16 %v211
  %v991 = vunpack.c.h.b16 %v211
  %v992 = vunpack.c.l.b16 %v212
  %v993 = vunpack.c.h.b16 %v212
  %v994 = vunpack.c.l.b16 %v213
  %v995 = vunpack.c.h.b16 %v213
  %v996 = vunpack.c.l.b16 %v214
  %v997 = vunpack.c.h.b16 %v214
  %v998 = vunpack.c.l.b16 %v215
  %v999 = vunpack.c.h.b16 %v215
  %v1000 = vunpack.c.l.b16 %v216
  %v1001 = vunpack.c.h.b16 %v216
  %v1002 = vunpack.c.l.b16 %v217
  %v1003 = vunpack.c.h.b16 %v217
  %v1004 = vunpack.c.l.b16 %v218
  %v1005 = vunpack.c.h.b16 %v218
  %v1006 = vunpack.c.l.b16 %v219
  %v1007 = vunpack.c.h.b16 %v219
  %v1008 = vunpack.c.l.b16 %v220
  %v1009 = vunpack.c.h.b16 %v220
  %v1010 = vunpack.c.l.b16 %v221
  %v1011 = vunpack.c.h.b16 %v221
  %v1012 = vunpack.c.l.b16 %v222
  %v1013 = vunpack.c.h.b16 %v222
  %v1014 = vunpack.c.l.b16 %v223
  %v1015 = vunpack.c.h.b16 %v223
  %v1016 = vunpack.c.l.b16 %v224
  %v1017 = vunpack.c.h.b16 %v224
  %v1018 = vunpack.c.l.b16 %v225
  %v1019 = vunpack.c.h.b16 %v225
  %v1020 = vunpack.c.l.b16 %v226
  %v1021 = vunpack.c.h.b16 %v226
  %v1022 = vunpack.c.l.b16 %v227
  %v1023 = vunpack.c.h.b16 %v227
  %v1024 = vunpack.c.l.b16 %v228
  %v1025 = vunpack.c.h.b16 %v228
  %v1026 = vunpack.c.l.b16 %v229
  %v1027 = vunpack.c.h.b16 %v229
  %v1028 = vunpack.c.l.b16 %v230
  %v1029 = vunpack.c.h.b16 %v230
  %v1030 = vunpack.c.l.b16 %v231
  %v1031 = vunpack.c.h.b16 %v231
  %v1032 = vunpack.c.l.b16 %v232
  %v1033 = vunpack.c.h.b16 %v232
  %v1034 = vunpack.c.l.b16 %v233
  %v1035 = vunpack.c.h.b16 %v233
  %v1036 = vunpack.c.l.b16 %v234
  %v1037 = vunpack.c.h.b16 %v234
  %v1038 = vunpack.c.l.b16 %v235
  %v1039 = vunpack.c.h.b16 %v235
  %v1040 = vunpack.c.l.b16 %v236
  %v1041 = vunpack.c.h.b16 %v236
  %v1042 = vunpack.c.l.b16 %v237
  %v1043 = vunpack.c.h.b16 %v237
  %v1044 = vpack.c.b16 %v758, %v756
  %v1045 = vpack.c.b16 %v759, %v757
  %v1046 = vpack.c.b16 %v762, %v760
  %v1047 = vpack.c.b16 %v763, %v761
  %v1048 = vpack.c.b16 %v766, %v764
  %v1049 = vpack.c.b16 %v767, %v765
  %v1050 = vpack.c.b16 %v770, %v768
  %v1051 = vpack.c.b16 %v771, %v769
  %v1052 = vpack.c.b16 %v774, %v772
  %v1053 = vpack.c.b16 %v775, %v773
  %v1054 = vpack.c.b16 %v778, %v776
  %v1055 = vpack.c.b16 %v779, %v777
  %v1056 = vpack.c.b16 %v782, %v780
  %v1057 = vpack.c.b16 %v783, %v781
  %v1058 = vpack.c.b16 %v786, %v784
  %v1059 = vpack.c.b16 %v787, %v785
  %v1060 = vpack.c.b16 %v790, %v788
  %v1061 = vpack.c.b16 %v791, %v789
  %v1062 = vpack.c.b16 %v794, %v792
  %v1063 = vpack.c.b16 %v795, %v793
  %v1064 = vpack.c.b16 %v798, %v796
  %v1065 = vpack.c.b16 %v799, %v797
  %v1066 = vpack.c.b16 %v802, %v800
  %v1067 = vpack.c.b16 %v803, %v801
  %v1068 = vpack.c.b16 %v806, %v804
  %v1069 = vpack.c.b16 %v807, %v805
  %v1070 = vpack.c.b16 %v810, %v808
  %v1071 = vpack.c.b16 %v811, %v809
  %v1072 = vpack.c.b16 %v814, %v812
  %v1073 = vpack.c.b16 %v815, %v813
  %v1074 = vpack.c.b16 %v818, %v816
  %v1075 = vpack.c.b16 %v819, %v817
  %v1076 = vpack.c.b16 %v822, %v820
  %v1077 = vpack.c.b16 %v823, %v821
  %v1078 = vpack.c.b16 %v826, %v824
  %v1079 = vpack.c.b16 %v827, %v825
  %v1080 = vpack.c.b16 %v830, %v828
  %v1081 = vpack.c.b16 %v831, %v829
  %v1082 = vpack.c.b16 %v834, %v832
  %v1083 = vpack.c.b16 %v835, %v833
  %v1084 = vpack.c.b16 %v838, %v836
  %v1085 = vpack.c.b16 %v839, %v837
  %v1086 = vpack.c.b16 %v842, %v840
  %v1087 = vpack.c.b16 %v843, %v841
  %v1088 = vpack.c.b16 %v846, %v844
  %v1089 = vpack.c.b16 %v847, %v845
  %v1090 = vpack.c.b16 %v850, %v848
  %v1091 = vpack.c.b16 %v851, %v849
  %v1092 = vpack.c.b16 %v854, %v852
  %v1093 = vpack.c.b16 %v855, %v853
  %v1094 = vpack.c.b16 %v858, %v856
  %v1095 = vpack.c.b16 %v859, %v857
  %v1096 = vpack.c.b16 %v862, %v860
  %v1097 = vpack.c.b16 %v863, %v861
  %v1098 = vpack.c.b16 %v866, %v864
  %v1099 = vpack.c.b16 %v867, %v865
  %v1100 = vpack.c.b16 %v870, %v868
  %v1101 = vpack.c.b16 %v871, %v869
  %v1102 = vpack.c.b16 %v874, %v872
  %v1103 = vpack.c.b16 %v875, %v873
  %v1104 = vpack.c.b16 %v878, %v876
  %v1105 = vpack.c.b16 %v879, %v877
  %v1106 = vpack.c.b16 %v882, %v880
  %v1107 = vpack.c.b16 %v883, %v881
  %v1108 = vpack.c.b16 %v886, %v884
  %v1109 = vpack.c.b16 %v887, %v885
  %v1110 = vpack.c.b16 %v890, %v888
  %v1111 = vpack.c.b16 %v891, %v889
  %v1112 = vpack.c.b16 %v894, %v892
  %v1113 = vpack.c.b16 %v895, %v893
  %v1114 = vpack.c.b16 %v898, %v896
  %v1115 = vpack.c.b16 %v899, %v897
  %v1116 = vpack.c.b16 %v902, %v900
  %v1117 = vpack.c.b16 %v903, %v901
  %v1118 = vpack.c.b16 %v906, %v904
  %v1119 = vpack.c.b16 %v907, %v905
  %v1120 = vpack.c.b16 %v910, %v908
  %v1121 = vpack.c.b16 %v911, %v909
  %v1122 = vpack.c.b16 %v914, %v912
  %v1123 = vpack.c.b16 %v915, %v913
  %v1124 = vpack.c.b16 %v918, %v916
  %v1125 = vpack.c.b16 %v919, %v917
  %v1126 = vpack.c.b16 %v922, %v920
  %v1127 = vpack.c.b16 %v923, %v921
  %v1128 = vpack.c.b16 %v926, %v924
  %v1129 = vpack.c.b16 %v927, %v925
  %v1130 = vpack.c.b16 %v930, %v928
  %v1131 = vpack.c.b16 %v931, %v929
  %v1132 = vpack.c.b16 %v934, %v932
  %v1133 = vpack.c.b16 %v935, %v933
  %v1134 = vpack.c.b16 %v938, %v936
  %v1135 = vpack.c.b16 %v939, %v937
  %v1136 = vpack.c.b16 %v942, %v940
  %v1137 = vpack.c.b16 %v943, %v941
  %v1138 = vpack.c.b16 %v946, %v944
  %v1139 = vpack.c.b16 %v947, %v945
  %v1140 = vpack.c.b16 %v950, %v948
  %v1141 = vpack.c.b16 %v951, %v949
  %v1142 = vpack.c.b16 %v954, %v952
  %v1143 = vpack.c.b16 %v955, %v953
  %v1144 = vpack.c.b16 %v958, %v956
  %v1145 = vpack.c.b16 %v959, %v957
  %v1146 = vpack.c.b16 %v962, %v960
  %v1147 = vpack.c.b16 %v963, %v961
  %v1148 = vpack.c.b16 %v966, %v964
  %v1149 = vpack.c.b16 %v967, %v965
  %v1150 = vpack.c.b16 %v970, %v968
  %v1151 = vpack.c.b16 %v971, %v969
  %v1152 = vpack.c.b16 %v974, %v972
  %v1153 = vpack.c.b16 %v975, %v973
  %v1154 = vpack.c.b16 %v978, %v976
  %v1155 = vpack.c.b16 %v979, %v977
  %v1156 = vpack.c.b16 %v982, %v980
  %v1157 = vpack.c.b16 %v983, %v981
  %v1158 = vpack.c.b16 %v986, %v984
  %v1159 = vpack.c.b16 %v987, %v985
  %v1160 = vpack.c.b16 %v990, %v988
  %v1161 = vpack.c.b16 %v991, %v989
  %v1162 = vpack.c.b16 %v994, %v992
  %v1163 = vpack.c.b16 %v995, %v993
  %v1164 = vpack.c.b16 %v998, %v996
  %v1165 = vpack.c.b16 %v999, %v997
  %v1166 = vpack.c.b16 %v1002, %v1000
  %v1167 = vpack.c.b16 %v1003, %v1001
  %v1168 = vpack.c.b16 %v1006, %v1004
  %v1169 = vpack.c.b16 %v1007, %v1005
  %v1170 = vpack.c.b16 %v1010, %v1008
  %v1171 = vpack.c.b16 %v1011, %v1009
  %v1172 = vpack.c.b16 %v1014, %v1012
  %v1173 = vpack.c.b16 %v1015, %v1013
  %v1174 = vpack.c.b16 %v1018, %v1016
  %v1175 = vpack.c.b16 %v1019, %v1017
  %v1176 = vpack.c.b16 %v1022, %v1020
  %v1177 = vpack.c.b16 %v1023, %v1021
  %v1178 = vpack.c.b16 %v1026, %v1024
  %v1179 = vpack.c.b16 %v1027, %v1025
  %v1180 = vpack.c.b16 %v1030, %v1028
  %v1181 = vpack.c.b16 %v1031, %v1029
  %v1182 = vpack.c.b16 %v1034, %v1032
  %v1183 = vpack.c.b16 %v1035, %v1033
  %v1184 = vpack.c.b16 %v1038, %v1036
  %v1185 = vpack.c.b16 %v1039, %v1037
  %v1186 = vpack.c.b16 %v1042, %v1040
  %v1187 = vpack.c.b16 %v1043, %v1041
  %1332 = vmatpush.bf16.msra.mxu0 %v1058
  %1333 = vmatpush.bf16.msra.mxu0 %v1056
  %1334 = vmatpush.bf16.msra.mxu0 %v1054
  %1335 = vmatpush.bf16.msra.mxu0 %v1052
  %1336 = vmatpush.bf16.msra.mxu0 %v1050
  %1337 = vmatpush.bf16.msra.mxu0 %v1048
  %1338 = vmatpush.bf16.msra.mxu0 %v1046
  %1339 = vmatpush.bf16.msra.mxu0 %v1044
  %1340 = vmatmul.bf16.gmra.mxu0 %v468
  %v1341 = vpop.f32.mrf.mxu0
  %v1342 = vadd.f32 %v240, %v1341
  %v1343 = vpop.f32.mrf.mxu0
  %v1344 = vadd.f32 %v240, %v1343
  %1345 = vmatmul.bf16.gmra.mxu0 %v477
  %v1346 = vpop.f32.mrf.mxu0
  %v1347 = vadd.f32 %v240, %v1346
  %v1348 = vpop.f32.mrf.mxu0
  %v1349 = vadd.f32 %v240, %v1348
  %1350 = vmatmul.bf16.gmra.mxu0 %v486
  %v1351 = vpop.f32.mrf.mxu0
  %v1352 = vadd.f32 %v240, %v1351
  %v1353 = vpop.f32.mrf.mxu0
  %v1354 = vadd.f32 %v240, %v1353
  %1355 = vmatmul.bf16.gmra.mxu0 %v495
  %v1356 = vpop.f32.mrf.mxu0
  %v1357 = vadd.f32 %v240, %v1356
  %v1358 = vpop.f32.mrf.mxu0
  %v1359 = vadd.f32 %v240, %v1358
  %1360 = vmatmul.bf16.gmra.mxu0 %v504
  %v1361 = vpop.f32.mrf.mxu0
  %v1362 = vadd.f32 %v240, %v1361
  %v1363 = vpop.f32.mrf.mxu0
  %v1364 = vadd.f32 %v240, %v1363
  %1365 = vmatmul.bf16.gmra.mxu0 %v513
  %v1366 = vpop.f32.mrf.mxu0
  %v1367 = vadd.f32 %v240, %v1366
  %v1368 = vpop.f32.mrf.mxu0
  %v1369 = vadd.f32 %v240, %v1368
  %1370 = vmatmul.bf16.gmra.mxu0 %v522
  %v1371 = vpop.f32.mrf.mxu0
  %v1372 = vadd.f32 %v240, %v1371
  %v1373 = vpop.f32.mrf.mxu0
  %v1374 = vadd.f32 %v240, %v1373
  %1375 = vmatmul.bf16.gmra.mxu0 %v531
  %v1376 = vpop.f32.mrf.mxu0
  %v1377 = vadd.f32 %v240, %v1376
  %v1378 = vpop.f32.mrf.mxu0
  %v1379 = vadd.f32 %v240, %v1378
  %1380 = vdwg.mxu0
  %1381 = vmatpush.bf16.msra.mxu0 %v1074
  %1382 = vmatpush.bf16.msra.mxu0 %v1072
  %1383 = vmatpush.bf16.msra.mxu0 %v1070
  %1384 = vmatpush.bf16.msra.mxu0 %v1068
  %1385 = vmatpush.bf16.msra.mxu0 %v1066
  %1386 = vmatpush.bf16.msra.mxu0 %v1064
  %1387 = vmatpush.bf16.msra.mxu0 %v1062
  %1388 = vmatpush.bf16.msra.mxu0 %v1060
  %1389 = vmatmul.bf16.gmra.mxu0 %v469
  %v1390 = vpop.f32.mrf.mxu0
  %v1391 = vadd.f32 %v1342, %v1390
  %v1392 = vpop.f32.mrf.mxu0
  %v1393 = vadd.f32 %v1344, %v1392
  %1394 = vmatmul.bf16.gmra.mxu0 %v478
  %v1395 = vpop.f32.mrf.mxu0
  %v1396 = vadd.f32 %v1347, %v1395
  %v1397 = vpop.f32.mrf.mxu0
  %v1398 = vadd.f32 %v1349, %v1397
  %1399 = vmatmul.bf16.gmra.mxu0 %v487
  %v1400 = vpop.f32.mrf.mxu0
  %v1401 = vadd.f32 %v1352, %v1400
  %v1402 = vpop.f32.mrf.mxu0
  %v1403 = vadd.f32 %v1354, %v1402
  %1404 = vmatmul.bf16.gmra.mxu0 %v496
  %v1405 = vpop.f32.mrf.mxu0
  %v1406 = vadd.f32 %v1357, %v1405
  %v1407 = vpop.f32.mrf.mxu0
  %v1408 = vadd.f32 %v1359, %v1407
  %1409 = vmatmul.bf16.gmra.mxu0 %v505
  %v1410 = vpop.f32.mrf.mxu0
  %v1411 = vadd.f32 %v1362, %v1410
  %v1412 = vpop.f32.mrf.mxu0
  %v1413 = vadd.f32 %v1364, %v1412
  %1414 = vmatmul.bf16.gmra.mxu0 %v514
  %v1415 = vpop.f32.mrf.mxu0
  %v1416 = vadd.f32 %v1367, %v1415
  %v1417 = vpop.f32.mrf.mxu0
  %v1418 = vadd.f32 %v1369, %v1417
  %1419 = vmatmul.bf16.gmra.mxu0 %v523
  %v1420 = vpop.f32.mrf.mxu0
  %v1421 = vadd.f32 %v1372, %v1420
  %v1422 = vpop.f32.mrf.mxu0
  %v1423 = vadd.f32 %v1374, %v1422
  %1424 = vmatmul.bf16.gmra.mxu0 %v532
  %v1425 = vpop.f32.mrf.mxu0
  %v1426 = vadd.f32 %v1377, %v1425
  %v1427 = vpop.f32.mrf.mxu0
  %v1428 = vadd.f32 %v1379, %v1427
  %1429 = vdwg.mxu0
  %1430 = vmatpush.bf16.msra.mxu0 %v1090
  %1431 = vmatpush.bf16.msra.mxu0 %v1088
  %1432 = vmatpush.bf16.msra.mxu0 %v1086
  %1433 = vmatpush.bf16.msra.mxu0 %v1084
  %1434 = vmatpush.bf16.msra.mxu0 %v1082
  %1435 = vmatpush.bf16.msra.mxu0 %v1080
  %1436 = vmatpush.bf16.msra.mxu0 %v1078
  %1437 = vmatpush.bf16.msra.mxu0 %v1076
  %1438 = vmatmul.bf16.gmra.mxu0 %v470
  %v1439 = vpop.f32.mrf.mxu0
  %v1440 = vadd.f32 %v1391, %v1439
  %v1441 = vpop.f32.mrf.mxu0
  %v1442 = vadd.f32 %v1393, %v1441
  %1443 = vmatmul.bf16.gmra.mxu0 %v479
  %v1444 = vpop.f32.mrf.mxu0
  %v1445 = vadd.f32 %v1396, %v1444
  %v1446 = vpop.f32.mrf.mxu0
  %v1447 = vadd.f32 %v1398, %v1446
  %1448 = vmatmul.bf16.gmra.mxu0 %v488
  %v1449 = vpop.f32.mrf.mxu0
  %v1450 = vadd.f32 %v1401, %v1449
  %v1451 = vpop.f32.mrf.mxu0
  %v1452 = vadd.f32 %v1403, %v1451
  %1453 = vmatmul.bf16.gmra.mxu0 %v497
  %v1454 = vpop.f32.mrf.mxu0
  %v1455 = vadd.f32 %v1406, %v1454
  %v1456 = vpop.f32.mrf.mxu0
  %v1457 = vadd.f32 %v1408, %v1456
  %1458 = vmatmul.bf16.gmra.mxu0 %v506
  %v1459 = vpop.f32.mrf.mxu0
  %v1460 = vadd.f32 %v1411, %v1459
  %v1461 = vpop.f32.mrf.mxu0
  %v1462 = vadd.f32 %v1413, %v1461
  %1463 = vmatmul.bf16.gmra.mxu0 %v515
  %v1464 = vpop.f32.mrf.mxu0
  %v1465 = vadd.f32 %v1416, %v1464
  %v1466 = vpop.f32.mrf.mxu0
  %v1467 = vadd.f32 %v1418, %v1466
  %1468 = vmatmul.bf16.gmra.mxu0 %v524
  %v1469 = vpop.f32.mrf.mxu0
  %v1470 = vadd.f32 %v1421, %v1469
  %v1471 = vpop.f32.mrf.mxu0
  %v1472 = vadd.f32 %v1423, %v1471
  %1473 = vmatmul.bf16.gmra.mxu0 %v533
  %v1474 = vpop.f32.mrf.mxu0
  %v1475 = vadd.f32 %v1426, %v1474
  %v1476 = vpop.f32.mrf.mxu0
  %v1477 = vadd.f32 %v1428, %v1476
  %1478 = vdwg.mxu0
  %1479 = vmatpush.bf16.msra.mxu0 %v1106
  %1480 = vmatpush.bf16.msra.mxu0 %v1104
  %1481 = vmatpush.bf16.msra.mxu0 %v1102
  %1482 = vmatpush.bf16.msra.mxu0 %v1100
  %1483 = vmatpush.bf16.msra.mxu0 %v1098
  %1484 = vmatpush.bf16.msra.mxu0 %v1096
  %1485 = vmatpush.bf16.msra.mxu0 %v1094
  %1486 = vmatpush.bf16.msra.mxu0 %v1092
  %1487 = vmatmul.bf16.gmra.mxu0 %v471
  %v1488 = vpop.f32.mrf.mxu0
  %v1489 = vadd.f32 %v1440, %v1488
  %v1490 = vpop.f32.mrf.mxu0
  %v1491 = vadd.f32 %v1442, %v1490
  %1492 = vmatmul.bf16.gmra.mxu0 %v480
  %v1493 = vpop.f32.mrf.mxu0
  %v1494 = vadd.f32 %v1445, %v1493
  %v1495 = vpop.f32.mrf.mxu0
  %v1496 = vadd.f32 %v1447, %v1495
  %1497 = vmatmul.bf16.gmra.mxu0 %v489
  %v1498 = vpop.f32.mrf.mxu0
  %v1499 = vadd.f32 %v1450, %v1498
  %v1500 = vpop.f32.mrf.mxu0
  %v1501 = vadd.f32 %v1452, %v1500
  %1502 = vmatmul.bf16.gmra.mxu0 %v498
  %v1503 = vpop.f32.mrf.mxu0
  %v1504 = vadd.f32 %v1455, %v1503
  %v1505 = vpop.f32.mrf.mxu0
  %v1506 = vadd.f32 %v1457, %v1505
  %1507 = vmatmul.bf16.gmra.mxu0 %v507
  %v1508 = vpop.f32.mrf.mxu0
  %v1509 = vadd.f32 %v1460, %v1508
  %v1510 = vpop.f32.mrf.mxu0
  %v1511 = vadd.f32 %v1462, %v1510
  %1512 = vmatmul.bf16.gmra.mxu0 %v516
  %v1513 = vpop.f32.mrf.mxu0
  %v1514 = vadd.f32 %v1465, %v1513
  %v1515 = vpop.f32.mrf.mxu0
  %v1516 = vadd.f32 %v1467, %v1515
  %1517 = vmatmul.bf16.gmra.mxu0 %v525
  %v1518 = vpop.f32.mrf.mxu0
  %v1519 = vadd.f32 %v1470, %v1518
  %v1520 = vpop.f32.mrf.mxu0
  %v1521 = vadd.f32 %v1472, %v1520
  %1522 = vmatmul.bf16.gmra.mxu0 %v534
  %v1523 = vpop.f32.mrf.mxu0
  %v1524 = vadd.f32 %v1475, %v1523
  %v1525 = vpop.f32.mrf.mxu0
  %v1526 = vadd.f32 %v1477, %v1525
  %1527 = vdwg.mxu0
  %1528 = vmatpush.bf16.msra.mxu0 %v1122
  %1529 = vmatpush.bf16.msra.mxu0 %v1120
  %1530 = vmatpush.bf16.msra.mxu0 %v1118
  %1531 = vmatpush.bf16.msra.mxu0 %v1116
  %1532 = vmatpush.bf16.msra.mxu0 %v1114
  %1533 = vmatpush.bf16.msra.mxu0 %v1112
  %1534 = vmatpush.bf16.msra.mxu0 %v1110
  %1535 = vmatpush.bf16.msra.mxu0 %v1108
  %1536 = vmatmul.bf16.gmra.mxu0 %v472
  %v1537 = vpop.f32.mrf.mxu0
  %v1538 = vadd.f32 %v1489, %v1537
  %v1539 = vpop.f32.mrf.mxu0
  %v1540 = vadd.f32 %v1491, %v1539
  %1541 = vmatmul.bf16.gmra.mxu0 %v481
  %v1542 = vpop.f32.mrf.mxu0
  %v1543 = vadd.f32 %v1494, %v1542
  %v1544 = vpop.f32.mrf.mxu0
  %v1545 = vadd.f32 %v1496, %v1544
  %1546 = vmatmul.bf16.gmra.mxu0 %v490
  %v1547 = vpop.f32.mrf.mxu0
  %v1548 = vadd.f32 %v1499, %v1547
  %v1549 = vpop.f32.mrf.mxu0
  %v1550 = vadd.f32 %v1501, %v1549
  %1551 = vmatmul.bf16.gmra.mxu0 %v499
  %v1552 = vpop.f32.mrf.mxu0
  %v1553 = vadd.f32 %v1504, %v1552
  %v1554 = vpop.f32.mrf.mxu0
  %v1555 = vadd.f32 %v1506, %v1554
  %1556 = vmatmul.bf16.gmra.mxu0 %v508
  %v1557 = vpop.f32.mrf.mxu0
  %v1558 = vadd.f32 %v1509, %v1557
  %v1559 = vpop.f32.mrf.mxu0
  %v1560 = vadd.f32 %v1511, %v1559
  %1561 = vmatmul.bf16.gmra.mxu0 %v517
  %v1562 = vpop.f32.mrf.mxu0
  %v1563 = vadd.f32 %v1514, %v1562
  %v1564 = vpop.f32.mrf.mxu0
  %v1565 = vadd.f32 %v1516, %v1564
  %1566 = vmatmul.bf16.gmra.mxu0 %v526
  %v1567 = vpop.f32.mrf.mxu0
  %v1568 = vadd.f32 %v1519, %v1567
  %v1569 = vpop.f32.mrf.mxu0
  %v1570 = vadd.f32 %v1521, %v1569
  %1571 = vmatmul.bf16.gmra.mxu0 %v535
  %v1572 = vpop.f32.mrf.mxu0
  %v1573 = vadd.f32 %v1524, %v1572
  %v1574 = vpop.f32.mrf.mxu0
  %v1575 = vadd.f32 %v1526, %v1574
  %1576 = vdwg.mxu0
  %1577 = vmatpush.bf16.msra.mxu0 %v1138
  %1578 = vmatpush.bf16.msra.mxu0 %v1136
  %1579 = vmatpush.bf16.msra.mxu0 %v1134
  %1580 = vmatpush.bf16.msra.mxu0 %v1132
  %1581 = vmatpush.bf16.msra.mxu0 %v1130
  %1582 = vmatpush.bf16.msra.mxu0 %v1128
  %1583 = vmatpush.bf16.msra.mxu0 %v1126
  %1584 = vmatpush.bf16.msra.mxu0 %v1124
  %1585 = vmatmul.bf16.gmra.mxu0 %v473
  %v1586 = vpop.f32.mrf.mxu0
  %v1587 = vadd.f32 %v1538, %v1586
  %v1588 = vpop.f32.mrf.mxu0
  %v1589 = vadd.f32 %v1540, %v1588
  %1590 = vmatmul.bf16.gmra.mxu0 %v482
  %v1591 = vpop.f32.mrf.mxu0
  %v1592 = vadd.f32 %v1543, %v1591
  %v1593 = vpop.f32.mrf.mxu0
  %v1594 = vadd.f32 %v1545, %v1593
  %1595 = vmatmul.bf16.gmra.mxu0 %v491
  %v1596 = vpop.f32.mrf.mxu0
  %v1597 = vadd.f32 %v1548, %v1596
  %v1598 = vpop.f32.mrf.mxu0
  %v1599 = vadd.f32 %v1550, %v1598
  %1600 = vmatmul.bf16.gmra.mxu0 %v500
  %v1601 = vpop.f32.mrf.mxu0
  %v1602 = vadd.f32 %v1553, %v1601
  %v1603 = vpop.f32.mrf.mxu0
  %v1604 = vadd.f32 %v1555, %v1603
  %1605 = vmatmul.bf16.gmra.mxu0 %v509
  %v1606 = vpop.f32.mrf.mxu0
  %v1607 = vadd.f32 %v1558, %v1606
  %v1608 = vpop.f32.mrf.mxu0
  %v1609 = vadd.f32 %v1560, %v1608
  %1610 = vmatmul.bf16.gmra.mxu0 %v518
  %v1611 = vpop.f32.mrf.mxu0
  %v1612 = vadd.f32 %v1563, %v1611
  %v1613 = vpop.f32.mrf.mxu0
  %v1614 = vadd.f32 %v1565, %v1613
  %1615 = vmatmul.bf16.gmra.mxu0 %v527
  %v1616 = vpop.f32.mrf.mxu0
  %v1617 = vadd.f32 %v1568, %v1616
  %v1618 = vpop.f32.mrf.mxu0
  %v1619 = vadd.f32 %v1570, %v1618
  %1620 = vmatmul.bf16.gmra.mxu0 %v536
  %v1621 = vpop.f32.mrf.mxu0
  %v1622 = vadd.f32 %v1573, %v1621
  %v1623 = vpop.f32.mrf.mxu0
  %v1624 = vadd.f32 %v1575, %v1623
  %1625 = vdwg.mxu0
  %1626 = vmatpush.bf16.msra.mxu0 %v1154
  %1627 = vmatpush.bf16.msra.mxu0 %v1152
  %1628 = vmatpush.bf16.msra.mxu0 %v1150
  %1629 = vmatpush.bf16.msra.mxu0 %v1148
  %1630 = vmatpush.bf16.msra.mxu0 %v1146
  %1631 = vmatpush.bf16.msra.mxu0 %v1144
  %1632 = vmatpush.bf16.msra.mxu0 %v1142
  %1633 = vmatpush.bf16.msra.mxu0 %v1140
  %1634 = vmatmul.bf16.gmra.mxu0 %v474
  %v1635 = vpop.f32.mrf.mxu0
  %v1636 = vadd.f32 %v1587, %v1635
  %v1637 = vpop.f32.mrf.mxu0
  %v1638 = vadd.f32 %v1589, %v1637
  %1639 = vmatmul.bf16.gmra.mxu0 %v483
  %v1640 = vpop.f32.mrf.mxu0
  %v1641 = vadd.f32 %v1592, %v1640
  %v1642 = vpop.f32.mrf.mxu0
  %v1643 = vadd.f32 %v1594, %v1642
  %1644 = vmatmul.bf16.gmra.mxu0 %v492
  %v1645 = vpop.f32.mrf.mxu0
  %v1646 = vadd.f32 %v1597, %v1645
  %v1647 = vpop.f32.mrf.mxu0
  %v1648 = vadd.f32 %v1599, %v1647
  %1649 = vmatmul.bf16.gmra.mxu0 %v501
  %v1650 = vpop.f32.mrf.mxu0
  %v1651 = vadd.f32 %v1602, %v1650
  %v1652 = vpop.f32.mrf.mxu0
  %v1653 = vadd.f32 %v1604, %v1652
  %1654 = vmatmul.bf16.gmra.mxu0 %v510
  %v1655 = vpop.f32.mrf.mxu0
  %v1656 = vadd.f32 %v1607, %v1655
  %v1657 = vpop.f32.mrf.mxu0
  %v1658 = vadd.f32 %v1609, %v1657
  %1659 = vmatmul.bf16.gmra.mxu0 %v519
  %v1660 = vpop.f32.mrf.mxu0
  %v1661 = vadd.f32 %v1612, %v1660
  %v1662 = vpop.f32.mrf.mxu0
  %v1663 = vadd.f32 %v1614, %v1662
  %1664 = vmatmul.bf16.gmra.mxu0 %v528
  %v1665 = vpop.f32.mrf.mxu0
  %v1666 = vadd.f32 %v1617, %v1665
  %v1667 = vpop.f32.mrf.mxu0
  %v1668 = vadd.f32 %v1619, %v1667
  %1669 = vmatmul.bf16.gmra.mxu0 %v537
  %v1670 = vpop.f32.mrf.mxu0
  %v1671 = vadd.f32 %v1622, %v1670
  %v1672 = vpop.f32.mrf.mxu0
  %v1673 = vadd.f32 %v1624, %v1672
  %1674 = vdwg.mxu0
  %1675 = vmatpush.bf16.msra.mxu0 %v1170
  %1676 = vmatpush.bf16.msra.mxu0 %v1168
  %1677 = vmatpush.bf16.msra.mxu0 %v1166
  %1678 = vmatpush.bf16.msra.mxu0 %v1164
  %1679 = vmatpush.bf16.msra.mxu0 %v1162
  %1680 = vmatpush.bf16.msra.mxu0 %v1160
  %1681 = vmatpush.bf16.msra.mxu0 %v1158
  %1682 = vmatpush.bf16.msra.mxu0 %v1156
  %1683 = vmatmul.bf16.gmra.mxu0 %v475
  %v1684 = vpop.f32.mrf.mxu0
  %v1685 = vadd.f32 %v1636, %v1684
  %v1686 = vpop.f32.mrf.mxu0
  %v1687 = vadd.f32 %v1638, %v1686
  %1688 = vmatmul.bf16.gmra.mxu0 %v484
  %v1689 = vpop.f32.mrf.mxu0
  %v1690 = vadd.f32 %v1641, %v1689
  %v1691 = vpop.f32.mrf.mxu0
  %v1692 = vadd.f32 %v1643, %v1691
  %1693 = vmatmul.bf16.gmra.mxu0 %v493
  %v1694 = vpop.f32.mrf.mxu0
  %v1695 = vadd.f32 %v1646, %v1694
  %v1696 = vpop.f32.mrf.mxu0
  %v1697 = vadd.f32 %v1648, %v1696
  %1698 = vmatmul.bf16.gmra.mxu0 %v502
  %v1699 = vpop.f32.mrf.mxu0
  %v1700 = vadd.f32 %v1651, %v1699
  %v1701 = vpop.f32.mrf.mxu0
  %v1702 = vadd.f32 %v1653, %v1701
  %1703 = vmatmul.bf16.gmra.mxu0 %v511
  %v1704 = vpop.f32.mrf.mxu0
  %v1705 = vadd.f32 %v1656, %v1704
  %v1706 = vpop.f32.mrf.mxu0
  %v1707 = vadd.f32 %v1658, %v1706
  %1708 = vmatmul.bf16.gmra.mxu0 %v520
  %v1709 = vpop.f32.mrf.mxu0
  %v1710 = vadd.f32 %v1661, %v1709
  %v1711 = vpop.f32.mrf.mxu0
  %v1712 = vadd.f32 %v1663, %v1711
  %1713 = vmatmul.bf16.gmra.mxu0 %v529
  %v1714 = vpop.f32.mrf.mxu0
  %v1715 = vadd.f32 %v1666, %v1714
  %v1716 = vpop.f32.mrf.mxu0
  %v1717 = vadd.f32 %v1668, %v1716
  %1718 = vmatmul.bf16.gmra.mxu0 %v538
  %v1719 = vpop.f32.mrf.mxu0
  %v1720 = vadd.f32 %v1671, %v1719
  %v1721 = vpop.f32.mrf.mxu0
  %v1722 = vadd.f32 %v1673, %v1721
  %1723 = vdwg.mxu0
  %1724 = vmatpush.bf16.msra.mxu0 %v1186
  %1725 = vmatpush.bf16.msra.mxu0 %v1184
  %1726 = vmatpush.bf16.msra.mxu0 %v1182
  %1727 = vmatpush.bf16.msra.mxu0 %v1180
  %1728 = vmatpush.bf16.msra.mxu0 %v1178
  %1729 = vmatpush.bf16.msra.mxu0 %v1176
  %1730 = vmatpush.bf16.msra.mxu0 %v1174
  %1731 = vmatpush.bf16.msra.mxu0 %v1172
  %1732 = vmatmul.bf16.gmra.mxu0 %v476
  %v1733 = vpop.f32.mrf.mxu0
  %v1734 = vadd.f32 %v1685, %v1733
  %v1735 = vpop.f32.mrf.mxu0
  %v1736 = vadd.f32 %v1687, %v1735
  %1737 = vmatmul.bf16.gmra.mxu0 %v485
  %v1738 = vpop.f32.mrf.mxu0
  %v1739 = vadd.f32 %v1690, %v1738
  %v1740 = vpop.f32.mrf.mxu0
  %v1741 = vadd.f32 %v1692, %v1740
  %1742 = vmatmul.bf16.gmra.mxu0 %v494
  %v1743 = vpop.f32.mrf.mxu0
  %v1744 = vadd.f32 %v1695, %v1743
  %v1745 = vpop.f32.mrf.mxu0
  %v1746 = vadd.f32 %v1697, %v1745
  %1747 = vmatmul.bf16.gmra.mxu0 %v503
  %v1748 = vpop.f32.mrf.mxu0
  %v1749 = vadd.f32 %v1700, %v1748
  %v1750 = vpop.f32.mrf.mxu0
  %v1751 = vadd.f32 %v1702, %v1750
  %1752 = vmatmul.bf16.gmra.mxu0 %v512
  %v1753 = vpop.f32.mrf.mxu0
  %v1754 = vadd.f32 %v1705, %v1753
  %v1755 = vpop.f32.mrf.mxu0
  %v1756 = vadd.f32 %v1707, %v1755
  %1757 = vmatmul.bf16.gmra.mxu0 %v521
  %v1758 = vpop.f32.mrf.mxu0
  %v1759 = vadd.f32 %v1710, %v1758
  %v1760 = vpop.f32.mrf.mxu0
  %v1761 = vadd.f32 %v1712, %v1760
  %1762 = vmatmul.bf16.gmra.mxu0 %v530
  %v1763 = vpop.f32.mrf.mxu0
  %v1764 = vadd.f32 %v1715, %v1763
  %v1765 = vpop.f32.mrf.mxu0
  %v1766 = vadd.f32 %v1717, %v1765
  %1767 = vmatmul.bf16.gmra.mxu0 %v539
  %v1768 = vpop.f32.mrf.mxu0
  %v1769 = vadd.f32 %v1720, %v1768
  %v1770 = vpop.f32.mrf.mxu0
  %v1771 = vadd.f32 %v1722, %v1770
  %1772 = vdwg.mxu0
  %1773 = vmatpush.bf16.msra.mxu0 %v1059
  %1774 = vmatpush.bf16.msra.mxu0 %v1057
  %1775 = vmatpush.bf16.msra.mxu0 %v1055
  %1776 = vmatpush.bf16.msra.mxu0 %v1053
  %1777 = vmatpush.bf16.msra.mxu0 %v1051
  %1778 = vmatpush.bf16.msra.mxu0 %v1049
  %1779 = vmatpush.bf16.msra.mxu0 %v1047
  %1780 = vmatpush.bf16.msra.mxu0 %v1045
  %1781 = vmatmul.bf16.gmra.mxu0 %v468
  %v1782 = vpop.f32.mrf.mxu0
  %v1783 = vadd.f32 %v241, %v1782
  %v1784 = vpop.f32.mrf.mxu0
  %v1785 = vadd.f32 %v241, %v1784
  %1786 = vmatmul.bf16.gmra.mxu0 %v477
  %v1787 = vpop.f32.mrf.mxu0
  %v1788 = vadd.f32 %v241, %v1787
  %v1789 = vpop.f32.mrf.mxu0
  %v1790 = vadd.f32 %v241, %v1789
  %1791 = vmatmul.bf16.gmra.mxu0 %v486
  %v1792 = vpop.f32.mrf.mxu0
  %v1793 = vadd.f32 %v241, %v1792
  %v1794 = vpop.f32.mrf.mxu0
  %v1795 = vadd.f32 %v241, %v1794
  %1796 = vmatmul.bf16.gmra.mxu0 %v495
  %v1797 = vpop.f32.mrf.mxu0
  %v1798 = vadd.f32 %v241, %v1797
  %v1799 = vpop.f32.mrf.mxu0
  %v1800 = vadd.f32 %v241, %v1799
  %1801 = vmatmul.bf16.gmra.mxu0 %v504
  %v1802 = vpop.f32.mrf.mxu0
  %v1803 = vadd.f32 %v241, %v1802
  %v1804 = vpop.f32.mrf.mxu0
  %v1805 = vadd.f32 %v241, %v1804
  %1806 = vmatmul.bf16.gmra.mxu0 %v513
  %v1807 = vpop.f32.mrf.mxu0
  %v1808 = vadd.f32 %v241, %v1807
  %v1809 = vpop.f32.mrf.mxu0
  %v1810 = vadd.f32 %v241, %v1809
  %1811 = vmatmul.bf16.gmra.mxu0 %v522
  %v1812 = vpop.f32.mrf.mxu0
  %v1813 = vadd.f32 %v241, %v1812
  %v1814 = vpop.f32.mrf.mxu0
  %v1815 = vadd.f32 %v241, %v1814
  %1816 = vmatmul.bf16.gmra.mxu0 %v531
  %v1817 = vpop.f32.mrf.mxu0
  %v1818 = vadd.f32 %v241, %v1817
  %v1819 = vpop.f32.mrf.mxu0
  %v1820 = vadd.f32 %v241, %v1819
  %1821 = vdwg.mxu0
  %1822 = vmatpush.bf16.msra.mxu0 %v1075
  %1823 = vmatpush.bf16.msra.mxu0 %v1073
  %1824 = vmatpush.bf16.msra.mxu0 %v1071
  %1825 = vmatpush.bf16.msra.mxu0 %v1069
  %1826 = vmatpush.bf16.msra.mxu0 %v1067
  %1827 = vmatpush.bf16.msra.mxu0 %v1065
  %1828 = vmatpush.bf16.msra.mxu0 %v1063
  %1829 = vmatpush.bf16.msra.mxu0 %v1061
  %1830 = vmatmul.bf16.gmra.mxu0 %v469
  %v1831 = vpop.f32.mrf.mxu0
  %v1832 = vadd.f32 %v1783, %v1831
  %v1833 = vpop.f32.mrf.mxu0
  %v1834 = vadd.f32 %v1785, %v1833
  %1835 = vmatmul.bf16.gmra.mxu0 %v478
  %v1836 = vpop.f32.mrf.mxu0
  %v1837 = vadd.f32 %v1788, %v1836
  %v1838 = vpop.f32.mrf.mxu0
  %v1839 = vadd.f32 %v1790, %v1838
  %1840 = vmatmul.bf16.gmra.mxu0 %v487
  %v1841 = vpop.f32.mrf.mxu0
  %v1842 = vadd.f32 %v1793, %v1841
  %v1843 = vpop.f32.mrf.mxu0
  %v1844 = vadd.f32 %v1795, %v1843
  %1845 = vmatmul.bf16.gmra.mxu0 %v496
  %v1846 = vpop.f32.mrf.mxu0
  %v1847 = vadd.f32 %v1798, %v1846
  %v1848 = vpop.f32.mrf.mxu0
  %v1849 = vadd.f32 %v1800, %v1848
  %1850 = vmatmul.bf16.gmra.mxu0 %v505
  %v1851 = vpop.f32.mrf.mxu0
  %v1852 = vadd.f32 %v1803, %v1851
  %v1853 = vpop.f32.mrf.mxu0
  %v1854 = vadd.f32 %v1805, %v1853
  %1855 = vmatmul.bf16.gmra.mxu0 %v514
  %v1856 = vpop.f32.mrf.mxu0
  %v1857 = vadd.f32 %v1808, %v1856
  %v1858 = vpop.f32.mrf.mxu0
  %v1859 = vadd.f32 %v1810, %v1858
  %1860 = vmatmul.bf16.gmra.mxu0 %v523
  %v1861 = vpop.f32.mrf.mxu0
  %v1862 = vadd.f32 %v1813, %v1861
  %v1863 = vpop.f32.mrf.mxu0
  %v1864 = vadd.f32 %v1815, %v1863
  %1865 = vmatmul.bf16.gmra.mxu0 %v532
  %v1866 = vpop.f32.mrf.mxu0
  %v1867 = vadd.f32 %v1818, %v1866
  %v1868 = vpop.f32.mrf.mxu0
  %v1869 = vadd.f32 %v1820, %v1868
  %1870 = vdwg.mxu0
  %1871 = vmatpush.bf16.msra.mxu0 %v1091
  %1872 = vmatpush.bf16.msra.mxu0 %v1089
  %1873 = vmatpush.bf16.msra.mxu0 %v1087
  %1874 = vmatpush.bf16.msra.mxu0 %v1085
  %1875 = vmatpush.bf16.msra.mxu0 %v1083
  %1876 = vmatpush.bf16.msra.mxu0 %v1081
  %1877 = vmatpush.bf16.msra.mxu0 %v1079
  %1878 = vmatpush.bf16.msra.mxu0 %v1077
  %1879 = vmatmul.bf16.gmra.mxu0 %v470
  %v1880 = vpop.f32.mrf.mxu0
  %v1881 = vadd.f32 %v1832, %v1880
  %v1882 = vpop.f32.mrf.mxu0
  %v1883 = vadd.f32 %v1834, %v1882
  %1884 = vmatmul.bf16.gmra.mxu0 %v479
  %v1885 = vpop.f32.mrf.mxu0
  %v1886 = vadd.f32 %v1837, %v1885
  %v1887 = vpop.f32.mrf.mxu0
  %v1888 = vadd.f32 %v1839, %v1887
  %1889 = vmatmul.bf16.gmra.mxu0 %v488
  %v1890 = vpop.f32.mrf.mxu0
  %v1891 = vadd.f32 %v1842, %v1890
  %v1892 = vpop.f32.mrf.mxu0
  %v1893 = vadd.f32 %v1844, %v1892
  %1894 = vmatmul.bf16.gmra.mxu0 %v497
  %v1895 = vpop.f32.mrf.mxu0
  %v1896 = vadd.f32 %v1847, %v1895
  %v1897 = vpop.f32.mrf.mxu0
  %v1898 = vadd.f32 %v1849, %v1897
  %1899 = vmatmul.bf16.gmra.mxu0 %v506
  %v1900 = vpop.f32.mrf.mxu0
  %v1901 = vadd.f32 %v1852, %v1900
  %v1902 = vpop.f32.mrf.mxu0
  %v1903 = vadd.f32 %v1854, %v1902
  %1904 = vmatmul.bf16.gmra.mxu0 %v515
  %v1905 = vpop.f32.mrf.mxu0
  %v1906 = vadd.f32 %v1857, %v1905
  %v1907 = vpop.f32.mrf.mxu0
  %v1908 = vadd.f32 %v1859, %v1907
  %1909 = vmatmul.bf16.gmra.mxu0 %v524
  %v1910 = vpop.f32.mrf.mxu0
  %v1911 = vadd.f32 %v1862, %v1910
  %v1912 = vpop.f32.mrf.mxu0
  %v1913 = vadd.f32 %v1864, %v1912
  %1914 = vmatmul.bf16.gmra.mxu0 %v533
  %v1915 = vpop.f32.mrf.mxu0
  %v1916 = vadd.f32 %v1867, %v1915
  %v1917 = vpop.f32.mrf.mxu0
  %v1918 = vadd.f32 %v1869, %v1917
  %1919 = vdwg.mxu0
  %1920 = vmatpush.bf16.msra.mxu0 %v1107
  %1921 = vmatpush.bf16.msra.mxu0 %v1105
  %1922 = vmatpush.bf16.msra.mxu0 %v1103
  %1923 = vmatpush.bf16.msra.mxu0 %v1101
  %1924 = vmatpush.bf16.msra.mxu0 %v1099
  %1925 = vmatpush.bf16.msra.mxu0 %v1097
  %1926 = vmatpush.bf16.msra.mxu0 %v1095
  %1927 = vmatpush.bf16.msra.mxu0 %v1093
  %1928 = vmatmul.bf16.gmra.mxu0 %v471
  %v1929 = vpop.f32.mrf.mxu0
  %v1930 = vadd.f32 %v1881, %v1929
  %v1931 = vpop.f32.mrf.mxu0
  %v1932 = vadd.f32 %v1883, %v1931
  %1933 = vmatmul.bf16.gmra.mxu0 %v480
  %v1934 = vpop.f32.mrf.mxu0
  %v1935 = vadd.f32 %v1886, %v1934
  %v1936 = vpop.f32.mrf.mxu0
  %v1937 = vadd.f32 %v1888, %v1936
  %1938 = vmatmul.bf16.gmra.mxu0 %v489
  %v1939 = vpop.f32.mrf.mxu0
  %v1940 = vadd.f32 %v1891, %v1939
  %v1941 = vpop.f32.mrf.mxu0
  %v1942 = vadd.f32 %v1893, %v1941
  %1943 = vmatmul.bf16.gmra.mxu0 %v498
  %v1944 = vpop.f32.mrf.mxu0
  %v1945 = vadd.f32 %v1896, %v1944
  %v1946 = vpop.f32.mrf.mxu0
  %v1947 = vadd.f32 %v1898, %v1946
  %1948 = vmatmul.bf16.gmra.mxu0 %v507
  %v1949 = vpop.f32.mrf.mxu0
  %v1950 = vadd.f32 %v1901, %v1949
  %v1951 = vpop.f32.mrf.mxu0
  %v1952 = vadd.f32 %v1903, %v1951
  %1953 = vmatmul.bf16.gmra.mxu0 %v516
  %v1954 = vpop.f32.mrf.mxu0
  %v1955 = vadd.f32 %v1906, %v1954
  %v1956 = vpop.f32.mrf.mxu0
  %v1957 = vadd.f32 %v1908, %v1956
  %1958 = vmatmul.bf16.gmra.mxu0 %v525
  %v1959 = vpop.f32.mrf.mxu0
  %v1960 = vadd.f32 %v1911, %v1959
  %v1961 = vpop.f32.mrf.mxu0
  %v1962 = vadd.f32 %v1913, %v1961
  %1963 = vmatmul.bf16.gmra.mxu0 %v534
  %v1964 = vpop.f32.mrf.mxu0
  %v1965 = vadd.f32 %v1916, %v1964
  %v1966 = vpop.f32.mrf.mxu0
  %v1967 = vadd.f32 %v1918, %v1966
  %1968 = vdwg.mxu0
  %1969 = vmatpush.bf16.msra.mxu0 %v1123
  %1970 = vmatpush.bf16.msra.mxu0 %v1121
  %1971 = vmatpush.bf16.msra.mxu0 %v1119
  %1972 = vmatpush.bf16.msra.mxu0 %v1117
  %1973 = vmatpush.bf16.msra.mxu0 %v1115
  %1974 = vmatpush.bf16.msra.mxu0 %v1113
  %1975 = vmatpush.bf16.msra.mxu0 %v1111
  %1976 = vmatpush.bf16.msra.mxu0 %v1109
  %1977 = vmatmul.bf16.gmra.mxu0 %v472
  %v1978 = vpop.f32.mrf.mxu0
  %v1979 = vadd.f32 %v1930, %v1978
  %v1980 = vpop.f32.mrf.mxu0
  %v1981 = vadd.f32 %v1932, %v1980
  %1982 = vmatmul.bf16.gmra.mxu0 %v481
  %v1983 = vpop.f32.mrf.mxu0
  %v1984 = vadd.f32 %v1935, %v1983
  %v1985 = vpop.f32.mrf.mxu0
  %v1986 = vadd.f32 %v1937, %v1985
  %1987 = vmatmul.bf16.gmra.mxu0 %v490
  %v1988 = vpop.f32.mrf.mxu0
  %v1989 = vadd.f32 %v1940, %v1988
  %v1990 = vpop.f32.mrf.mxu0
  %v1991 = vadd.f32 %v1942, %v1990
  %1992 = vmatmul.bf16.gmra.mxu0 %v499
  %v1993 = vpop.f32.mrf.mxu0
  %v1994 = vadd.f32 %v1945, %v1993
  %v1995 = vpop.f32.mrf.mxu0
  %v1996 = vadd.f32 %v1947, %v1995
  %1997 = vmatmul.bf16.gmra.mxu0 %v508
  %v1998 = vpop.f32.mrf.mxu0
  %v1999 = vadd.f32 %v1950, %v1998
  %v2000 = vpop.f32.mrf.mxu0
  %v2001 = vadd.f32 %v1952, %v2000
  %2002 = vmatmul.bf16.gmra.mxu0 %v517
  %v2003 = vpop.f32.mrf.mxu0
  %v2004 = vadd.f32 %v1955, %v2003
  %v2005 = vpop.f32.mrf.mxu0
  %v2006 = vadd.f32 %v1957, %v2005
  %2007 = vmatmul.bf16.gmra.mxu0 %v526
  %v2008 = vpop.f32.mrf.mxu0
  %v2009 = vadd.f32 %v1960, %v2008
  %v2010 = vpop.f32.mrf.mxu0
  %v2011 = vadd.f32 %v1962, %v2010
  %2012 = vmatmul.bf16.gmra.mxu0 %v535
  %v2013 = vpop.f32.mrf.mxu0
  %v2014 = vadd.f32 %v1965, %v2013
  %v2015 = vpop.f32.mrf.mxu0
  %v2016 = vadd.f32 %v1967, %v2015
  %2017 = vdwg.mxu0
  %2018 = vmatpush.bf16.msra.mxu0 %v1139
  %2019 = vmatpush.bf16.msra.mxu0 %v1137
  %2020 = vmatpush.bf16.msra.mxu0 %v1135
  %2021 = vmatpush.bf16.msra.mxu0 %v1133
  %2022 = vmatpush.bf16.msra.mxu0 %v1131
  %2023 = vmatpush.bf16.msra.mxu0 %v1129
  %2024 = vmatpush.bf16.msra.mxu0 %v1127
  %2025 = vmatpush.bf16.msra.mxu0 %v1125
  %2026 = vmatmul.bf16.gmra.mxu0 %v473
  %v2027 = vpop.f32.mrf.mxu0
  %v2028 = vadd.f32 %v1979, %v2027
  %v2029 = vpop.f32.mrf.mxu0
  %v2030 = vadd.f32 %v1981, %v2029
  %2031 = vmatmul.bf16.gmra.mxu0 %v482
  %v2032 = vpop.f32.mrf.mxu0
  %v2033 = vadd.f32 %v1984, %v2032
  %v2034 = vpop.f32.mrf.mxu0
  %v2035 = vadd.f32 %v1986, %v2034
  %2036 = vmatmul.bf16.gmra.mxu0 %v491
  %v2037 = vpop.f32.mrf.mxu0
  %v2038 = vadd.f32 %v1989, %v2037
  %v2039 = vpop.f32.mrf.mxu0
  %v2040 = vadd.f32 %v1991, %v2039
  %2041 = vmatmul.bf16.gmra.mxu0 %v500
  %v2042 = vpop.f32.mrf.mxu0
  %v2043 = vadd.f32 %v1994, %v2042
  %v2044 = vpop.f32.mrf.mxu0
  %v2045 = vadd.f32 %v1996, %v2044
  %2046 = vmatmul.bf16.gmra.mxu0 %v509
  %v2047 = vpop.f32.mrf.mxu0
  %v2048 = vadd.f32 %v1999, %v2047
  %v2049 = vpop.f32.mrf.mxu0
  %v2050 = vadd.f32 %v2001, %v2049
  %2051 = vmatmul.bf16.gmra.mxu0 %v518
  %v2052 = vpop.f32.mrf.mxu0
  %v2053 = vadd.f32 %v2004, %v2052
  %v2054 = vpop.f32.mrf.mxu0
  %v2055 = vadd.f32 %v2006, %v2054
  %2056 = vmatmul.bf16.gmra.mxu0 %v527
  %v2057 = vpop.f32.mrf.mxu0
  %v2058 = vadd.f32 %v2009, %v2057
  %v2059 = vpop.f32.mrf.mxu0
  %v2060 = vadd.f32 %v2011, %v2059
  %2061 = vmatmul.bf16.gmra.mxu0 %v536
  %v2062 = vpop.f32.mrf.mxu0
  %v2063 = vadd.f32 %v2014, %v2062
  %v2064 = vpop.f32.mrf.mxu0
  %v2065 = vadd.f32 %v2016, %v2064
  %2066 = vdwg.mxu0
  %2067 = vmatpush.bf16.msra.mxu0 %v1155
  %2068 = vmatpush.bf16.msra.mxu0 %v1153
  %2069 = vmatpush.bf16.msra.mxu0 %v1151
  %2070 = vmatpush.bf16.msra.mxu0 %v1149
  %2071 = vmatpush.bf16.msra.mxu0 %v1147
  %2072 = vmatpush.bf16.msra.mxu0 %v1145
  %2073 = vmatpush.bf16.msra.mxu0 %v1143
  %2074 = vmatpush.bf16.msra.mxu0 %v1141
  %2075 = vmatmul.bf16.gmra.mxu0 %v474
  %v2076 = vpop.f32.mrf.mxu0
  %v2077 = vadd.f32 %v2028, %v2076
  %v2078 = vpop.f32.mrf.mxu0
  %v2079 = vadd.f32 %v2030, %v2078
  %2080 = vmatmul.bf16.gmra.mxu0 %v483
  %v2081 = vpop.f32.mrf.mxu0
  %v2082 = vadd.f32 %v2033, %v2081
  %v2083 = vpop.f32.mrf.mxu0
  %v2084 = vadd.f32 %v2035, %v2083
  %2085 = vmatmul.bf16.gmra.mxu0 %v492
  %v2086 = vpop.f32.mrf.mxu0
  %v2087 = vadd.f32 %v2038, %v2086
  %v2088 = vpop.f32.mrf.mxu0
  %v2089 = vadd.f32 %v2040, %v2088
  %2090 = vmatmul.bf16.gmra.mxu0 %v501
  %v2091 = vpop.f32.mrf.mxu0
  %v2092 = vadd.f32 %v2043, %v2091
  %v2093 = vpop.f32.mrf.mxu0
  %v2094 = vadd.f32 %v2045, %v2093
  %2095 = vmatmul.bf16.gmra.mxu0 %v510
  %v2096 = vpop.f32.mrf.mxu0
  %v2097 = vadd.f32 %v2048, %v2096
  %v2098 = vpop.f32.mrf.mxu0
  %v2099 = vadd.f32 %v2050, %v2098
  %2100 = vmatmul.bf16.gmra.mxu0 %v519
  %v2101 = vpop.f32.mrf.mxu0
  %v2102 = vadd.f32 %v2053, %v2101
  %v2103 = vpop.f32.mrf.mxu0
  %v2104 = vadd.f32 %v2055, %v2103
  %2105 = vmatmul.bf16.gmra.mxu0 %v528
  %v2106 = vpop.f32.mrf.mxu0
  %v2107 = vadd.f32 %v2058, %v2106
  %v2108 = vpop.f32.mrf.mxu0
  %v2109 = vadd.f32 %v2060, %v2108
  %2110 = vmatmul.bf16.gmra.mxu0 %v537
  %v2111 = vpop.f32.mrf.mxu0
  %v2112 = vadd.f32 %v2063, %v2111
  %v2113 = vpop.f32.mrf.mxu0
  %v2114 = vadd.f32 %v2065, %v2113
  %2115 = vdwg.mxu0
  %2116 = vmatpush.bf16.msra.mxu0 %v1171
  %2117 = vmatpush.bf16.msra.mxu0 %v1169
  %2118 = vmatpush.bf16.msra.mxu0 %v1167
  %2119 = vmatpush.bf16.msra.mxu0 %v1165
  %2120 = vmatpush.bf16.msra.mxu0 %v1163
  %2121 = vmatpush.bf16.msra.mxu0 %v1161
  %2122 = vmatpush.bf16.msra.mxu0 %v1159
  %2123 = vmatpush.bf16.msra.mxu0 %v1157
  %2124 = vmatmul.bf16.gmra.mxu0 %v475
  %v2125 = vpop.f32.mrf.mxu0
  %v2126 = vadd.f32 %v2077, %v2125
  %v2127 = vpop.f32.mrf.mxu0
  %v2128 = vadd.f32 %v2079, %v2127
  %2129 = vmatmul.bf16.gmra.mxu0 %v484
  %v2130 = vpop.f32.mrf.mxu0
  %v2131 = vadd.f32 %v2082, %v2130
  %v2132 = vpop.f32.mrf.mxu0
  %v2133 = vadd.f32 %v2084, %v2132
  %2134 = vmatmul.bf16.gmra.mxu0 %v493
  %v2135 = vpop.f32.mrf.mxu0
  %v2136 = vadd.f32 %v2087, %v2135
  %v2137 = vpop.f32.mrf.mxu0
  %v2138 = vadd.f32 %v2089, %v2137
  %2139 = vmatmul.bf16.gmra.mxu0 %v502
  %v2140 = vpop.f32.mrf.mxu0
  %v2141 = vadd.f32 %v2092, %v2140
  %v2142 = vpop.f32.mrf.mxu0
  %v2143 = vadd.f32 %v2094, %v2142
  %2144 = vmatmul.bf16.gmra.mxu0 %v511
  %v2145 = vpop.f32.mrf.mxu0
  %v2146 = vadd.f32 %v2097, %v2145
  %v2147 = vpop.f32.mrf.mxu0
  %v2148 = vadd.f32 %v2099, %v2147
  %2149 = vmatmul.bf16.gmra.mxu0 %v520
  %v2150 = vpop.f32.mrf.mxu0
  %v2151 = vadd.f32 %v2102, %v2150
  %v2152 = vpop.f32.mrf.mxu0
  %v2153 = vadd.f32 %v2104, %v2152
  %2154 = vmatmul.bf16.gmra.mxu0 %v529
  %v2155 = vpop.f32.mrf.mxu0
  %v2156 = vadd.f32 %v2107, %v2155
  %v2157 = vpop.f32.mrf.mxu0
  %v2158 = vadd.f32 %v2109, %v2157
  %2159 = vmatmul.bf16.gmra.mxu0 %v538
  %v2160 = vpop.f32.mrf.mxu0
  %v2161 = vadd.f32 %v2112, %v2160
  %v2162 = vpop.f32.mrf.mxu0
  %v2163 = vadd.f32 %v2114, %v2162
  %2164 = vdwg.mxu0
  %2165 = vmatpush.bf16.msra.mxu0 %v1187
  %2166 = vmatpush.bf16.msra.mxu0 %v1185
  %2167 = vmatpush.bf16.msra.mxu0 %v1183
  %2168 = vmatpush.bf16.msra.mxu0 %v1181
  %2169 = vmatpush.bf16.msra.mxu0 %v1179
  %2170 = vmatpush.bf16.msra.mxu0 %v1177
  %2171 = vmatpush.bf16.msra.mxu0 %v1175
  %2172 = vmatpush.bf16.msra.mxu0 %v1173
  %2173 = vmatmul.bf16.gmra.mxu0 %v476
  %v2174 = vpop.f32.mrf.mxu0
  %v2175 = vadd.f32 %v2126, %v2174
  %v2176 = vpop.f32.mrf.mxu0
  %v2177 = vadd.f32 %v2128, %v2176
  %2178 = vmatmul.bf16.gmra.mxu0 %v485
  %v2179 = vpop.f32.mrf.mxu0
  %v2180 = vadd.f32 %v2131, %v2179
  %v2181 = vpop.f32.mrf.mxu0
  %v2182 = vadd.f32 %v2133, %v2181
  %2183 = vmatmul.bf16.gmra.mxu0 %v494
  %v2184 = vpop.f32.mrf.mxu0
  %v2185 = vadd.f32 %v2136, %v2184
  %v2186 = vpop.f32.mrf.mxu0
  %v2187 = vadd.f32 %v2138, %v2186
  %2188 = vmatmul.bf16.gmra.mxu0 %v503
  %v2189 = vpop.f32.mrf.mxu0
  %v2190 = vadd.f32 %v2141, %v2189
  %v2191 = vpop.f32.mrf.mxu0
  %v2192 = vadd.f32 %v2143, %v2191
  %2193 = vmatmul.bf16.gmra.mxu0 %v512
  %v2194 = vpop.f32.mrf.mxu0
  %v2195 = vadd.f32 %v2146, %v2194
  %v2196 = vpop.f32.mrf.mxu0
  %v2197 = vadd.f32 %v2148, %v2196
  %2198 = vmatmul.bf16.gmra.mxu0 %v521
  %v2199 = vpop.f32.mrf.mxu0
  %v2200 = vadd.f32 %v2151, %v2199
  %v2201 = vpop.f32.mrf.mxu0
  %v2202 = vadd.f32 %v2153, %v2201
  %2203 = vmatmul.bf16.gmra.mxu0 %v530
  %v2204 = vpop.f32.mrf.mxu0
  %v2205 = vadd.f32 %v2156, %v2204
  %v2206 = vpop.f32.mrf.mxu0
  %v2207 = vadd.f32 %v2158, %v2206
  %2208 = vmatmul.bf16.gmra.mxu0 %v539
  %v2209 = vpop.f32.mrf.mxu0
  %v2210 = vadd.f32 %v2161, %v2209
  %v2211 = vpop.f32.mrf.mxu0
  %v2212 = vadd.f32 %v2163, %v2211
  %2213 = vdwg.mxu0
  %v2214 = vmax.f32 %v1734, 0.0
  %v2215 = vmax.f32 %v2175, 0.0
  %v2216 = vmax.f32 %v1736, 0.0
  %v2217 = vmax.f32 %v2177, 0.0
  %v2218 = vmax.f32 %v1739, 0.0
  %v2219 = vmax.f32 %v2180, 0.0
  %v2220 = vmax.f32 %v1741, 0.0
  %v2221 = vmax.f32 %v2182, 0.0
  %v2222 = vmax.f32 %v1744, 0.0
  %v2223 = vmax.f32 %v2185, 0.0
  %v2224 = vmax.f32 %v1746, 0.0
  %v2225 = vmax.f32 %v2187, 0.0
  %v2226 = vmax.f32 %v1749, 0.0
  %v2227 = vmax.f32 %v2190, 0.0
  %v2228 = vmax.f32 %v1751, 0.0
  %v2229 = vmax.f32 %v2192, 0.0
  %v2230 = vmax.f32 %v1754, 0.0
  %v2231 = vmax.f32 %v2195, 0.0
  %v2232 = vmax.f32 %v1756, 0.0
  %v2233 = vmax.f32 %v2197, 0.0
  %v2234 = vmax.f32 %v1759, 0.0
  %v2235 = vmax.f32 %v2200, 0.0
  %v2236 = vmax.f32 %v1761, 0.0
  %v2237 = vmax.f32 %v2202, 0.0
  %v2238 = vmax.f32 %v1764, 0.0
  %v2239 = vmax.f32 %v2205, 0.0
  %v2240 = vmax.f32 %v1766, 0.0
  %v2241 = vmax.f32 %v2207, 0.0
  %v2242 = vmax.f32 %v1769, 0.0
  %v2243 = vmax.f32 %v2210, 0.0
  %v2244 = vmax.f32 %v1771, 0.0
  %v2245 = vmax.f32 %v2212, 0.0
  %v2246 = vpack.c.bf16 %v2215, %v2214
  %v2247 = vpack.c.bf16 %v2217, %v2216
  %v2248 = vpack.c.bf16 %v2219, %v2218
  %v2249 = vpack.c.bf16 %v2221, %v2220
  %v2250 = vpack.c.bf16 %v2223, %v2222
  %v2251 = vpack.c.bf16 %v2225, %v2224
  %v2252 = vpack.c.bf16 %v2227, %v2226
  %v2253 = vpack.c.bf16 %v2229, %v2228
  %v2254 = vpack.c.bf16 %v2231, %v2230
  %v2255 = vpack.c.bf16 %v2233, %v2232
  %v2256 = vpack.c.bf16 %v2235, %v2234
  %v2257 = vpack.c.bf16 %v2237, %v2236
  %v2258 = vpack.c.bf16 %v2239, %v2238
  %v2259 = vpack.c.bf16 %v2241, %v2240
  %v2260 = vpack.c.bf16 %v2243, %v2242
  %v2261 = vpack.c.bf16 %v2245, %v2244
  %2262 = vst [vmem:[%s3] sm:$0xff] %v2246
  %2263 = vst [vmem:[%s3 + $0x8] sm:$0xff] %v2247
  %2264 = vst [vmem:[%s3 + $0x10] sm:$0xff] %v2248
  %2265 = vst [vmem:[%s3 + $0x18] sm:$0xff] %v2249
  %2266 = vst [vmem:[%s3 + $0x20] sm:$0xff] %v2250
  %2267 = vst [vmem:[%s3 + $0x28] sm:$0xff] %v2251
  %2268 = vst [vmem:[%s3 + $0x30] sm:$0xff] %v2252
  %2269 = vst [vmem:[%s3 + $0x38] sm:$0xff] %v2253
  %2270 = vst [vmem:[%s3 + $0x40] sm:$0xff] %v2254
  %2271 = vst [vmem:[%s3 + $0x48] sm:$0xff] %v2255
  %2272 = vst [vmem:[%s3 + $0x50] sm:$0xff] %v2256
  %2273 = vst [vmem:[%s3 + $0x58] sm:$0xff] %v2257
  %2274 = vst [vmem:[%s3 + $0x60] sm:$0xff] %v2258
  %2275 = vst [vmem:[%s3 + $0x68] sm:$0xff] %v2259
  %2276 = vst [vmem:[%s3 + $0x70] sm:$0xff] %v2260
  %2277 = vst [vmem:[%s3 + $0x78] sm:$0xff] %v2261
  // Predicated region
  $region14: #{conv_decoder_forward.4} parent=0 // pred_check
    _
  $region15: #{conv_decoder_forward.4} parent=0 // pred_check_branch
    %2279 = sbr.rel (0) target = $region17
  $region16: #{conv_decoder_forward.4} parent=0 // pred_region
    _
  $region17: #{conv_decoder_forward.4} parent=0 // pred_fallthru
    _
  // Predicated region
  $region18: #{conv_decoder_forward.4} parent=0 // pred_check
    _
  $region19: #{conv_decoder_forward.4} parent=0 // pred_check_branch
    %2281 = sbr.rel (0) target = $region21
  $region20: #{conv_decoder_forward.4} parent=0 // pred_region
    _
  $region21: #{conv_decoder_forward.4} parent=0 // pred_fallthru
    _

// kernel: conv_decoder_forward.3
$region0: #{conv_decoder_forward.3}
  #allocation0 [shape = 'u32[]', space=smem, size = 0x4, offset = 0x4, fixed_abs, tag = 'smem constant byte address 0x4 - core index']
  #allocation1 [shape = 'u32[72,128]{1,0:T(1,128)}', space=vmem, size = 0x9000, scoped, tag = 'internal scratch']
  %s0 = inlined_call_operand.hbm [shape: f32[2,16], index: 0, kind: input, shape index: {}]
  %s1 = inlined_call_operand.hbm [shape: bf16[16,128], index: 1, kind: input, shape index: {}]
  %s2 = inlined_call_operand.hbm [shape: f32[1,128], index: 2, kind: input, shape index: {}]
  %s3 = inlined_call_operand.hbm [shape: bf16[128,6272], index: 3, kind: input, shape index: {}]
  %s4 = inlined_call_operand.hbm [shape: f32[1,6272], index: 4, kind: input, shape index: {}]
  %s5 = inlined_call_operand.vmem [shape: bf16[2,6272], index: 5, kind: output, shape index: {}]
  %s6 = sld [smem:[#allocation0]]
  $region50: #{conv_decoder_forward.3} parent=0
    _
  %s8 = ssub.s32 1, %s6
  %s9 = scalar_select 0, %s8, %s6
  $region1: #{conv_decoder_forward.3} parent=0
    #allocation2 [shape = 'u8[1024]{0}', space=vmem, size = 0x400, scoped, tag = 'input window, operand 0, single buffered']
    #allocation3 [shape = 's32[1]{0}', space=sflag, size = 0x4, scoped, tag = 'scoped memory for conv_decoder_forward.3']
    #allocation4 [shape = 'u8[4096]{0}', space=vmem, size = 0x1000, scoped, tag = 'input window, operand 1, single buffered']
    #allocation5 [shape = 's32[1]{0}', space=sflag, size = 0x4, scoped, tag = 'scoped memory for conv_decoder_forward.3']
    #allocation6 [shape = 'u8[512]{0}', space=vmem, size = 0x400, scoped, tag = 'input window, operand 2, single buffered']
    #allocation7 [shape = 'u8[1605632]{0}', space=vmem, size = 0x188000, scoped, tag = 'input window, operand 3, single buffered']
    #allocation8 [shape = 's32[1]{0}', space=sflag, size = 0x4, scoped, tag = 'scoped memory for conv_decoder_forward.3']
    #allocation9 [shape = 'u8[25088]{0}', space=vmem, size = 0x6400, scoped, tag = 'input window, operand 4, single buffered']
    %10 = vsyncpa [#allocation3], 0
    %11 = vsyncpa [#allocation5], 0
    %12 = vsyncpa [#allocation8], 0
    // Predicated region
    $region2: #{conv_decoder_forward.3} parent=1 // pred_check
      _
    $region3: #{conv_decoder_forward.3} parent=1 // pred_check_branch
      %14 = sbr.rel (0) target = $region5
    $region4: #{conv_decoder_forward.3} parent=1 // pred_region
      %16 = vsyncadd [#allocation3], 0
      %s18 = sshll.u32 %s0, 4
      %s19 = int_to_ptr.hbm [resolvable:$true] %s18
      %s20 = sshll.u32 [#allocation2], 4
      %s21 = int_to_ptr.vmem [resolvable:$true] %s20
      %23 = dma.hbm_to_vmem [thread:$0]  %s19, 32, %s21, [#allocation3]
    $region5: #{conv_decoder_forward.3} parent=1 // pred_fallthru
      _
    // Predicated region
    $region6: #{conv_decoder_forward.3} parent=1 // pred_check
      _
    $region7: #{conv_decoder_forward.3} parent=1 // pred_check_branch
      %25 = sbr.rel (0) target = $region9
    $region8: #{conv_decoder_forward.3} parent=1 // pred_region
      %27 = vsyncadd [#allocation5], 0
      %s28 = sshll.u32 %s1, 4
      %s29 = int_to_ptr.hbm [resolvable:$true] %s28
      %s30 = sshll.u32 [#allocation4], 4
      %s31 = int_to_ptr.vmem [resolvable:$true] %s30
      %36 = dma.hbm_to_vmem [thread:$0]  %s29, 128, %s31, [#allocation5], 64, 64, 4
    $region9: #{conv_decoder_forward.3} parent=1 // pred_fallthru
      _
    // Predicated region
    $region10: #{conv_decoder_forward.3} parent=1 // pred_check
      _
    $region11: #{conv_decoder_forward.3} parent=1 // pred_check_branch
      %38 = sbr.rel (0) target = $region13
    $region12: #{conv_decoder_forward.3} parent=1 // pred_region
      %40 = vsyncadd [#allocation5], 0
      %s42 = sshll.u32 %s2, 4
      %s43 = int_to_ptr.hbm [resolvable:$true] %s42
      %s44 = sshll.u32 [#allocation6], 4
      %s45 = int_to_ptr.vmem [resolvable:$true] %s44
      %47 = dma.hbm_to_vmem [thread:$0]  %s43, 16, %s45, [#allocation5]
    $region13: #{conv_decoder_forward.3} parent=1 // pred_fallthru
      _
    // Predicated region
    $region14: #{conv_decoder_forward.3} parent=1 // pred_check
      _
    $region15: #{conv_decoder_forward.3} parent=1 // pred_check_branch
      %49 = sbr.rel (0) target = $region17
    $region16: #{conv_decoder_forward.3} parent=1 // pred_region
      %51 = vsyncadd [#allocation8], 0
      %s52 = sshll.u32 %s3, 4
      %s53 = int_to_ptr.hbm [resolvable:$true] %s52
      %s54 = sshll.u32 [#allocation7], 4
      %s55 = int_to_ptr.vmem [resolvable:$true] %s54
      %60 = dma.hbm_to_vmem [thread:$0]  %s53, 50176, %s55, [#allocation8], 3136, 3136, 196
    $region17: #{conv_decoder_forward.3} parent=1 // pred_fallthru
      _
    // Predicated region
    $region18: #{conv_decoder_forward.3} parent=1 // pred_check
      _
    $region19: #{conv_decoder_forward.3} parent=1 // pred_check_branch
      %62 = sbr.rel (0) target = $region21
    $region20: #{conv_decoder_forward.3} parent=1 // pred_region
      %64 = vsyncadd [#allocation8], 0
      %s66 = sshll.u32 %s4, 4
      %s67 = int_to_ptr.hbm [resolvable:$true] %s66
      %s68 = sshll.u32 [#allocation9], 4
      %s69 = int_to_ptr.vmem [resolvable:$true] %s68
      %71 = dma.hbm_to_vmem [thread:$0]  %s67, 784, %s69, [#allocation8]
    $region21: #{conv_decoder_forward.3} parent=1 // pred_fallthru
      _
    // Predicated region
    $region22: #{conv_decoder_forward.3} parent=1 // pred_check
      _
    $region23: #{conv_decoder_forward.3} parent=1 // pred_check_branch
      %73 = sbr.rel (0) target = $region25
    $region24: #{conv_decoder_forward.3} parent=1 // pred_region
      %75 = dma.done [#allocation3], 32
    $region25: #{conv_decoder_forward.3} parent=1 // pred_fallthru
      _
    // Predicated region
    $region26: #{conv_decoder_forward.3} parent=1 // pred_check
      _
    $region27: #{conv_decoder_forward.3} parent=1 // pred_check_branch
      %77 = sbr.rel (0) target = $region29
    $region28: #{conv_decoder_forward.3} parent=1 // pred_region
      %79 = dma.done [#allocation5], 128
    $region29: #{conv_decoder_forward.3} parent=1 // pred_fallthru
      _
    // Predicated region
    $region30: #{conv_decoder_forward.3} parent=1 // pred_check
      _
    $region31: #{conv_decoder_forward.3} parent=1 // pred_check_branch
      %81 = sbr.rel (0) target = $region33
    $region32: #{conv_decoder_forward.3} parent=1 // pred_region
      %83 = dma.done [#allocation5], 16
    $region33: #{conv_decoder_forward.3} parent=1 // pred_fallthru
      _
    // Predicated region
    $region34: #{conv_decoder_forward.3} parent=1 // pred_check
      _
    $region35: #{conv_decoder_forward.3} parent=1 // pred_check_branch
      %85 = sbr.rel (0) target = $region37
    $region36: #{conv_decoder_forward.3} parent=1 // pred_region
      %87 = dma.done [#allocation8], 50176
    $region37: #{conv_decoder_forward.3} parent=1 // pred_fallthru
      _
    // Predicated region
    $region38: #{conv_decoder_forward.3} parent=1 // pred_check
      _
    $region39: #{conv_decoder_forward.3} parent=1 // pred_check_branch
      %89 = sbr.rel (0) target = $region41
    $region40: #{conv_decoder_forward.3} parent=1 // pred_region
      %91 = dma.done [#allocation8], 784
    $region41: #{conv_decoder_forward.3} parent=1 // pred_fallthru
      _
    %v93 = vld [vmem:[#allocation2] sm:$0x3]
    %v94 = vpack.c.bf16 %v93, %v93
    %v95 = vld [vmem:[#allocation4] sm:$0xf]
    %v96 = vld [vmem:[#allocation4 + $0x4] sm:$0xf]
    %v97 = vld [vmem:[#allocation6] sm:$0x1]
    %v99 = vperm.slane %v97, 0
    %v103 = vunpack.c.l.b16 %v95
    %v104 = vunpack.c.l.b16 %v96
    %v105 = vpack.c.b16 %v104, %v103
    %vm107 = vcmask 130048
    %v109 = vsel %vm107, %v94, 0
    %111 = vmatpush.bf16.msra.mxu0 0
    %112 = vmatpush.bf16.msra.mxu0 0
    %113 = vmatpush.bf16.msra.mxu0 0
    %114 = vmatpush.bf16.msra.mxu0 0
    %115 = vmatpush.bf16.msra.mxu0 0
    %116 = vmatpush.bf16.msra.mxu0 0
    %117 = vmatpush.bf16.msra.mxu0 0
    %118 = vmatpush.bf16.msra.mxu0 %v105
    %119 = vmatmul.bf16.gmra.mxu0 %v109
    %v120 = vpop.f32.mrf.mxu0
    %v121 = vadd.f32 %v99, %v120
    %v122 = vpop.f32.mrf.mxu0
    %123 = vdwg.mxu0
    %v124 = vmax.f32 %v121, 0.0
    %v125 = vpack.c.bf16 %v124, %v124
    %v126 = vld [vmem:[#allocation7] sm:$0xff]
    %v127 = vld [vmem:[#allocation7 + $0x8] sm:$0xff]
    %v128 = vld [vmem:[#allocation7 + $0x10] sm:$0xff]
    %v129 = vld [vmem:[#allocation7 + $0x18] sm:$0xff]
    %v130 = vld [vmem:[#allocation7 + $0x20] sm:$0xff]
    %v131 = vld [vmem:[#allocation7 + $0x28] sm:$0xff]
    %v132 = vld [vmem:[#allocation7 + $0x30] sm:$0xff]
    %v133 = vld [vmem:[#allocation7 + $0x38] sm:$0xff]
    %v134 = vld [vmem:[#allocation7 + $0x40] sm:$0xff]
    %v135 = vld [vmem:[#allocation7 + $0x48] sm:$0xff]
    %v136 = vld [vmem:[#allocation7 + $0x50] sm:$0xff]
    %v137 = vld [vmem:[#allocation7 + $0x58] sm:$0xff]
    %v138 = vld [vmem:[#allocation7 + $0x60] sm:$0xff]
    %v139 = vld [vmem:[#allocation7 + $0x68] sm:$0xff]
    %v140 = vld [vmem:[#allocation7 + $0x70] sm:$0xff]
    %v141 = vld [vmem:[#allocation7 + $0x78] sm:$0xff]
    %v142 = vld [vmem:[#allocation7 + $0x80] sm:$0xff]
    %v143 = vld [vmem:[#allocation7 + $0x88] sm:$0xff]
    %v144 = vld [vmem:[#allocation7 + $0x90] sm:$0xff]
    %v145 = vld [vmem:[#allocation7 + $0x98] sm:$0xff]
    %v146 = vld [vmem:[#allocation7 + $0xa0] sm:$0xff]
    %v147 = vld [vmem:[#allocation7 + $0xa8] sm:$0xff]
    %v148 = vld [vmem:[#allocation7 + $0xb0] sm:$0xff]
    %v149 = vld [vmem:[#allocation7 + $0xb8] sm:$0xff]
    %v150 = vld [vmem:[#allocation7 + $0xc0] sm:$0xf]
    %v151 = vld [vmem:[#allocation7 + $0xc4] sm:$0xff]
    %v152 = vld [vmem:[#allocation7 + $0xcc] sm:$0xff]
    %v153 = vld [vmem:[#allocation7 + $0xd4] sm:$0xff]
    %v154 = vld [vmem:[#allocation7 + $0xdc] sm:$0xff]
    %v155 = vld [vmem:[#allocation7 + $0xe4] sm:$0xff]
    %v156 = vld [vmem:[#allocation7 + $0xec] sm:$0xff]
    %v157 = vld [vmem:[#allocation7 + $0xf4] sm:$0xff]
    %v158 = vld [vmem:[#allocation7 + $0xfc] sm:$0xff]
    %v159 = vld [vmem:[#allocation7 + $0x104] sm:$0xff]
    %v160 = vld [vmem:[#allocation7 + $0x10c] sm:$0xff]
    %v161 = vld [vmem:[#allocation7 + $0x114] sm:$0xff]
    %v162 = vld [vmem:[#allocation7 + $0x11c] sm:$0xff]
    %v163 = vld [vmem:[#allocation7 + $0x124] sm:$0xff]
    %v164 = vld [vmem:[#allocation7 + $0x12c] sm:$0xff]
    %v165 = vld [vmem:[#allocation7 + $0x134] sm:$0xff]
    %v166 = vld [vmem:[#allocation7 + $0x13c] sm:$0xff]
    %v167 = vld [vmem:[#allocation7 + $0x144] sm:$0xff]
    %v168 = vld [vmem:[#allocation7 + $0x14c] sm:$0xff]
    %v169 = vld [vmem:[#allocation7 + $0x154] sm:$0xff]
    %v170 = vld [vmem:[#allocation7 + $0x15c] sm:$0xff]
    %v171 = vld [vmem:[#allocation7 + $0x164] sm:$0xff]
    %v172 = vld [vmem:[#allocation7 + $0x16c] sm:$0xff]
    %v173 = vld [vmem:[#allocation7 + $0x174] sm:$0xff]
    %v174 = vld [vmem:[#allocation7 + $0x17c] sm:$0xff]
    %v175 = vld [vmem:[#allocation7 + $0x184] sm:$0xf]
    %v176 = vld [vmem:[#allocation7 + $0x188] sm:$0xff]
    %v177 = vld [vmem:[#allocation7 + $0x190] sm:$0xff]
    %v178 = vld [vmem:[#allocation7 + $0x198] sm:$0xff]
    %v179 = vld [vmem:[#allocation7 + $0x1a0] sm:$0xff]
    %v180 = vld [vmem:[#allocation7 + $0x1a8] sm:$0xff]
    %v181 = vld [vmem:[#allocation7 + $0x1b0] sm:$0xff]
    %v182 = vld [vmem:[#allocation7 + $0x1b8] sm:$0xff]
    %v183 = vld [vmem:[#allocation7 + $0x1c0] sm:$0xff]
    %v184 = vld [vmem:[#allocation7 + $0x1c8] sm:$0xff]
    %v185 = vld [vmem:[#allocation7 + $0x1d0] sm:$0xff]
    %v186 = vld [vmem:[#allocation7 + $0x1d8] sm:$0xff]
    %v187 = vld [vmem:[#allocation7 + $0x1e0] sm:$0xff]
    %v188 = vld [vmem:[#allocation7 + $0x1e8] sm:$0xff]
    %v189 = vld [vmem:[#allocation7 + $0x1f0] sm:$0xff]
    %v190 = vld [vmem:[#allocation7 + $0x1f8] sm:$0xff]
    %v191 = vld [vmem:[#allocation7 + $0x200] sm:$0xff]
    %v192 = vld [vmem:[#allocation7 + $0x208] sm:$0xff]
    %v193 = vld [vmem:[#allocation7 + $0x210] sm:$0xff]
    %v194 = vld [vmem:[#allocation7 + $0x218] sm:$0xff]
    %v195 = vld [vmem:[#allocation7 + $0x220] sm:$0xff]
    %v196 = vld [vmem:[#allocation7 + $0x228] sm:$0xff]
    %v197 = vld [vmem:[#allocation7 + $0x230] sm:$0xff]
    %v198 = vld [vmem:[#allocation7 + $0x238] sm:$0xff]
    %v199 = vld [vmem:[#allocation7 + $0x240] sm:$0xff]
    %v200 = vld [vmem:[#allocation7 + $0x248] sm:$0xf]
    %v201 = vld [vmem:[#allocation7 + $0x24c] sm:$0xff]
    %v202 = vld [vmem:[#allocation7 + $0x254] sm:$0xff]
    %v203 = vld [vmem:[#allocation7 + $0x25c] sm:$0xff]
    %v204 = vld [vmem:[#allocation7 + $0x264] sm:$0xff]
    %v205 = vld [vmem:[#allocation7 + $0x26c] sm:$0xff]
    %v206 = vld [vmem:[#allocation7 + $0x274] sm:$0xff]
    %v207 = vld [vmem:[#allocation7 + $0x27c] sm:$0xff]
    %v208 = vld [vmem:[#allocation7 + $0x284] sm:$0xff]
    %v209 = vld [vmem:[#allocation7 + $0x28c] sm:$0xff]
    %v210 = vld [vmem:[#allocation7 + $0x294] sm:$0xff]
    %v211 = vld [vmem:[#allocation7 + $0x29c] sm:$0xff]
    %v212 = vld [vmem:[#allocation7 + $0x2a4] sm:$0xff]
    %v213 = vld [vmem:[#allocation7 + $0x2ac] sm:$0xff]
    %v214 = vld [vmem:[#allocation7 + $0x2b4] sm:$0xff]
    %v215 = vld [vmem:[#allocation7 + $0x2bc] sm:$0xff]
    %v216 = vld [vmem:[#allocation7 + $0x2c4] sm:$0xff]
    %v217 = vld [vmem:[#allocation7 + $0x2cc] sm:$0xff]
    %v218 = vld [vmem:[#allocation7 + $0x2d4] sm:$0xff]
    %v219 = vld [vmem:[#allocation7 + $0x2dc] sm:$0xff]
    %v220 = vld [vmem:[#allocation7 + $0x2e4] sm:$0xff]
    %v221 = vld [vmem:[#allocation7 + $0x2ec] sm:$0xff]
    %v222 = vld [vmem:[#allocation7 + $0x2f4] sm:$0xff]
    %v223 = vld [vmem:[#allocation7 + $0x2fc] sm:$0xff]
    %v224 = vld [vmem:[#allocation7 + $0x304] sm:$0xff]
    %v225 = vld [vmem:[#allocation7 + $0x30c] sm:$0xf]
    %v226 = vld [vmem:[#allocation7 + $0x310] sm:$0xff]
    %v227 = vld [vmem:[#allocation7 + $0x318] sm:$0xff]
    %v228 = vld [vmem:[#allocation7 + $0x320] sm:$0xff]
    %v229 = vld [vmem:[#allocation7 + $0x328] sm:$0xff]
    %v230 = vld [vmem:[#allocation7 + $0x330] sm:$0xff]
    %v231 = vld [vmem:[#allocation7 + $0x338] sm:$0xff]
    %v232 = vld [vmem:[#allocation7 + $0x340] sm:$0xff]
    %v233 = vld [vmem:[#allocation7 + $0x348] sm:$0xff]
    %v234 = vld [vmem:[#allocation7 + $0x350] sm:$0xff]
    %v235 = vld [vmem:[#allocation7 + $0x358] sm:$0xff]
    %v236 = vld [vmem:[#allocation7 + $0x360] sm:$0xff]
    %v237 = vld [vmem:[#allocation7 + $0x368] sm:$0xff]
    %v238 = vld [vmem:[#allocation7 + $0x370] sm:$0xff]
    %v239 = vld [vmem:[#allocation7 + $0x378] sm:$0xff]
    %v240 = vld [vmem:[#allocation7 + $0x380] sm:$0xff]
    %v241 = vld [vmem:[#allocation7 + $0x388] sm:$0xff]
    %v242 = vld [vmem:[#allocation7 + $0x390] sm:$0xff]
    %v243 = vld [vmem:[#allocation7 + $0x398] sm:$0xff]
    %v244 = vld [vmem:[#allocation7 + $0x3a0] sm:$0xff]
    %v245 = vld [vmem:[#allocation7 + $0x3a8] sm:$0xff]
    %v246 = vld [vmem:[#allocation7 + $0x3b0] sm:$0xff]
    %v247 = vld [vmem:[#allocation7 + $0x3b8] sm:$0xff]
    %v248 = vld [vmem:[#allocation7 + $0x3c0] sm:$0xff]
    %v249 = vld [vmem:[#allocation7 + $0x3c8] sm:$0xff]
    %v250 = vld [vmem:[#allocation7 + $0x3d0] sm:$0xf]
    %v251 = vld [vmem:[#allocation7 + $0x3d4] sm:$0xff]
    %v252 = vld [vmem:[#allocation7 + $0x3dc] sm:$0xff]
    %v253 = vld [vmem:[#allocation7 + $0x3e4] sm:$0xff]
    %v254 = vld [vmem:[#allocation7 + $0x3ec] sm:$0xff]
    %v255 = vld [vmem:[#allocation7 + $0x3f4] sm:$0xff]
    %v256 = vld [vmem:[#allocation7 + $0x3fc] sm:$0xff]
    %v257 = vld [vmem:[#allocation7 + $0x404] sm:$0xff]
    %v258 = vld [vmem:[#allocation7 + $0x40c] sm:$0xff]
    %v259 = vld [vmem:[#allocation7 + $0x414] sm:$0xff]
    %v260 = vld [vmem:[#allocation7 + $0x41c] sm:$0xff]
    %v261 = vld [vmem:[#allocation7 + $0x424] sm:$0xff]
    %v262 = vld [vmem:[#allocation7 + $0x42c] sm:$0xff]
    %v263 = vld [vmem:[#allocation7 + $0x434] sm:$0xff]
    %v264 = vld [vmem:[#allocation7 + $0x43c] sm:$0xff]
    %v265 = vld [vmem:[#allocation7 + $0x444] sm:$0xff]
    %v266 = vld [vmem:[#allocation7 + $0x44c] sm:$0xff]
    %v267 = vld [vmem:[#allocation7 + $0x454] sm:$0xff]
    %v268 = vld [vmem:[#allocation7 + $0x45c] sm:$0xff]
    %v269 = vld [vmem:[#allocation7 + $0x464] sm:$0xff]
    %v270 = vld [vmem:[#allocation7 + $0x46c] sm:$0xff]
    %v271 = vld [vmem:[#allocation7 + $0x474] sm:$0xff]
    %v272 = vld [vmem:[#allocation7 + $0x47c] sm:$0xff]
    %v273 = vld [vmem:[#allocation7 + $0x484] sm:$0xff]
    %v274 = vld [vmem:[#allocation7 + $0x48c] sm:$0xff]
    %v275 = vld [vmem:[#allocation7 + $0x494] sm:$0xf]
    %v276 = vld [vmem:[#allocation7 + $0x498] sm:$0xff]
    %v277 = vld [vmem:[#allocation7 + $0x4a0] sm:$0xff]
    %v278 = vld [vmem:[#allocation7 + $0x4a8] sm:$0xff]
    %v279 = vld [vmem:[#allocation7 + $0x4b0] sm:$0xff]
    %v280 = vld [vmem:[#allocation7 + $0x4b8] sm:$0xff]
    %v281 = vld [vmem:[#allocation7 + $0x4c0] sm:$0xff]
    %v282 = vld [vmem:[#allocation7 + $0x4c8] sm:$0xff]
    %v283 = vld [vmem:[#allocation7 + $0x4d0] sm:$0xff]
    %v284 = vld [vmem:[#allocation7 + $0x4d8] sm:$0xff]
    %v285 = vld [vmem:[#allocation7 + $0x4e0] sm:$0xff]
    %v286 = vld [vmem:[#allocation7 + $0x4e8] sm:$0xff]
    %v287 = vld [vmem:[#allocation7 + $0x4f0] sm:$0xff]
    %v288 = vld [vmem:[#allocation7 + $0x4f8] sm:$0xff]
    %v289 = vld [vmem:[#allocation7 + $0x500] sm:$0xff]
    %v290 = vld [vmem:[#allocation7 + $0x508] sm:$0xff]
    %v291 = vld [vmem:[#allocation7 + $0x510] sm:$0xff]
    %v292 = vld [vmem:[#allocation7 + $0x518] sm:$0xff]
    %v293 = vld [vmem:[#allocation7 + $0x520] sm:$0xff]
    %v294 = vld [vmem:[#allocation7 + $0x528] sm:$0xff]
    %v295 = vld [vmem:[#allocation7 + $0x530] sm:$0xff]
    %v296 = vld [vmem:[#allocation7 + $0x538] sm:$0xff]
    %v297 = vld [vmem:[#allocation7 + $0x540] sm:$0xff]
    %v298 = vld [vmem:[#allocation7 + $0x548] sm:$0xff]
    %v299 = vld [vmem:[#allocation7 + $0x550] sm:$0xff]
    %v300 = vld [vmem:[#allocation7 + $0x558] sm:$0xf]
    %v301 = vld [vmem:[#allocation7 + $0x55c] sm:$0xff]
    %v302 = vld [vmem:[#allocation7 + $0x564] sm:$0xff]
    %v303 = vld [vmem:[#allocation7 + $0x56c] sm:$0xff]
    %v304 = vld [vmem:[#allocation7 + $0x574] sm:$0xff]
    %v305 = vld [vmem:[#allocation7 + $0x57c] sm:$0xff]
    %v306 = vld [vmem:[#allocation7 + $0x584] sm:$0xff]
    %v307 = vld [vmem:[#allocation7 + $0x58c] sm:$0xff]
    %v308 = vld [vmem:[#allocation7 + $0x594] sm:$0xff]
    %v309 = vld [vmem:[#allocation7 + $0x59c] sm:$0xff]
    %v310 = vld [vmem:[#allocation7 + $0x5a4] sm:$0xff]
    %v311 = vld [vmem:[#allocation7 + $0x5ac] sm:$0xff]
    %v312 = vld [vmem:[#allocation7 + $0x5b4] sm:$0xff]
    %v313 = vld [vmem:[#allocation7 + $0x5bc] sm:$0xff]
    %v314 = vld [vmem:[#allocation7 + $0x5c4] sm:$0xff]
    %v315 = vld [vmem:[#allocation7 + $0x5cc] sm:$0xff]
    %v316 = vld [vmem:[#allocation7 + $0x5d4] sm:$0xff]
    %v317 = vld [vmem:[#allocation7 + $0x5dc] sm:$0xff]
    %v318 = vld [vmem:[#allocation7 + $0x5e4] sm:$0xff]
    %v319 = vld [vmem:[#allocation7 + $0x5ec] sm:$0xff]
    %v320 = vld [vmem:[#allocation7 + $0x5f4] sm:$0xff]
    %v321 = vld [vmem:[#allocation7 + $0x5fc] sm:$0xff]
    %v322 = vld [vmem:[#allocation7 + $0x604] sm:$0xff]
    %v323 = vld [vmem:[#allocation7 + $0x60c] sm:$0xff]
    %v324 = vld [vmem:[#allocation7 + $0x614] sm:$0xff]
    %v325 = vld [vmem:[#allocation7 + $0x61c] sm:$0xf]
    %v326 = vld [vmem:[#allocation7 + $0x620] sm:$0xff]
    %v327 = vld [vmem:[#allocation7 + $0x628] sm:$0xff]
    %v328 = vld [vmem:[#allocation7 + $0x630] sm:$0xff]
    %v329 = vld [vmem:[#allocation7 + $0x638] sm:$0xff]
    %v330 = vld [vmem:[#allocation7 + $0x640] sm:$0xff]
    %v331 = vld [vmem:[#allocation7 + $0x648] sm:$0xff]
    %v332 = vld [vmem:[#allocation7 + $0x650] sm:$0xff]
    %v333 = vld [vmem:[#allocation7 + $0x658] sm:$0xff]
    %v334 = vld [vmem:[#allocation7 + $0x660] sm:$0xff]
    %v335 = vld [vmem:[#allocation7 + $0x668] sm:$0xff]
    %v336 = vld [vmem:[#allocation7 + $0x670] sm:$0xff]
    %v337 = vld [vmem:[#allocation7 + $0x678] sm:$0xff]
    %v338 = vld [vmem:[#allocation7 + $0x680] sm:$0xff]
    %v339 = vld [vmem:[#allocation7 + $0x688] sm:$0xff]
    %v340 = vld [vmem:[#allocation7 + $0x690] sm:$0xff]
    %v341 = vld [vmem:[#allocation7 + $0x698] sm:$0xff]
    %v342 = vld [vmem:[#allocation7 + $0x6a0] sm:$0xff]
    %v343 = vld [vmem:[#allocation7 + $0x6a8] sm:$0xff]
    %v344 = vld [vmem:[#allocation7 + $0x6b0] sm:$0xff]
    %v345 = vld [vmem:[#allocation7 + $0x6b8] sm:$0xff]
    %v346 = vld [vmem:[#allocation7 + $0x6c0] sm:$0xff]
    %v347 = vld [vmem:[#allocation7 + $0x6c8] sm:$0xff]
    %v348 = vld [vmem:[#allocation7 + $0x6d0] sm:$0xff]
    %v349 = vld [vmem:[#allocation7 + $0x6d8] sm:$0xff]
    %v350 = vld [vmem:[#allocation7 + $0x6e0] sm:$0xf]
    %v351 = vld [vmem:[#allocation7 + $0x6e4] sm:$0xff]
    %v352 = vld [vmem:[#allocation7 + $0x6ec] sm:$0xff]
    %v353 = vld [vmem:[#allocation7 + $0x6f4] sm:$0xff]
    %v354 = vld [vmem:[#allocation7 + $0x6fc] sm:$0xff]
    %v355 = vld [vmem:[#allocation7 + $0x704] sm:$0xff]
    %v356 = vld [vmem:[#allocation7 + $0x70c] sm:$0xff]
    %v357 = vld [vmem:[#allocation7 + $0x714] sm:$0xff]
    %v358 = vld [vmem:[#allocation7 + $0x71c] sm:$0xff]
    %v359 = vld [vmem:[#allocation7 + $0x724] sm:$0xff]
    %v360 = vld [vmem:[#allocation7 + $0x72c] sm:$0xff]
    %v361 = vld [vmem:[#allocation7 + $0x734] sm:$0xff]
    %v362 = vld [vmem:[#allocation7 + $0x73c] sm:$0xff]
    %v363 = vld [vmem:[#allocation7 + $0x744] sm:$0xff]
    %v364 = vld [vmem:[#allocation7 + $0x74c] sm:$0xff]
    %v365 = vld [vmem:[#allocation7 + $0x754] sm:$0xff]
    %v366 = vld [vmem:[#allocation7 + $0x75c] sm:$0xff]
    %v367 = vld [vmem:[#allocation7 + $0x764] sm:$0xff]
    %v368 = vld [vmem:[#allocation7 + $0x76c] sm:$0xff]
    %v369 = vld [vmem:[#allocation7 + $0x774] sm:$0xff]
    %v370 = vld [vmem:[#allocation7 + $0x77c] sm:$0xff]
    %v371 = vld [vmem:[#allocation7 + $0x784] sm:$0xff]
    %v372 = vld [vmem:[#allocation7 + $0x78c] sm:$0xff]
    %v373 = vld [vmem:[#allocation7 + $0x794] sm:$0xff]
    %v374 = vld [vmem:[#allocation7 + $0x79c] sm:$0xff]
    %v375 = vld [vmem:[#allocation7 + $0x7a4] sm:$0xf]
    %v376 = vld [vmem:[#allocation7 + $0x7a8] sm:$0xff]
    %v377 = vld [vmem:[#allocation7 + $0x7b0] sm:$0xff]
    %v378 = vld [vmem:[#allocation7 + $0x7b8] sm:$0xff]
    %v379 = vld [vmem:[#allocation7 + $0x7c0] sm:$0xff]
    %v380 = vld [vmem:[#allocation7 + $0x7c8] sm:$0xff]
    %v381 = vld [vmem:[#allocation7 + $0x7d0] sm:$0xff]
    %v382 = vld [vmem:[#allocation7 + $0x7d8] sm:$0xff]
    %v383 = vld [vmem:[#allocation7 + $0x7e0] sm:$0xff]
    %v384 = vld [vmem:[#allocation7 + $0x7e8] sm:$0xff]
    %v385 = vld [vmem:[#allocation7 + $0x7f0] sm:$0xff]
    %v386 = vld [vmem:[#allocation7 + $0x7f8] sm:$0xff]
    %v387 = vld [vmem:[#allocation7 + $0x800] sm:$0xff]
    %v388 = vld [vmem:[#allocation7 + $0x808] sm:$0xff]
    %v389 = vld [vmem:[#allocation7 + $0x810] sm:$0xff]
    %v390 = vld [vmem:[#allocation7 + $0x818] sm:$0xff]
    %v391 = vld [vmem:[#allocation7 + $0x820] sm:$0xff]
    %v392 = vld [vmem:[#allocation7 + $0x828] sm:$0xff]
    %v393 = vld [vmem:[#allocation7 + $0x830] sm:$0xff]
    %v394 = vld [vmem:[#allocation7 + $0x838] sm:$0xff]
    %v395 = vld [vmem:[#allocation7 + $0x840] sm:$0xff]
    %v396 = vld [vmem:[#allocation7 + $0x848] sm:$0xff]
    %v397 = vld [vmem:[#allocation7 + $0x850] sm:$0xff]
    %v398 = vld [vmem:[#allocation7 + $0x858] sm:$0xff]
    %v399 = vld [vmem:[#allocation7 + $0x860] sm:$0xff]
    %v400 = vld [vmem:[#allocation7 + $0x868] sm:$0xf]
    %v401 = vld [vmem:[#allocation7 + $0x86c] sm:$0xff]
    %v402 = vld [vmem:[#allocation7 + $0x874] sm:$0xff]
    %v403 = vld [vmem:[#allocation7 + $0x87c] sm:$0xff]
    %v404 = vld [vmem:[#allocation7 + $0x884] sm:$0xff]
    %v405 = vld [vmem:[#allocation7 + $0x88c] sm:$0xff]
    %v406 = vld [vmem:[#allocation7 + $0x894] sm:$0xff]
    %v407 = vld [vmem:[#allocation7 + $0x89c] sm:$0xff]
    %v408 = vld [vmem:[#allocation7 + $0x8a4] sm:$0xff]
    %v409 = vld [vmem:[#allocation7 + $0x8ac] sm:$0xff]
    %v410 = vld [vmem:[#allocation7 + $0x8b4] sm:$0xff]
    %v411 = vld [vmem:[#allocation7 + $0x8bc] sm:$0xff]
    %v412 = vld [vmem:[#allocation7 + $0x8c4] sm:$0xff]
    %v413 = vld [vmem:[#allocation7 + $0x8cc] sm:$0xff]
    %v414 = vld [vmem:[#allocation7 + $0x8d4] sm:$0xff]
    %v415 = vld [vmem:[#allocation7 + $0x8dc] sm:$0xff]
    %v416 = vld [vmem:[#allocation7 + $0x8e4] sm:$0xff]
    %v417 = vld [vmem:[#allocation7 + $0x8ec] sm:$0xff]
    %v418 = vld [vmem:[#allocation7 + $0x8f4] sm:$0xff]
    %v419 = vld [vmem:[#allocation7 + $0x8fc] sm:$0xff]
    %v420 = vld [vmem:[#allocation7 + $0x904] sm:$0xff]
    %v421 = vld [vmem:[#allocation7 + $0x90c] sm:$0xff]
    %v422 = vld [vmem:[#allocation7 + $0x914] sm:$0xff]
    %v423 = vld [vmem:[#allocation7 + $0x91c] sm:$0xff]
    %v424 = vld [vmem:[#allocation7 + $0x924] sm:$0xff]
    %v425 = vld [vmem:[#allocation7 + $0x92c] sm:$0xf]
    %v426 = vld [vmem:[#allocation7 + $0x930] sm:$0xff]
    %v427 = vld [vmem:[#allocation7 + $0x938] sm:$0xff]
    %v428 = vld [vmem:[#allocation7 + $0x940] sm:$0xff]
    %v429 = vld [vmem:[#allocation7 + $0x948] sm:$0xff]
    %v430 = vld [vmem:[#allocation7 + $0x950] sm:$0xff]
    %v431 = vld [vmem:[#allocation7 + $0x958] sm:$0xff]
    %v432 = vld [vmem:[#allocation7 + $0x960] sm:$0xff]
    %v433 = vld [vmem:[#allocation7 + $0x968] sm:$0xff]
    %v434 = vld [vmem:[#allocation7 + $0x970] sm:$0xff]
    %v435 = vld [vmem:[#allocation7 + $0x978] sm:$0xff]
    %v436 = vld [vmem:[#allocation7 + $0x980] sm:$0xff]
    %v437 = vld [vmem:[#allocation7 + $0x988] sm:$0xff]
    %v438 = vld [vmem:[#allocation7 + $0x990] sm:$0xff]
    %v439 = vld [vmem:[#allocation7 + $0x998] sm:$0xff]
    %v440 = vld [vmem:[#allocation7 + $0x9a0] sm:$0xff]
    %v441 = vld [vmem:[#allocation7 + $0x9a8] sm:$0xff]
    %v442 = vld [vmem:[#allocation7 + $0x9b0] sm:$0xff]
    %v443 = vld [vmem:[#allocation7 + $0x9b8] sm:$0xff]
    %v444 = vld [vmem:[#allocation7 + $0x9c0] sm:$0xff]
    %v445 = vld [vmem:[#allocation7 + $0x9c8] sm:$0xff]
    %v446 = vld [vmem:[#allocation7 + $0x9d0] sm:$0xff]
    %v447 = vld [vmem:[#allocation7 + $0x9d8] sm:$0xff]
    %v448 = vld [vmem:[#allocation7 + $0x9e0] sm:$0xff]
    %v449 = vld [vmem:[#allocation7 + $0x9e8] sm:$0xff]
    %v450 = vld [vmem:[#allocation7 + $0x9f0] sm:$0xf]
    %v451 = vld [vmem:[#allocation7 + $0x9f4] sm:$0xff]
    %v452 = vld [vmem:[#allocation7 + $0x9fc] sm:$0xff]
    %v453 = vld [vmem:[#allocation7 + $0xa04] sm:$0xff]
    %v454 = vld [vmem:[#allocation7 + $0xa0c] sm:$0xff]
    %v455 = vld [vmem:[#allocation7 + $0xa14] sm:$0xff]
    %v456 = vld [vmem:[#allocation7 + $0xa1c] sm:$0xff]
    %v457 = vld [vmem:[#allocation7 + $0xa24] sm:$0xff]
    %v458 = vld [vmem:[#allocation7 + $0xa2c] sm:$0xff]
    %v459 = vld [vmem:[#allocation7 + $0xa34] sm:$0xff]
    %v460 = vld [vmem:[#allocation7 + $0xa3c] sm:$0xff]
    %v461 = vld [vmem:[#allocation7 + $0xa44] sm:$0xff]
    %v462 = vld [vmem:[#allocation7 + $0xa4c] sm:$0xff]
    %v463 = vld [vmem:[#allocation7 + $0xa54] sm:$0xff]
    %v464 = vld [vmem:[#allocation7 + $0xa5c] sm:$0xff]
    %v465 = vld [vmem:[#allocation7 + $0xa64] sm:$0xff]
    %v466 = vld [vmem:[#allocation7 + $0xa6c] sm:$0xff]
    %v467 = vld [vmem:[#allocation7 + $0xa74] sm:$0xff]
    %v468 = vld [vmem:[#allocation7 + $0xa7c] sm:$0xff]
    %v469 = vld [vmem:[#allocation7 + $0xa84] sm:$0xff]
    %v470 = vld [vmem:[#allocation7 + $0xa8c] sm:$0xff]
    %v471 = vld [vmem:[#allocation7 + $0xa94] sm:$0xff]
    %v472 = vld [vmem:[#allocation7 + $0xa9c] sm:$0xff]
    %v473 = vld [vmem:[#allocation7 + $0xaa4] sm:$0xff]
    %v474 = vld [vmem:[#allocation7 + $0xaac] sm:$0xff]
    %v475 = vld [vmem:[#allocation7 + $0xab4] sm:$0xf]
    %v476 = vld [vmem:[#allocation7 + $0xab8] sm:$0xff]
    %v477 = vld [vmem:[#allocation7 + $0xac0] sm:$0xff]
    %v478 = vld [vmem:[#allocation7 + $0xac8] sm:$0xff]
    %v479 = vld [vmem:[#allocation7 + $0xad0] sm:$0xff]
    %v480 = vld [vmem:[#allocation7 + $0xad8] sm:$0xff]
    %v481 = vld [vmem:[#allocation7 + $0xae0] sm:$0xff]
    %v482 = vld [vmem:[#allocation7 + $0xae8] sm:$0xff]
    %v483 = vld [vmem:[#allocation7 + $0xaf0] sm:$0xff]
    %v484 = vld [vmem:[#allocation7 + $0xaf8] sm:$0xff]
    %v485 = vld [vmem:[#allocation7 + $0xb00] sm:$0xff]
    %v486 = vld [vmem:[#allocation7 + $0xb08] sm:$0xff]
    %v487 = vld [vmem:[#allocation7 + $0xb10] sm:$0xff]
    %v488 = vld [vmem:[#allocation7 + $0xb18] sm:$0xff]
    %v489 = vld [vmem:[#allocation7 + $0xb20] sm:$0xff]
    %v490 = vld [vmem:[#allocation7 + $0xb28] sm:$0xff]
    %v491 = vld [vmem:[#allocation7 + $0xb30] sm:$0xff]
    %v492 = vld [vmem:[#allocation7 + $0xb38] sm:$0xff]
    %v493 = vld [vmem:[#allocation7 + $0xb40] sm:$0xff]
    %v494 = vld [vmem:[#allocation7 + $0xb48] sm:$0xff]
    %v495 = vld [vmem:[#allocation7 + $0xb50] sm:$0xff]
    %v496 = vld [vmem:[#allocation7 + $0xb58] sm:$0xff]
    %v497 = vld [vmem:[#allocation7 + $0xb60] sm:$0xff]
    %v498 = vld [vmem:[#allocation7 + $0xb68] sm:$0xff]
    %v499 = vld [vmem:[#allocation7 + $0xb70] sm:$0xff]
    %v500 = vld [vmem:[#allocation7 + $0xb78] sm:$0xf]
    %v501 = vld [vmem:[#allocation7 + $0xb7c] sm:$0xff]
    %v502 = vld [vmem:[#allocation7 + $0xb84] sm:$0xff]
    %v503 = vld [vmem:[#allocation7 + $0xb8c] sm:$0xff]
    %v504 = vld [vmem:[#allocation7 + $0xb94] sm:$0xff]
    %v505 = vld [vmem:[#allocation7 + $0xb9c] sm:$0xff]
    %v506 = vld [vmem:[#allocation7 + $0xba4] sm:$0xff]
    %v507 = vld [vmem:[#allocation7 + $0xbac] sm:$0xff]
    %v508 = vld [vmem:[#allocation7 + $0xbb4] sm:$0xff]
    %v509 = vld [vmem:[#allocation7 + $0xbbc] sm:$0xff]
    %v510 = vld [vmem:[#allocation7 + $0xbc4] sm:$0xff]
    %v511 = vld [vmem:[#allocation7 + $0xbcc] sm:$0xff]
    %v512 = vld [vmem:[#allocation7 + $0xbd4] sm:$0xff]
    %v513 = vld [vmem:[#allocation7 + $0xbdc] sm:$0xff]
    %v514 = vld [vmem:[#allocation7 + $0xbe4] sm:$0xff]
    %v515 = vld [vmem:[#allocation7 + $0xbec] sm:$0xff]
    %v516 = vld [vmem:[#allocation7 + $0xbf4] sm:$0xff]
    %v517 = vld [vmem:[#allocation7 + $0xbfc] sm:$0xff]
    %v518 = vld [vmem:[#allocation7 + $0xc04] sm:$0xff]
    %v519 = vld [vmem:[#allocation7 + $0xc0c] sm:$0xff]
    %v520 = vld [vmem:[#allocation7 + $0xc14] sm:$0xff]
    %v521 = vld [vmem:[#allocation7 + $0xc1c] sm:$0xff]
    %v522 = vld [vmem:[#allocation7 + $0xc24] sm:$0xff]
    %v523 = vld [vmem:[#allocation7 + $0xc2c] sm:$0xff]
    %v524 = vld [vmem:[#allocation7 + $0xc34] sm:$0xff]
    %v525 = vld [vmem:[#allocation7 + $0xc3c] sm:$0xf]
    %v526 = vld [vmem:[#allocation9] sm:$0xff]
    %v527 = vld [vmem:[#allocation9 + $0x8] sm:$0xff]
    %v528 = vld [vmem:[#allocation9 + $0x10] sm:$0xff]
    %v529 = vld [vmem:[#allocation9 + $0x18] sm:$0xff]
    %v530 = vld [vmem:[#allocation9 + $0x20] sm:$0xff]
    %v531 = vld [vmem:[#allocation9 + $0x28] sm:$0xff]
    %v532 = vld [vmem:[#allocation9 + $0x30] sm:$0x1]
    %v540 = vperm.slane %v526, 0
    %v541 = vperm.slane %v526, 1
    %v542 = vperm.slane %v526, 2
    %v543 = vperm.slane %v526, 3
    %v544 = vperm.slane %v526, 4
    %v545 = vperm.slane %v526, 5
    %v546 = vperm.slane %v526, 6
    %v547 = vperm.slane %v526, 7
    %v548 = vperm.slane %v527, 0
    %v549 = vperm.slane %v527, 1
    %v550 = vperm.slane %v527, 2
    %v551 = vperm.slane %v527, 3
    %v552 = vperm.slane %v527, 4
    %v553 = vperm.slane %v527, 5
    %v554 = vperm.slane %v527, 6
    %v555 = vperm.slane %v527, 7
    %v556 = vperm.slane %v528, 0
    %v557 = vperm.slane %v528, 1
    %v558 = vperm.slane %v528, 2
    %v559 = vperm.slane %v528, 3
    %v560 = vperm.slane %v528, 4
    %v561 = vperm.slane %v528, 5
    %v562 = vperm.slane %v528, 6
    %v563 = vperm.slane %v528, 7
    %v564 = vperm.slane %v529, 0
    %v565 = vperm.slane %v529, 1
    %v566 = vperm.slane %v529, 2
    %v567 = vperm.slane %v529, 3
    %v568 = vperm.slane %v529, 4
    %v569 = vperm.slane %v529, 5
    %v570 = vperm.slane %v529, 6
    %v571 = vperm.slane %v529, 7
    %v572 = vperm.slane %v530, 0
    %v573 = vperm.slane %v530, 1
    %v574 = vperm.slane %v530, 2
    %v575 = vperm.slane %v530, 3
    %v576 = vperm.slane %v530, 4
    %v577 = vperm.slane %v530, 5
    %v578 = vperm.slane %v530, 6
    %v579 = vperm.slane %v530, 7
    %v580 = vperm.slane %v531, 0
    %v581 = vperm.slane %v531, 1
    %v582 = vperm.slane %v531, 2
    %v583 = vperm.slane %v531, 3
    %v584 = vperm.slane %v531, 4
    %v585 = vperm.slane %v531, 5
    %v586 = vperm.slane %v531, 6
    %v587 = vperm.slane %v531, 7
    %v588 = vperm.slane %v532, 0
    %v1038 = vunpack.c.l.b16 %v126
    %v1039 = vunpack.c.h.b16 %v126
    %v1040 = vunpack.c.l.b16 %v127
    %v1041 = vunpack.c.h.b16 %v127
    %v1042 = vunpack.c.l.b16 %v128
    %v1043 = vunpack.c.h.b16 %v128
    %v1044 = vunpack.c.l.b16 %v129
    %v1045 = vunpack.c.h.b16 %v129
    %v1046 = vunpack.c.l.b16 %v130
    %v1047 = vunpack.c.h.b16 %v130
    %v1048 = vunpack.c.l.b16 %v131
    %v1049 = vunpack.c.h.b16 %v131
    %v1050 = vunpack.c.l.b16 %v132
    %v1051 = vunpack.c.h.b16 %v132
    %v1052 = vunpack.c.l.b16 %v133
    %v1053 = vunpack.c.h.b16 %v133
    %v1054 = vunpack.c.l.b16 %v134
    %v1055 = vunpack.c.h.b16 %v134
    %v1056 = vunpack.c.l.b16 %v135
    %v1057 = vunpack.c.h.b16 %v135
    %v1058 = vunpack.c.l.b16 %v136
    %v1059 = vunpack.c.h.b16 %v136
    %v1060 = vunpack.c.l.b16 %v137
    %v1061 = vunpack.c.h.b16 %v137
    %v1062 = vunpack.c.l.b16 %v138
    %v1063 = vunpack.c.h.b16 %v138
    %v1064 = vunpack.c.l.b16 %v139
    %v1065 = vunpack.c.h.b16 %v139
    %v1066 = vunpack.c.l.b16 %v140
    %v1067 = vunpack.c.h.b16 %v140
    %v1068 = vunpack.c.l.b16 %v141
    %v1069 = vunpack.c.h.b16 %v141
    %v1070 = vunpack.c.l.b16 %v142
    %v1071 = vunpack.c.h.b16 %v142
    %v1072 = vunpack.c.l.b16 %v143
    %v1073 = vunpack.c.h.b16 %v143
    %v1074 = vunpack.c.l.b16 %v144
    %v1075 = vunpack.c.h.b16 %v144
    %v1076 = vunpack.c.l.b16 %v145
    %v1077 = vunpack.c.h.b16 %v145
    %v1078 = vunpack.c.l.b16 %v146
    %v1079 = vunpack.c.h.b16 %v146
    %v1080 = vunpack.c.l.b16 %v147
    %v1081 = vunpack.c.h.b16 %v147
    %v1082 = vunpack.c.l.b16 %v148
    %v1083 = vunpack.c.h.b16 %v148
    %v1084 = vunpack.c.l.b16 %v149
    %v1085 = vunpack.c.h.b16 %v149
    %v1086 = vunpack.c.l.b16 %v150
    %v1087 = vunpack.c.l.b16 %v151
    %v1088 = vunpack.c.h.b16 %v151
    %v1089 = vunpack.c.l.b16 %v152
    %v1090 = vunpack.c.h.b16 %v152
    %v1091 = vunpack.c.l.b16 %v153
    %v1092 = vunpack.c.h.b16 %v153
    %v1093 = vunpack.c.l.b16 %v154
    %v1094 = vunpack.c.h.b16 %v154
    %v1095 = vunpack.c.l.b16 %v155
    %v1096 = vunpack.c.h.b16 %v155
    %v1097 = vunpack.c.l.b16 %v156
    %v1098 = vunpack.c.h.b16 %v156
    %v1099 = vunpack.c.l.b16 %v157
    %v1100 = vunpack.c.h.b16 %v157
    %v1101 = vunpack.c.l.b16 %v158
    %v1102 = vunpack.c.h.b16 %v158
    %v1103 = vunpack.c.l.b16 %v159
    %v1104 = vunpack.c.h.b16 %v159
    %v1105 = vunpack.c.l.b16 %v160
    %v1106 = vunpack.c.h.b16 %v160
    %v1107 = vunpack.c.l.b16 %v161
    %v1108 = vunpack.c.h.b16 %v161
    %v1109 = vunpack.c.l.b16 %v162
    %v1110 = vunpack.c.h.b16 %v162
    %v1111 = vunpack.c.l.b16 %v163
    %v1112 = vunpack.c.h.b16 %v163
    %v1113 = vunpack.c.l.b16 %v164
    %v1114 = vunpack.c.h.b16 %v164
    %v1115 = vunpack.c.l.b16 %v165
    %v1116 = vunpack.c.h.b16 %v165
    %v1117 = vunpack.c.l.b16 %v166
    %v1118 = vunpack.c.h.b16 %v166
    %v1119 = vunpack.c.l.b16 %v167
    %v1120 = vunpack.c.h.b16 %v167
    %v1121 = vunpack.c.l.b16 %v168
    %v1122 = vunpack.c.h.b16 %v168
    %v1123 = vunpack.c.l.b16 %v169
    %v1124 = vunpack.c.h.b16 %v169
    %v1125 = vunpack.c.l.b16 %v170
    %v1126 = vunpack.c.h.b16 %v170
    %v1127 = vunpack.c.l.b16 %v171
    %v1128 = vunpack.c.h.b16 %v171
    %v1129 = vunpack.c.l.b16 %v172
    %v1130 = vunpack.c.h.b16 %v172
    %v1131 = vunpack.c.l.b16 %v173
    %v1132 = vunpack.c.h.b16 %v173
    %v1133 = vunpack.c.l.b16 %v174
    %v1134 = vunpack.c.h.b16 %v174
    %v1135 = vunpack.c.l.b16 %v175
    %v1136 = vunpack.c.l.b16 %v176
    %v1137 = vunpack.c.h.b16 %v176
    %v1138 = vunpack.c.l.b16 %v177
    %v1139 = vunpack.c.h.b16 %v177
    %v1140 = vunpack.c.l.b16 %v178
    %v1141 = vunpack.c.h.b16 %v178
    %v1142 = vunpack.c.l.b16 %v179
    %v1143 = vunpack.c.h.b16 %v179
    %v1144 = vunpack.c.l.b16 %v180
    %v1145 = vunpack.c.h.b16 %v180
    %v1146 = vunpack.c.l.b16 %v181
    %v1147 = vunpack.c.h.b16 %v181
    %v1148 = vunpack.c.l.b16 %v182
    %v1149 = vunpack.c.h.b16 %v182
    %v1150 = vunpack.c.l.b16 %v183
    %v1151 = vunpack.c.h.b16 %v183
    %v1152 = vunpack.c.l.b16 %v184
    %v1153 = vunpack.c.h.b16 %v184
    %v1154 = vunpack.c.l.b16 %v185
    %v1155 = vunpack.c.h.b16 %v185
    %v1156 = vunpack.c.l.b16 %v186
    %v1157 = vunpack.c.h.b16 %v186
    %v1158 = vunpack.c.l.b16 %v187
    %v1159 = vunpack.c.h.b16 %v187
    %v1160 = vunpack.c.l.b16 %v188
    %v1161 = vunpack.c.h.b16 %v188
    %v1162 = vunpack.c.l.b16 %v189
    %v1163 = vunpack.c.h.b16 %v189
    %v1164 = vunpack.c.l.b16 %v190
    %v1165 = vunpack.c.h.b16 %v190
    %v1166 = vunpack.c.l.b16 %v191
    %v1167 = vunpack.c.h.b16 %v191
    %v1168 = vunpack.c.l.b16 %v192
    %v1169 = vunpack.c.h.b16 %v192
    %v1170 = vunpack.c.l.b16 %v193
    %v1171 = vunpack.c.h.b16 %v193
    %v1172 = vunpack.c.l.b16 %v194
    %v1173 = vunpack.c.h.b16 %v194
    %v1174 = vunpack.c.l.b16 %v195
    %v1175 = vunpack.c.h.b16 %v195
    %v1176 = vunpack.c.l.b16 %v196
    %v1177 = vunpack.c.h.b16 %v196
    %v1178 = vunpack.c.l.b16 %v197
    %v1179 = vunpack.c.h.b16 %v197
    %v1180 = vunpack.c.l.b16 %v198
    %v1181 = vunpack.c.h.b16 %v198
    %v1182 = vunpack.c.l.b16 %v199
    %v1183 = vunpack.c.h.b16 %v199
    %v1184 = vunpack.c.l.b16 %v200
    %v1185 = vunpack.c.l.b16 %v201
    %v1186 = vunpack.c.h.b16 %v201
    %v1187 = vunpack.c.l.b16 %v202
    %v1188 = vunpack.c.h.b16 %v202
    %v1189 = vunpack.c.l.b16 %v203
    %v1190 = vunpack.c.h.b16 %v203
    %v1191 = vunpack.c.l.b16 %v204
    %v1192 = vunpack.c.h.b16 %v204
    %v1193 = vunpack.c.l.b16 %v205
    %v1194 = vunpack.c.h.b16 %v205
    %v1195 = vunpack.c.l.b16 %v206
    %v1196 = vunpack.c.h.b16 %v206
    %v1197 = vunpack.c.l.b16 %v207
    %v1198 = vunpack.c.h.b16 %v207
    %v1199 = vunpack.c.l.b16 %v208
    %v1200 = vunpack.c.h.b16 %v208
    %v1201 = vunpack.c.l.b16 %v209
    %v1202 = vunpack.c.h.b16 %v209
    %v1203 = vunpack.c.l.b16 %v210
    %v1204 = vunpack.c.h.b16 %v210
    %v1205 = vunpack.c.l.b16 %v211
    %v1206 = vunpack.c.h.b16 %v211
    %v1207 = vunpack.c.l.b16 %v212
    %v1208 = vunpack.c.h.b16 %v212
    %v1209 = vunpack.c.l.b16 %v213
    %v1210 = vunpack.c.h.b16 %v213
    %v1211 = vunpack.c.l.b16 %v214
    %v1212 = vunpack.c.h.b16 %v214
    %v1213 = vunpack.c.l.b16 %v215
    %v1214 = vunpack.c.h.b16 %v215
    %v1215 = vunpack.c.l.b16 %v216
    %v1216 = vunpack.c.h.b16 %v216
    %v1217 = vunpack.c.l.b16 %v217
    %v1218 = vunpack.c.h.b16 %v217
    %v1219 = vunpack.c.l.b16 %v218
    %v1220 = vunpack.c.h.b16 %v218
    %v1221 = vunpack.c.l.b16 %v219
    %v1222 = vunpack.c.h.b16 %v219
    %v1223 = vunpack.c.l.b16 %v220
    %v1224 = vunpack.c.h.b16 %v220
    %v1225 = vunpack.c.l.b16 %v221
    %v1226 = vunpack.c.h.b16 %v221
    %v1227 = vunpack.c.l.b16 %v222
    %v1228 = vunpack.c.h.b16 %v222
    %v1229 = vunpack.c.l.b16 %v223
    %v1230 = vunpack.c.h.b16 %v223
    %v1231 = vunpack.c.l.b16 %v224
    %v1232 = vunpack.c.h.b16 %v224
    %v1233 = vunpack.c.l.b16 %v225
    %v1234 = vunpack.c.l.b16 %v226
    %v1235 = vunpack.c.h.b16 %v226
    %v1236 = vunpack.c.l.b16 %v227
    %v1237 = vunpack.c.h.b16 %v227
    %v1238 = vunpack.c.l.b16 %v228
    %v1239 = vunpack.c.h.b16 %v228
    %v1240 = vunpack.c.l.b16 %v229
    %v1241 = vunpack.c.h.b16 %v229
    %v1242 = vunpack.c.l.b16 %v230
    %v1243 = vunpack.c.h.b16 %v230
    %v1244 = vunpack.c.l.b16 %v231
    %v1245 = vunpack.c.h.b16 %v231
    %v1246 = vunpack.c.l.b16 %v232
    %v1247 = vunpack.c.h.b16 %v232
    %v1248 = vunpack.c.l.b16 %v233
    %v1249 = vunpack.c.h.b16 %v233
    %v1250 = vunpack.c.l.b16 %v234
    %v1251 = vunpack.c.h.b16 %v234
    %v1252 = vunpack.c.l.b16 %v235
    %v1253 = vunpack.c.h.b16 %v235
    %v1254 = vunpack.c.l.b16 %v236
    %v1255 = vunpack.c.h.b16 %v236
    %v1256 = vunpack.c.l.b16 %v237
    %v1257 = vunpack.c.h.b16 %v237
    %v1258 = vunpack.c.l.b16 %v238
    %v1259 = vunpack.c.h.b16 %v238
    %v1260 = vunpack.c.l.b16 %v239
    %v1261 = vunpack.c.h.b16 %v239
    %v1262 = vunpack.c.l.b16 %v240
    %v1263 = vunpack.c.h.b16 %v240
    %v1264 = vunpack.c.l.b16 %v241
    %v1265 = vunpack.c.h.b16 %v241
    %v1266 = vunpack.c.l.b16 %v242
    %v1267 = vunpack.c.h.b16 %v242
    %v1268 = vunpack.c.l.b16 %v243
    %v1269 = vunpack.c.h.b16 %v243
    %v1270 = vunpack.c.l.b16 %v244
    %v1271 = vunpack.c.h.b16 %v244
    %v1272 = vunpack.c.l.b16 %v245
    %v1273 = vunpack.c.h.b16 %v245
    %v1274 = vunpack.c.l.b16 %v246
    %v1275 = vunpack.c.h.b16 %v246
    %v1276 = vunpack.c.l.b16 %v247
    %v1277 = vunpack.c.h.b16 %v247
    %v1278 = vunpack.c.l.b16 %v248
    %v1279 = vunpack.c.h.b16 %v248
    %v1280 = vunpack.c.l.b16 %v249
    %v1281 = vunpack.c.h.b16 %v249
    %v1282 = vunpack.c.l.b16 %v250
    %v1283 = vunpack.c.l.b16 %v251
    %v1284 = vunpack.c.h.b16 %v251
    %v1285 = vunpack.c.l.b16 %v252
    %v1286 = vunpack.c.h.b16 %v252
    %v1287 = vunpack.c.l.b16 %v253
    %v1288 = vunpack.c.h.b16 %v253
    %v1289 = vunpack.c.l.b16 %v254
    %v1290 = vunpack.c.h.b16 %v254
    %v1291 = vunpack.c.l.b16 %v255
    %v1292 = vunpack.c.h.b16 %v255
    %v1293 = vunpack.c.l.b16 %v256
    %v1294 = vunpack.c.h.b16 %v256
    %v1295 = vunpack.c.l.b16 %v257
    %v1296 = vunpack.c.h.b16 %v257
    %v1297 = vunpack.c.l.b16 %v258
    %v1298 = vunpack.c.h.b16 %v258
    %v1299 = vunpack.c.l.b16 %v259
    %v1300 = vunpack.c.h.b16 %v259
    %v1301 = vunpack.c.l.b16 %v260
    %v1302 = vunpack.c.h.b16 %v260
    %v1303 = vunpack.c.l.b16 %v261
    %v1304 = vunpack.c.h.b16 %v261
    %v1305 = vunpack.c.l.b16 %v262
    %v1306 = vunpack.c.h.b16 %v262
    %v1307 = vunpack.c.l.b16 %v263
    %v1308 = vunpack.c.h.b16 %v263
    %v1309 = vunpack.c.l.b16 %v264
    %v1310 = vunpack.c.h.b16 %v264
    %v1311 = vunpack.c.l.b16 %v265
    %v1312 = vunpack.c.h.b16 %v265
    %v1313 = vunpack.c.l.b16 %v266
    %v1314 = vunpack.c.h.b16 %v266
    %v1315 = vunpack.c.l.b16 %v267
    %v1316 = vunpack.c.h.b16 %v267
    %v1317 = vunpack.c.l.b16 %v268
    %v1318 = vunpack.c.h.b16 %v268
    %v1319 = vunpack.c.l.b16 %v269
    %v1320 = vunpack.c.h.b16 %v269
    %v1321 = vunpack.c.l.b16 %v270
    %v1322 = vunpack.c.h.b16 %v270
    %v1323 = vunpack.c.l.b16 %v271
    %v1324 = vunpack.c.h.b16 %v271
    %v1325 = vunpack.c.l.b16 %v272
    %v1326 = vunpack.c.h.b16 %v272
    %v1327 = vunpack.c.l.b16 %v273
    %v1328 = vunpack.c.h.b16 %v273
    %v1329 = vunpack.c.l.b16 %v274
    %v1330 = vunpack.c.h.b16 %v274
    %v1331 = vunpack.c.l.b16 %v275
    %v1332 = vunpack.c.l.b16 %v276
    %v1333 = vunpack.c.h.b16 %v276
    %v1334 = vunpack.c.l.b16 %v277
    %v1335 = vunpack.c.h.b16 %v277
    %v1336 = vunpack.c.l.b16 %v278
    %v1337 = vunpack.c.h.b16 %v278
    %v1338 = vunpack.c.l.b16 %v279
    %v1339 = vunpack.c.h.b16 %v279
    %v1340 = vunpack.c.l.b16 %v280
    %v1341 = vunpack.c.h.b16 %v280
    %v1342 = vunpack.c.l.b16 %v281
    %v1343 = vunpack.c.h.b16 %v281
    %v1344 = vunpack.c.l.b16 %v282
    %v1345 = vunpack.c.h.b16 %v282
    %v1346 = vunpack.c.l.b16 %v283
    %v1347 = vunpack.c.h.b16 %v283
    %v1348 = vunpack.c.l.b16 %v284
    %v1349 = vunpack.c.h.b16 %v284
    %v1350 = vunpack.c.l.b16 %v285
    %v1351 = vunpack.c.h.b16 %v285
    %v1352 = vunpack.c.l.b16 %v286
    %v1353 = vunpack.c.h.b16 %v286
    %v1354 = vunpack.c.l.b16 %v287
    %v1355 = vunpack.c.h.b16 %v287
    %v1356 = vunpack.c.l.b16 %v288
    %v1357 = vunpack.c.h.b16 %v288
    %v1358 = vunpack.c.l.b16 %v289
    %v1359 = vunpack.c.h.b16 %v289
    %v1360 = vunpack.c.l.b16 %v290
    %v1361 = vunpack.c.h.b16 %v290
    %v1362 = vunpack.c.l.b16 %v291
    %v1363 = vunpack.c.h.b16 %v291
    %v1364 = vunpack.c.l.b16 %v292
    %v1365 = vunpack.c.h.b16 %v292
    %v1366 = vunpack.c.l.b16 %v293
    %v1367 = vunpack.c.h.b16 %v293
    %v1368 = vunpack.c.l.b16 %v294
    %v1369 = vunpack.c.h.b16 %v294
    %v1370 = vunpack.c.l.b16 %v295
    %v1371 = vunpack.c.h.b16 %v295
    %v1372 = vunpack.c.l.b16 %v296
    %v1373 = vunpack.c.h.b16 %v296
    %v1374 = vunpack.c.l.b16 %v297
    %v1375 = vunpack.c.h.b16 %v297
    %v1376 = vunpack.c.l.b16 %v298
    %v1377 = vunpack.c.h.b16 %v298
    %v1378 = vunpack.c.l.b16 %v299
    %v1379 = vunpack.c.h.b16 %v299
    %v1380 = vunpack.c.l.b16 %v300
    %v1381 = vunpack.c.l.b16 %v301
    %v1382 = vunpack.c.h.b16 %v301
    %v1383 = vunpack.c.l.b16 %v302
    %v1384 = vunpack.c.h.b16 %v302
    %v1385 = vunpack.c.l.b16 %v303
    %v1386 = vunpack.c.h.b16 %v303
    %v1387 = vunpack.c.l.b16 %v304
    %v1388 = vunpack.c.h.b16 %v304
    %v1389 = vunpack.c.l.b16 %v305
    %v1390 = vunpack.c.h.b16 %v305
    %v1391 = vunpack.c.l.b16 %v306
    %v1392 = vunpack.c.h.b16 %v306
    %v1393 = vunpack.c.l.b16 %v307
    %v1394 = vunpack.c.h.b16 %v307
    %v1395 = vunpack.c.l.b16 %v308
    %v1396 = vunpack.c.h.b16 %v308
    %v1397 = vunpack.c.l.b16 %v309
    %v1398 = vunpack.c.h.b16 %v309
    %v1399 = vunpack.c.l.b16 %v310
    %v1400 = vunpack.c.h.b16 %v310
    %v1401 = vunpack.c.l.b16 %v311
    %v1402 = vunpack.c.h.b16 %v311
    %v1403 = vunpack.c.l.b16 %v312
    %v1404 = vunpack.c.h.b16 %v312
    %v1405 = vunpack.c.l.b16 %v313
    %v1406 = vunpack.c.h.b16 %v313
    %v1407 = vunpack.c.l.b16 %v314
    %v1408 = vunpack.c.h.b16 %v314
    %v1409 = vunpack.c.l.b16 %v315
    %v1410 = vunpack.c.h.b16 %v315
    %v1411 = vunpack.c.l.b16 %v316
    %v1412 = vunpack.c.h.b16 %v316
    %v1413 = vunpack.c.l.b16 %v317
    %v1414 = vunpack.c.h.b16 %v317
    %v1415 = vunpack.c.l.b16 %v318
    %v1416 = vunpack.c.h.b16 %v318
    %v1417 = vunpack.c.l.b16 %v319
    %v1418 = vunpack.c.h.b16 %v319
    %v1419 = vunpack.c.l.b16 %v320
    %v1420 = vunpack.c.h.b16 %v320
    %v1421 = vunpack.c.l.b16 %v321
    %v1422 = vunpack.c.h.b16 %v321
    %v1423 = vunpack.c.l.b16 %v322
    %v1424 = vunpack.c.h.b16 %v322
    %v1425 = vunpack.c.l.b16 %v323
    %v1426 = vunpack.c.h.b16 %v323
    %v1427 = vunpack.c.l.b16 %v324
    %v1428 = vunpack.c.h.b16 %v324
    %v1429 = vunpack.c.l.b16 %v325
    %v1430 = vunpack.c.l.b16 %v326
    %v1431 = vunpack.c.h.b16 %v326
    %v1432 = vunpack.c.l.b16 %v327
    %v1433 = vunpack.c.h.b16 %v327
    %v1434 = vunpack.c.l.b16 %v328
    %v1435 = vunpack.c.h.b16 %v328
    %v1436 = vunpack.c.l.b16 %v329
    %v1437 = vunpack.c.h.b16 %v329
    %v1438 = vunpack.c.l.b16 %v330
    %v1439 = vunpack.c.h.b16 %v330
    %v1440 = vunpack.c.l.b16 %v331
    %v1441 = vunpack.c.h.b16 %v331
    %v1442 = vunpack.c.l.b16 %v332
    %v1443 = vunpack.c.h.b16 %v332
    %v1444 = vunpack.c.l.b16 %v333
    %v1445 = vunpack.c.h.b16 %v333
    %v1446 = vunpack.c.l.b16 %v334
    %v1447 = vunpack.c.h.b16 %v334
    %v1448 = vunpack.c.l.b16 %v335
    %v1449 = vunpack.c.h.b16 %v335
    %v1450 = vunpack.c.l.b16 %v336
    %v1451 = vunpack.c.h.b16 %v336
    %v1452 = vunpack.c.l.b16 %v337
    %v1453 = vunpack.c.h.b16 %v337
    %v1454 = vunpack.c.l.b16 %v338
    %v1455 = vunpack.c.h.b16 %v338
    %v1456 = vunpack.c.l.b16 %v339
    %v1457 = vunpack.c.h.b16 %v339
    %v1458 = vunpack.c.l.b16 %v340
    %v1459 = vunpack.c.h.b16 %v340
    %v1460 = vunpack.c.l.b16 %v341
    %v1461 = vunpack.c.h.b16 %v341
    %v1462 = vunpack.c.l.b16 %v342
    %v1463 = vunpack.c.h.b16 %v342
    %v1464 = vunpack.c.l.b16 %v343
    %v1465 = vunpack.c.h.b16 %v343
    %v1466 = vunpack.c.l.b16 %v344
    %v1467 = vunpack.c.h.b16 %v344
    %v1468 = vunpack.c.l.b16 %v345
    %v1469 = vunpack.c.h.b16 %v345
    %v1470 = vunpack.c.l.b16 %v346
    %v1471 = vunpack.c.h.b16 %v346
    %v1472 = vunpack.c.l.b16 %v347
    %v1473 = vunpack.c.h.b16 %v347
    %v1474 = vunpack.c.l.b16 %v348
    %v1475 = vunpack.c.h.b16 %v348
    %v1476 = vunpack.c.l.b16 %v349
    %v1477 = vunpack.c.h.b16 %v349
    %v1478 = vunpack.c.l.b16 %v350
    %v1479 = vunpack.c.l.b16 %v351
    %v1480 = vunpack.c.h.b16 %v351
    %v1481 = vunpack.c.l.b16 %v352
    %v1482 = vunpack.c.h.b16 %v352
    %v1483 = vunpack.c.l.b16 %v353
    %v1484 = vunpack.c.h.b16 %v353
    %v1485 = vunpack.c.l.b16 %v354
    %v1486 = vunpack.c.h.b16 %v354
    %v1487 = vunpack.c.l.b16 %v355
    %v1488 = vunpack.c.h.b16 %v355
    %v1489 = vunpack.c.l.b16 %v356
    %v1490 = vunpack.c.h.b16 %v356
    %v1491 = vunpack.c.l.b16 %v357
    %v1492 = vunpack.c.h.b16 %v357
    %v1493 = vunpack.c.l.b16 %v358
    %v1494 = vunpack.c.h.b16 %v358
    %v1495 = vunpack.c.l.b16 %v359
    %v1496 = vunpack.c.h.b16 %v359
    %v1497 = vunpack.c.l.b16 %v360
    %v1498 = vunpack.c.h.b16 %v360
    %v1499 = vunpack.c.l.b16 %v361
    %v1500 = vunpack.c.h.b16 %v361
    %v1501 = vunpack.c.l.b16 %v362
    %v1502 = vunpack.c.h.b16 %v362
    %v1503 = vunpack.c.l.b16 %v363
    %v1504 = vunpack.c.h.b16 %v363
    %v1505 = vunpack.c.l.b16 %v364
    %v1506 = vunpack.c.h.b16 %v364
    %v1507 = vunpack.c.l.b16 %v365
    %v1508 = vunpack.c.h.b16 %v365
    %v1509 = vunpack.c.l.b16 %v366
    %v1510 = vunpack.c.h.b16 %v366
    %v1511 = vunpack.c.l.b16 %v367
    %v1512 = vunpack.c.h.b16 %v367
    %v1513 = vunpack.c.l.b16 %v368
    %v1514 = vunpack.c.h.b16 %v368
    %v1515 = vunpack.c.l.b16 %v369
    %v1516 = vunpack.c.h.b16 %v369
    %v1517 = vunpack.c.l.b16 %v370
    %v1518 = vunpack.c.h.b16 %v370
    %v1519 = vunpack.c.l.b16 %v371
    %v1520 = vunpack.c.h.b16 %v371
    %v1521 = vunpack.c.l.b16 %v372
    %v1522 = vunpack.c.h.b16 %v372
    %v1523 = vunpack.c.l.b16 %v373
    %v1524 = vunpack.c.h.b16 %v373
    %v1525 = vunpack.c.l.b16 %v374
    %v1526 = vunpack.c.h.b16 %v374
    %v1527 = vunpack.c.l.b16 %v375
    %v1528 = vunpack.c.l.b16 %v376
    %v1529 = vunpack.c.h.b16 %v376
    %v1530 = vunpack.c.l.b16 %v377
    %v1531 = vunpack.c.h.b16 %v377
    %v1532 = vunpack.c.l.b16 %v378
    %v1533 = vunpack.c.h.b16 %v378
    %v1534 = vunpack.c.l.b16 %v379
    %v1535 = vunpack.c.h.b16 %v379
    %v1536 = vunpack.c.l.b16 %v380
    %v1537 = vunpack.c.h.b16 %v380
    %v1538 = vunpack.c.l.b16 %v381
    %v1539 = vunpack.c.h.b16 %v381
    %v1540 = vunpack.c.l.b16 %v382
    %v1541 = vunpack.c.h.b16 %v382
    %v1542 = vunpack.c.l.b16 %v383
    %v1543 = vunpack.c.h.b16 %v383
    %v1544 = vunpack.c.l.b16 %v384
    %v1545 = vunpack.c.h.b16 %v384
    %v1546 = vunpack.c.l.b16 %v385
    %v1547 = vunpack.c.h.b16 %v385
    %v1548 = vunpack.c.l.b16 %v386
    %v1549 = vunpack.c.h.b16 %v386
    %v1550 = vunpack.c.l.b16 %v387
    %v1551 = vunpack.c.h.b16 %v387
    %v1552 = vunpack.c.l.b16 %v388
    %v1553 = vunpack.c.h.b16 %v388
    %v1554 = vunpack.c.l.b16 %v389
    %v1555 = vunpack.c.h.b16 %v389
    %v1556 = vunpack.c.l.b16 %v390
    %v1557 = vunpack.c.h.b16 %v390
    %v1558 = vunpack.c.l.b16 %v391
    %v1559 = vunpack.c.h.b16 %v391
    %v1560 = vunpack.c.l.b16 %v392
    %v1561 = vunpack.c.h.b16 %v392
    %v1562 = vunpack.c.l.b16 %v393
    %v1563 = vunpack.c.h.b16 %v393
    %v1564 = vunpack.c.l.b16 %v394
    %v1565 = vunpack.c.h.b16 %v394
    %v1566 = vunpack.c.l.b16 %v395
    %v1567 = vunpack.c.h.b16 %v395
    %v1568 = vunpack.c.l.b16 %v396
    %v1569 = vunpack.c.h.b16 %v396
    %v1570 = vunpack.c.l.b16 %v397
    %v1571 = vunpack.c.h.b16 %v397
    %v1572 = vunpack.c.l.b16 %v398
    %v1573 = vunpack.c.h.b16 %v398
    %v1574 = vunpack.c.l.b16 %v399
    %v1575 = vunpack.c.h.b16 %v399
    %v1576 = vunpack.c.l.b16 %v400
    %v1577 = vunpack.c.l.b16 %v401
    %v1578 = vunpack.c.h.b16 %v401
    %v1579 = vunpack.c.l.b16 %v402
    %v1580 = vunpack.c.h.b16 %v402
    %v1581 = vunpack.c.l.b16 %v403
    %v1582 = vunpack.c.h.b16 %v403
    %v1583 = vunpack.c.l.b16 %v404
    %v1584 = vunpack.c.h.b16 %v404
    %v1585 = vunpack.c.l.b16 %v405
    %v1586 = vunpack.c.h.b16 %v405
    %v1587 = vunpack.c.l.b16 %v406
    %v1588 = vunpack.c.h.b16 %v406
    %v1589 = vunpack.c.l.b16 %v407
    %v1590 = vunpack.c.h.b16 %v407
    %v1591 = vunpack.c.l.b16 %v408
    %v1592 = vunpack.c.h.b16 %v408
    %v1593 = vunpack.c.l.b16 %v409
    %v1594 = vunpack.c.h.b16 %v409
    %v1595 = vunpack.c.l.b16 %v410
    %v1596 = vunpack.c.h.b16 %v410
    %v1597 = vunpack.c.l.b16 %v411
    %v1598 = vunpack.c.h.b16 %v411
    %v1599 = vunpack.c.l.b16 %v412
    %v1600 = vunpack.c.h.b16 %v412
    %v1601 = vunpack.c.l.b16 %v413
    %v1602 = vunpack.c.h.b16 %v413
    %v1603 = vunpack.c.l.b16 %v414
    %v1604 = vunpack.c.h.b16 %v414
    %v1605 = vunpack.c.l.b16 %v415
    %v1606 = vunpack.c.h.b16 %v415
    %v1607 = vunpack.c.l.b16 %v416
    %v1608 = vunpack.c.h.b16 %v416
    %v1609 = vunpack.c.l.b16 %v417
    %v1610 = vunpack.c.h.b16 %v417
    %v1611 = vunpack.c.l.b16 %v418
    %v1612 = vunpack.c.h.b16 %v418
    %v1613 = vunpack.c.l.b16 %v419
    %v1614 = vunpack.c.h.b16 %v419
    %v1615 = vunpack.c.l.b16 %v420
    %v1616 = vunpack.c.h.b16 %v420
    %v1617 = vunpack.c.l.b16 %v421
    %v1618 = vunpack.c.h.b16 %v421
    %v1619 = vunpack.c.l.b16 %v422
    %v1620 = vunpack.c.h.b16 %v422
    %v1621 = vunpack.c.l.b16 %v423
    %v1622 = vunpack.c.h.b16 %v423
    %v1623 = vunpack.c.l.b16 %v424
    %v1624 = vunpack.c.h.b16 %v424
    %v1625 = vunpack.c.l.b16 %v425
    %v1626 = vunpack.c.l.b16 %v426
    %v1627 = vunpack.c.h.b16 %v426
    %v1628 = vunpack.c.l.b16 %v427
    %v1629 = vunpack.c.h.b16 %v427
    %v1630 = vunpack.c.l.b16 %v428
    %v1631 = vunpack.c.h.b16 %v428
    %v1632 = vunpack.c.l.b16 %v429
    %v1633 = vunpack.c.h.b16 %v429
    %v1634 = vunpack.c.l.b16 %v430
    %v1635 = vunpack.c.h.b16 %v430
    %v1636 = vunpack.c.l.b16 %v431
    %v1637 = vunpack.c.h.b16 %v431
    %v1638 = vunpack.c.l.b16 %v432
    %v1639 = vunpack.c.h.b16 %v432
    %v1640 = vunpack.c.l.b16 %v433
    %v1641 = vunpack.c.h.b16 %v433
    %v1642 = vunpack.c.l.b16 %v434
    %v1643 = vunpack.c.h.b16 %v434
    %v1644 = vunpack.c.l.b16 %v435
    %v1645 = vunpack.c.h.b16 %v435
    %v1646 = vunpack.c.l.b16 %v436
    %v1647 = vunpack.c.h.b16 %v436
    %v1648 = vunpack.c.l.b16 %v437
    %v1649 = vunpack.c.h.b16 %v437
    %v1650 = vunpack.c.l.b16 %v438
    %v1651 = vunpack.c.h.b16 %v438
    %v1652 = vunpack.c.l.b16 %v439
    %v1653 = vunpack.c.h.b16 %v439
    %v1654 = vunpack.c.l.b16 %v440
    %v1655 = vunpack.c.h.b16 %v440
    %v1656 = vunpack.c.l.b16 %v441
    %v1657 = vunpack.c.h.b16 %v441
    %v1658 = vunpack.c.l.b16 %v442
    %v1659 = vunpack.c.h.b16 %v442
    %v1660 = vunpack.c.l.b16 %v443
    %v1661 = vunpack.c.h.b16 %v443
    %v1662 = vunpack.c.l.b16 %v444
    %v1663 = vunpack.c.h.b16 %v444
    %v1664 = vunpack.c.l.b16 %v445
    %v1665 = vunpack.c.h.b16 %v445
    %v1666 = vunpack.c.l.b16 %v446
    %v1667 = vunpack.c.h.b16 %v446
    %v1668 = vunpack.c.l.b16 %v447
    %v1669 = vunpack.c.h.b16 %v447
    %v1670 = vunpack.c.l.b16 %v448
    %v1671 = vunpack.c.h.b16 %v448
    %v1672 = vunpack.c.l.b16 %v449
    %v1673 = vunpack.c.h.b16 %v449
    %v1674 = vunpack.c.l.b16 %v450
    %v1675 = vunpack.c.l.b16 %v451
    %v1676 = vunpack.c.h.b16 %v451
    %v1677 = vunpack.c.l.b16 %v452
    %v1678 = vunpack.c.h.b16 %v452
    %v1679 = vunpack.c.l.b16 %v453
    %v1680 = vunpack.c.h.b16 %v453
    %v1681 = vunpack.c.l.b16 %v454
    %v1682 = vunpack.c.h.b16 %v454
    %v1683 = vunpack.c.l.b16 %v455
    %v1684 = vunpack.c.h.b16 %v455
    %v1685 = vunpack.c.l.b16 %v456
    %v1686 = vunpack.c.h.b16 %v456
    %v1687 = vunpack.c.l.b16 %v457
    %v1688 = vunpack.c.h.b16 %v457
    %v1689 = vunpack.c.l.b16 %v458
    %v1690 = vunpack.c.h.b16 %v458
    %v1691 = vunpack.c.l.b16 %v459
    %v1692 = vunpack.c.h.b16 %v459
    %v1693 = vunpack.c.l.b16 %v460
    %v1694 = vunpack.c.h.b16 %v460
    %v1695 = vunpack.c.l.b16 %v461
    %v1696 = vunpack.c.h.b16 %v461
    %v1697 = vunpack.c.l.b16 %v462
    %v1698 = vunpack.c.h.b16 %v462
    %v1699 = vunpack.c.l.b16 %v463
    %v1700 = vunpack.c.h.b16 %v463
    %v1701 = vunpack.c.l.b16 %v464
    %v1702 = vunpack.c.h.b16 %v464
    %v1703 = vunpack.c.l.b16 %v465
    %v1704 = vunpack.c.h.b16 %v465
    %v1705 = vunpack.c.l.b16 %v466
    %v1706 = vunpack.c.h.b16 %v466
    %v1707 = vunpack.c.l.b16 %v467
    %v1708 = vunpack.c.h.b16 %v467
    %v1709 = vunpack.c.l.b16 %v468
    %v1710 = vunpack.c.h.b16 %v468
    %v1711 = vunpack.c.l.b16 %v469
    %v1712 = vunpack.c.h.b16 %v469
    %v1713 = vunpack.c.l.b16 %v470
    %v1714 = vunpack.c.h.b16 %v470
    %v1715 = vunpack.c.l.b16 %v471
    %v1716 = vunpack.c.h.b16 %v471
    %v1717 = vunpack.c.l.b16 %v472
    %v1718 = vunpack.c.h.b16 %v472
    %v1719 = vunpack.c.l.b16 %v473
    %v1720 = vunpack.c.h.b16 %v473
    %v1721 = vunpack.c.l.b16 %v474
    %v1722 = vunpack.c.h.b16 %v474
    %v1723 = vunpack.c.l.b16 %v475
    %v1724 = vunpack.c.l.b16 %v476
    %v1725 = vunpack.c.h.b16 %v476
    %v1726 = vunpack.c.l.b16 %v477
    %v1727 = vunpack.c.h.b16 %v477
    %v1728 = vunpack.c.l.b16 %v478
    %v1729 = vunpack.c.h.b16 %v478
    %v1730 = vunpack.c.l.b16 %v479
    %v1731 = vunpack.c.h.b16 %v479
    %v1732 = vunpack.c.l.b16 %v480
    %v1733 = vunpack.c.h.b16 %v480
    %v1734 = vunpack.c.l.b16 %v481
    %v1735 = vunpack.c.h.b16 %v481
    %v1736 = vunpack.c.l.b16 %v482
    %v1737 = vunpack.c.h.b16 %v482
    %v1738 = vunpack.c.l.b16 %v483
    %v1739 = vunpack.c.h.b16 %v483
    %v1740 = vunpack.c.l.b16 %v484
    %v1741 = vunpack.c.h.b16 %v484
    %v1742 = vunpack.c.l.b16 %v485
    %v1743 = vunpack.c.h.b16 %v485
    %v1744 = vunpack.c.l.b16 %v486
    %v1745 = vunpack.c.h.b16 %v486
    %v1746 = vunpack.c.l.b16 %v487
    %v1747 = vunpack.c.h.b16 %v487
    %v1748 = vunpack.c.l.b16 %v488
    %v1749 = vunpack.c.h.b16 %v488
    %v1750 = vunpack.c.l.b16 %v489
    %v1751 = vunpack.c.h.b16 %v489
    %v1752 = vunpack.c.l.b16 %v490
    %v1753 = vunpack.c.h.b16 %v490
    %v1754 = vunpack.c.l.b16 %v491
    %v1755 = vunpack.c.h.b16 %v491
    %v1756 = vunpack.c.l.b16 %v492
    %v1757 = vunpack.c.h.b16 %v492
    %v1758 = vunpack.c.l.b16 %v493
    %v1759 = vunpack.c.h.b16 %v493
    %v1760 = vunpack.c.l.b16 %v494
    %v1761 = vunpack.c.h.b16 %v494
    %v1762 = vunpack.c.l.b16 %v495
    %v1763 = vunpack.c.h.b16 %v495
    %v1764 = vunpack.c.l.b16 %v496
    %v1765 = vunpack.c.h.b16 %v496
    %v1766 = vunpack.c.l.b16 %v497
    %v1767 = vunpack.c.h.b16 %v497
    %v1768 = vunpack.c.l.b16 %v498
    %v1769 = vunpack.c.h.b16 %v498
    %v1770 = vunpack.c.l.b16 %v499
    %v1771 = vunpack.c.h.b16 %v499
    %v1772 = vunpack.c.l.b16 %v500
    %v1773 = vunpack.c.l.b16 %v501
    %v1774 = vunpack.c.h.b16 %v501
    %v1775 = vunpack.c.l.b16 %v502
    %v1776 = vunpack.c.h.b16 %v502
    %v1777 = vunpack.c.l.b16 %v503
    %v1778 = vunpack.c.h.b16 %v503
    %v1779 = vunpack.c.l.b16 %v504
    %v1780 = vunpack.c.h.b16 %v504
    %v1781 = vunpack.c.l.b16 %v505
    %v1782 = vunpack.c.h.b16 %v505
    %v1783 = vunpack.c.l.b16 %v506
    %v1784 = vunpack.c.h.b16 %v506
    %v1785 = vunpack.c.l.b16 %v507
    %v1786 = vunpack.c.h.b16 %v507
    %v1787 = vunpack.c.l.b16 %v508
    %v1788 = vunpack.c.h.b16 %v508
    %v1789 = vunpack.c.l.b16 %v509
    %v1790 = vunpack.c.h.b16 %v509
    %v1791 = vunpack.c.l.b16 %v510
    %v1792 = vunpack.c.h.b16 %v510
    %v1793 = vunpack.c.l.b16 %v511
    %v1794 = vunpack.c.h.b16 %v511
    %v1795 = vunpack.c.l.b16 %v512
    %v1796 = vunpack.c.h.b16 %v512
    %v1797 = vunpack.c.l.b16 %v513
    %v1798 = vunpack.c.h.b16 %v513
    %v1799 = vunpack.c.l.b16 %v514
    %v1800 = vunpack.c.h.b16 %v514
    %v1801 = vunpack.c.l.b16 %v515
    %v1802 = vunpack.c.h.b16 %v515
    %v1803 = vunpack.c.l.b16 %v516
    %v1804 = vunpack.c.h.b16 %v516
    %v1805 = vunpack.c.l.b16 %v517
    %v1806 = vunpack.c.h.b16 %v517
    %v1807 = vunpack.c.l.b16 %v518
    %v1808 = vunpack.c.h.b16 %v518
    %v1809 = vunpack.c.l.b16 %v519
    %v1810 = vunpack.c.h.b16 %v519
    %v1811 = vunpack.c.l.b16 %v520
    %v1812 = vunpack.c.h.b16 %v520
    %v1813 = vunpack.c.l.b16 %v521
    %v1814 = vunpack.c.h.b16 %v521
    %v1815 = vunpack.c.l.b16 %v522
    %v1816 = vunpack.c.h.b16 %v522
    %v1817 = vunpack.c.l.b16 %v523
    %v1818 = vunpack.c.h.b16 %v523
    %v1819 = vunpack.c.l.b16 %v524
    %v1820 = vunpack.c.h.b16 %v524
    %v1821 = vunpack.c.l.b16 %v525
    %v1822 = vpack.c.b16 %v1087, %v1038
    %v1823 = vpack.c.b16 %v1088, %v1039
    %v1824 = vpack.c.b16 %v1089, %v1040
    %v1825 = vpack.c.b16 %v1090, %v1041
    %v1826 = vpack.c.b16 %v1091, %v1042
    %v1827 = vpack.c.b16 %v1092, %v1043
    %v1828 = vpack.c.b16 %v1093, %v1044
    %v1829 = vpack.c.b16 %v1094, %v1045
    %v1830 = vpack.c.b16 %v1095, %v1046
    %v1831 = vpack.c.b16 %v1096, %v1047
    %v1832 = vpack.c.b16 %v1097, %v1048
    %v1833 = vpack.c.b16 %v1098, %v1049
    %v1834 = vpack.c.b16 %v1099, %v1050
    %v1835 = vpack.c.b16 %v1100, %v1051
    %v1836 = vpack.c.b16 %v1101, %v1052
    %v1837 = vpack.c.b16 %v1102, %v1053
    %v1838 = vpack.c.b16 %v1103, %v1054
    %v1839 = vpack.c.b16 %v1104, %v1055
    %v1840 = vpack.c.b16 %v1105, %v1056
    %v1841 = vpack.c.b16 %v1106, %v1057
    %v1842 = vpack.c.b16 %v1107, %v1058
    %v1843 = vpack.c.b16 %v1108, %v1059
    %v1844 = vpack.c.b16 %v1109, %v1060
    %v1845 = vpack.c.b16 %v1110, %v1061
    %v1846 = vpack.c.b16 %v1111, %v1062
    %v1847 = vpack.c.b16 %v1112, %v1063
    %v1848 = vpack.c.b16 %v1113, %v1064
    %v1849 = vpack.c.b16 %v1114, %v1065
    %v1850 = vpack.c.b16 %v1115, %v1066
    %v1851 = vpack.c.b16 %v1116, %v1067
    %v1852 = vpack.c.b16 %v1117, %v1068
    %v1853 = vpack.c.b16 %v1118, %v1069
    %v1854 = vpack.c.b16 %v1119, %v1070
    %v1855 = vpack.c.b16 %v1120, %v1071
    %v1856 = vpack.c.b16 %v1121, %v1072
    %v1857 = vpack.c.b16 %v1122, %v1073
    %v1858 = vpack.c.b16 %v1123, %v1074
    %v1859 = vpack.c.b16 %v1124, %v1075
    %v1860 = vpack.c.b16 %v1125, %v1076
    %v1861 = vpack.c.b16 %v1126, %v1077
    %v1862 = vpack.c.b16 %v1127, %v1078
    %v1863 = vpack.c.b16 %v1128, %v1079
    %v1864 = vpack.c.b16 %v1129, %v1080
    %v1865 = vpack.c.b16 %v1130, %v1081
    %v1866 = vpack.c.b16 %v1131, %v1082
    %v1867 = vpack.c.b16 %v1132, %v1083
    %v1868 = vpack.c.b16 %v1133, %v1084
    %v1869 = vpack.c.b16 %v1134, %v1085
    %v1870 = vpack.c.b16 %v1135, %v1086
    %v1871 = vpack.c.b16 %v1185, %v1136
    %v1872 = vpack.c.b16 %v1186, %v1137
    %v1873 = vpack.c.b16 %v1187, %v1138
    %v1874 = vpack.c.b16 %v1188, %v1139
    %v1875 = vpack.c.b16 %v1189, %v1140
    %v1876 = vpack.c.b16 %v1190, %v1141
    %v1877 = vpack.c.b16 %v1191, %v1142
    %v1878 = vpack.c.b16 %v1192, %v1143
    %v1879 = vpack.c.b16 %v1193, %v1144
    %v1880 = vpack.c.b16 %v1194, %v1145
    %v1881 = vpack.c.b16 %v1195, %v1146
    %v1882 = vpack.c.b16 %v1196, %v1147
    %v1883 = vpack.c.b16 %v1197, %v1148
    %v1884 = vpack.c.b16 %v1198, %v1149
    %v1885 = vpack.c.b16 %v1199, %v1150
    %v1886 = vpack.c.b16 %v1200, %v1151
    %v1887 = vpack.c.b16 %v1201, %v1152
    %v1888 = vpack.c.b16 %v1202, %v1153
    %v1889 = vpack.c.b16 %v1203, %v1154
    %v1890 = vpack.c.b16 %v1204, %v1155
    %v1891 = vpack.c.b16 %v1205, %v1156
    %v1892 = vpack.c.b16 %v1206, %v1157
    %v1893 = vpack.c.b16 %v1207, %v1158
    %v1894 = vpack.c.b16 %v1208, %v1159
    %v1895 = vpack.c.b16 %v1209, %v1160
    %v1896 = vpack.c.b16 %v1210, %v1161
    %v1897 = vpack.c.b16 %v1211, %v1162
    %v1898 = vpack.c.b16 %v1212, %v1163
    %v1899 = vpack.c.b16 %v1213, %v1164
    %v1900 = vpack.c.b16 %v1214, %v1165
    %v1901 = vpack.c.b16 %v1215, %v1166
    %v1902 = vpack.c.b16 %v1216, %v1167
    %v1903 = vpack.c.b16 %v1217, %v1168
    %v1904 = vpack.c.b16 %v1218, %v1169
    %v1905 = vpack.c.b16 %v1219, %v1170
    %v1906 = vpack.c.b16 %v1220, %v1171
    %v1907 = vpack.c.b16 %v1221, %v1172
    %v1908 = vpack.c.b16 %v1222, %v1173
    %v1909 = vpack.c.b16 %v1223, %v1174
    %v1910 = vpack.c.b16 %v1224, %v1175
    %v1911 = vpack.c.b16 %v1225, %v1176
    %v1912 = vpack.c.b16 %v1226, %v1177
    %v1913 = vpack.c.b16 %v1227, %v1178
    %v1914 = vpack.c.b16 %v1228, %v1179
    %v1915 = vpack.c.b16 %v1229, %v1180
    %v1916 = vpack.c.b16 %v1230, %v1181
    %v1917 = vpack.c.b16 %v1231, %v1182
    %v1918 = vpack.c.b16 %v1232, %v1183
    %v1919 = vpack.c.b16 %v1233, %v1184
    %v1920 = vpack.c.b16 %v1283, %v1234
    %v1921 = vpack.c.b16 %v1284, %v1235
    %v1922 = vpack.c.b16 %v1285, %v1236
    %v1923 = vpack.c.b16 %v1286, %v1237
    %v1924 = vpack.c.b16 %v1287, %v1238
    %v1925 = vpack.c.b16 %v1288, %v1239
    %v1926 = vpack.c.b16 %v1289, %v1240
    %v1927 = vpack.c.b16 %v1290, %v1241
    %v1928 = vpack.c.b16 %v1291, %v1242
    %v1929 = vpack.c.b16 %v1292, %v1243
    %v1930 = vpack.c.b16 %v1293, %v1244
    %v1931 = vpack.c.b16 %v1294, %v1245
    %v1932 = vpack.c.b16 %v1295, %v1246
    %v1933 = vpack.c.b16 %v1296, %v1247
    %v1934 = vpack.c.b16 %v1297, %v1248
    %v1935 = vpack.c.b16 %v1298, %v1249
    %v1936 = vpack.c.b16 %v1299, %v1250
    %v1937 = vpack.c.b16 %v1300, %v1251
    %v1938 = vpack.c.b16 %v1301, %v1252
    %v1939 = vpack.c.b16 %v1302, %v1253
    %v1940 = vpack.c.b16 %v1303, %v1254
    %v1941 = vpack.c.b16 %v1304, %v1255
    %v1942 = vpack.c.b16 %v1305, %v1256
    %v1943 = vpack.c.b16 %v1306, %v1257
    %v1944 = vpack.c.b16 %v1307, %v1258
    %v1945 = vpack.c.b16 %v1308, %v1259
    %v1946 = vpack.c.b16 %v1309, %v1260
    %v1947 = vpack.c.b16 %v1310, %v1261
    %v1948 = vpack.c.b16 %v1311, %v1262
    %v1949 = vpack.c.b16 %v1312, %v1263
    %v1950 = vpack.c.b16 %v1313, %v1264
    %v1951 = vpack.c.b16 %v1314, %v1265
    %v1952 = vpack.c.b16 %v1315, %v1266
    %v1953 = vpack.c.b16 %v1316, %v1267
    %v1954 = vpack.c.b16 %v1317, %v1268
    %v1955 = vpack.c.b16 %v1318, %v1269
    %v1956 = vpack.c.b16 %v1319, %v1270
    %v1957 = vpack.c.b16 %v1320, %v1271
    %v1958 = vpack.c.b16 %v1321, %v1272
    %v1959 = vpack.c.b16 %v1322, %v1273
    %v1960 = vpack.c.b16 %v1323, %v1274
    %v1961 = vpack.c.b16 %v1324, %v1275
    %v1962 = vpack.c.b16 %v1325, %v1276
    %v1963 = vpack.c.b16 %v1326, %v1277
    %v1964 = vpack.c.b16 %v1327, %v1278
    %v1965 = vpack.c.b16 %v1328, %v1279
    %v1966 = vpack.c.b16 %v1329, %v1280
    %v1967 = vpack.c.b16 %v1330, %v1281
    %v1968 = vpack.c.b16 %v1331, %v1282
    %v1969 = vpack.c.b16 %v1381, %v1332
    %v1970 = vpack.c.b16 %v1382, %v1333
    %v1971 = vpack.c.b16 %v1383, %v1334
    %v1972 = vpack.c.b16 %v1384, %v1335
    %v1973 = vpack.c.b16 %v1385, %v1336
    %v1974 = vpack.c.b16 %v1386, %v1337
    %v1975 = vpack.c.b16 %v1387, %v1338
    %v1976 = vpack.c.b16 %v1388, %v1339
    %v1977 = vpack.c.b16 %v1389, %v1340
    %v1978 = vpack.c.b16 %v1390, %v1341
    %v1979 = vpack.c.b16 %v1391, %v1342
    %v1980 = vpack.c.b16 %v1392, %v1343
    %v1981 = vpack.c.b16 %v1393, %v1344
    %v1982 = vpack.c.b16 %v1394, %v1345
    %v1983 = vpack.c.b16 %v1395, %v1346
    %v1984 = vpack.c.b16 %v1396, %v1347
    %v1985 = vpack.c.b16 %v1397, %v1348
    %v1986 = vpack.c.b16 %v1398, %v1349
    %v1987 = vpack.c.b16 %v1399, %v1350
    %v1988 = vpack.c.b16 %v1400, %v1351
    %v1989 = vpack.c.b16 %v1401, %v1352
    %v1990 = vpack.c.b16 %v1402, %v1353
    %v1991 = vpack.c.b16 %v1403, %v1354
    %v1992 = vpack.c.b16 %v1404, %v1355
    %v1993 = vpack.c.b16 %v1405, %v1356
    %v1994 = vpack.c.b16 %v1406, %v1357
    %v1995 = vpack.c.b16 %v1407, %v1358
    %v1996 = vpack.c.b16 %v1408, %v1359
    %v1997 = vpack.c.b16 %v1409, %v1360
    %v1998 = vpack.c.b16 %v1410, %v1361
    %v1999 = vpack.c.b16 %v1411, %v1362
    %v2000 = vpack.c.b16 %v1412, %v1363
    %v2001 = vpack.c.b16 %v1413, %v1364
    %v2002 = vpack.c.b16 %v1414, %v1365
    %v2003 = vpack.c.b16 %v1415, %v1366
    %v2004 = vpack.c.b16 %v1416, %v1367
    %v2005 = vpack.c.b16 %v1417, %v1368
    %v2006 = vpack.c.b16 %v1418, %v1369
    %v2007 = vpack.c.b16 %v1419, %v1370
    %v2008 = vpack.c.b16 %v1420, %v1371
    %v2009 = vpack.c.b16 %v1421, %v1372
    %v2010 = vpack.c.b16 %v1422, %v1373
    %v2011 = vpack.c.b16 %v1423, %v1374
    %v2012 = vpack.c.b16 %v1424, %v1375
    %v2013 = vpack.c.b16 %v1425, %v1376
    %v2014 = vpack.c.b16 %v1426, %v1377
    %v2015 = vpack.c.b16 %v1427, %v1378
    %v2016 = vpack.c.b16 %v1428, %v1379
    %v2017 = vpack.c.b16 %v1429, %v1380
    %v2018 = vpack.c.b16 %v1479, %v1430
    %v2019 = vpack.c.b16 %v1480, %v1431
    %v2020 = vpack.c.b16 %v1481, %v1432
    %v2021 = vpack.c.b16 %v1482, %v1433
    %v2022 = vpack.c.b16 %v1483, %v1434
    %v2023 = vpack.c.b16 %v1484, %v1435
    %v2024 = vpack.c.b16 %v1485, %v1436
    %v2025 = vpack.c.b16 %v1486, %v1437
    %v2026 = vpack.c.b16 %v1487, %v1438
    %v2027 = vpack.c.b16 %v1488, %v1439
    %v2028 = vpack.c.b16 %v1489, %v1440
    %v2029 = vpack.c.b16 %v1490, %v1441
    %v2030 = vpack.c.b16 %v1491, %v1442
    %v2031 = vpack.c.b16 %v1492, %v1443
    %v2032 = vpack.c.b16 %v1493, %v1444
    %v2033 = vpack.c.b16 %v1494, %v1445
    %v2034 = vpack.c.b16 %v1495, %v1446
    %v2035 = vpack.c.b16 %v1496, %v1447
    %v2036 = vpack.c.b16 %v1497, %v1448
    %v2037 = vpack.c.b16 %v1498, %v1449
    %v2038 = vpack.c.b16 %v1499, %v1450
    %v2039 = vpack.c.b16 %v1500, %v1451
    %v2040 = vpack.c.b16 %v1501, %v1452
    %v2041 = vpack.c.b16 %v1502, %v1453
    %v2042 = vpack.c.b16 %v1503, %v1454
    %v2043 = vpack.c.b16 %v1504, %v1455
    %v2044 = vpack.c.b16 %v1505, %v1456
    %v2045 = vpack.c.b16 %v1506, %v1457
    %v2046 = vpack.c.b16 %v1507, %v1458
    %v2047 = vpack.c.b16 %v1508, %v1459
    %v2048 = vpack.c.b16 %v1509, %v1460
    %v2049 = vpack.c.b16 %v1510, %v1461
    %v2050 = vpack.c.b16 %v1511, %v1462
    %v2051 = vpack.c.b16 %v1512, %v1463
    %v2052 = vpack.c.b16 %v1513, %v1464
    %v2053 = vpack.c.b16 %v1514, %v1465
    %v2054 = vpack.c.b16 %v1515, %v1466
    %v2055 = vpack.c.b16 %v1516, %v1467
    %v2056 = vpack.c.b16 %v1517, %v1468
    %v2057 = vpack.c.b16 %v1518, %v1469
    %v2058 = vpack.c.b16 %v1519, %v1470
    %v2059 = vpack.c.b16 %v1520, %v1471
    %v2060 = vpack.c.b16 %v1521, %v1472
    %v2061 = vpack.c.b16 %v1522, %v1473
    %v2062 = vpack.c.b16 %v1523, %v1474
    %v2063 = vpack.c.b16 %v1524, %v1475
    %v2064 = vpack.c.b16 %v1525, %v1476
    %v2065 = vpack.c.b16 %v1526, %v1477
    %v2066 = vpack.c.b16 %v1527, %v1478
    %v2067 = vpack.c.b16 %v1577, %v1528
    %v2068 = vpack.c.b16 %v1578, %v1529
    %v2069 = vpack.c.b16 %v1579, %v1530
    %v2070 = vpack.c.b16 %v1580, %v1531
    %v2071 = vpack.c.b16 %v1581, %v1532
    %v2072 = vpack.c.b16 %v1582, %v1533
    %v2073 = vpack.c.b16 %v1583, %v1534
    %v2074 = vpack.c.b16 %v1584, %v1535
    %v2075 = vpack.c.b16 %v1585, %v1536
    %v2076 = vpack.c.b16 %v1586, %v1537
    %v2077 = vpack.c.b16 %v1587, %v1538
    %v2078 = vpack.c.b16 %v1588, %v1539
    %v2079 = vpack.c.b16 %v1589, %v1540
    %v2080 = vpack.c.b16 %v1590, %v1541
    %v2081 = vpack.c.b16 %v1591, %v1542
    %v2082 = vpack.c.b16 %v1592, %v1543
    %v2083 = vpack.c.b16 %v1593, %v1544
    %v2084 = vpack.c.b16 %v1594, %v1545
    %v2085 = vpack.c.b16 %v1595, %v1546
    %v2086 = vpack.c.b16 %v1596, %v1547
    %v2087 = vpack.c.b16 %v1597, %v1548
    %v2088 = vpack.c.b16 %v1598, %v1549
    %v2089 = vpack.c.b16 %v1599, %v1550
    %v2090 = vpack.c.b16 %v1600, %v1551
    %v2091 = vpack.c.b16 %v1601, %v1552
    %v2092 = vpack.c.b16 %v1602, %v1553
    %v2093 = vpack.c.b16 %v1603, %v1554
    %v2094 = vpack.c.b16 %v1604, %v1555
    %v2095 = vpack.c.b16 %v1605, %v1556
    %v2096 = vpack.c.b16 %v1606, %v1557
    %v2097 = vpack.c.b16 %v1607, %v1558
    %v2098 = vpack.c.b16 %v1608, %v1559
    %v2099 = vpack.c.b16 %v1609, %v1560
    %v2100 = vpack.c.b16 %v1610, %v1561
    %v2101 = vpack.c.b16 %v1611, %v1562
    %v2102 = vpack.c.b16 %v1612, %v1563
    %v2103 = vpack.c.b16 %v1613, %v1564
    %v2104 = vpack.c.b16 %v1614, %v1565
    %v2105 = vpack.c.b16 %v1615, %v1566
    %v2106 = vpack.c.b16 %v1616, %v1567
    %v2107 = vpack.c.b16 %v1617, %v1568
    %v2108 = vpack.c.b16 %v1618, %v1569
    %v2109 = vpack.c.b16 %v1619, %v1570
    %v2110 = vpack.c.b16 %v1620, %v1571
    %v2111 = vpack.c.b16 %v1621, %v1572
    %v2112 = vpack.c.b16 %v1622, %v1573
    %v2113 = vpack.c.b16 %v1623, %v1574
    %v2114 = vpack.c.b16 %v1624, %v1575
    %v2115 = vpack.c.b16 %v1625, %v1576
    %v2116 = vpack.c.b16 %v1675, %v1626
    %v2117 = vpack.c.b16 %v1676, %v1627
    %v2118 = vpack.c.b16 %v1677, %v1628
    %v2119 = vpack.c.b16 %v1678, %v1629
    %v2120 = vpack.c.b16 %v1679, %v1630
    %v2121 = vpack.c.b16 %v1680, %v1631
    %v2122 = vpack.c.b16 %v1681, %v1632
    %v2123 = vpack.c.b16 %v1682, %v1633
    %v2124 = vpack.c.b16 %v1683, %v1634
    %v2125 = vpack.c.b16 %v1684, %v1635
    %v2126 = vpack.c.b16 %v1685, %v1636
    %v2127 = vpack.c.b16 %v1686, %v1637
    %v2128 = vpack.c.b16 %v1687, %v1638
    %v2129 = vpack.c.b16 %v1688, %v1639
    %v2130 = vpack.c.b16 %v1689, %v1640
    %v2131 = vpack.c.b16 %v1690, %v1641
    %v2132 = vpack.c.b16 %v1691, %v1642
    %v2133 = vpack.c.b16 %v1692, %v1643
    %v2134 = vpack.c.b16 %v1693, %v1644
    %v2135 = vpack.c.b16 %v1694, %v1645
    %v2136 = vpack.c.b16 %v1695, %v1646
    %v2137 = vpack.c.b16 %v1696, %v1647
    %v2138 = vpack.c.b16 %v1697, %v1648
    %v2139 = vpack.c.b16 %v1698, %v1649
    %v2140 = vpack.c.b16 %v1699, %v1650
    %v2141 = vpack.c.b16 %v1700, %v1651
    %v2142 = vpack.c.b16 %v1701, %v1652
    %v2143 = vpack.c.b16 %v1702, %v1653
    %v2144 = vpack.c.b16 %v1703, %v1654
    %v2145 = vpack.c.b16 %v1704, %v1655
    %v2146 = vpack.c.b16 %v1705, %v1656
    %v2147 = vpack.c.b16 %v1706, %v1657
    %v2148 = vpack.c.b16 %v1707, %v1658
    %v2149 = vpack.c.b16 %v1708, %v1659
    %v2150 = vpack.c.b16 %v1709, %v1660
    %v2151 = vpack.c.b16 %v1710, %v1661
    %v2152 = vpack.c.b16 %v1711, %v1662
    %v2153 = vpack.c.b16 %v1712, %v1663
    %v2154 = vpack.c.b16 %v1713, %v1664
    %v2155 = vpack.c.b16 %v1714, %v1665
    %v2156 = vpack.c.b16 %v1715, %v1666
    %v2157 = vpack.c.b16 %v1716, %v1667
    %v2158 = vpack.c.b16 %v1717, %v1668
    %v2159 = vpack.c.b16 %v1718, %v1669
    %v2160 = vpack.c.b16 %v1719, %v1670
    %v2161 = vpack.c.b16 %v1720, %v1671
    %v2162 = vpack.c.b16 %v1721, %v1672
    %v2163 = vpack.c.b16 %v1722, %v1673
    %v2164 = vpack.c.b16 %v1723, %v1674
    %v2165 = vpack.c.b16 %v1773, %v1724
    %v2166 = vpack.c.b16 %v1774, %v1725
    %v2167 = vpack.c.b16 %v1775, %v1726
    %v2168 = vpack.c.b16 %v1776, %v1727
    %v2169 = vpack.c.b16 %v1777, %v1728
    %v2170 = vpack.c.b16 %v1778, %v1729
    %v2171 = vpack.c.b16 %v1779, %v1730
    %v2172 = vpack.c.b16 %v1780, %v1731
    %v2173 = vpack.c.b16 %v1781, %v1732
    %v2174 = vpack.c.b16 %v1782, %v1733
    %v2175 = vpack.c.b16 %v1783, %v1734
    %v2176 = vpack.c.b16 %v1784, %v1735
    %v2177 = vpack.c.b16 %v1785, %v1736
    %v2178 = vpack.c.b16 %v1786, %v1737
    %v2179 = vpack.c.b16 %v1787, %v1738
    %v2180 = vpack.c.b16 %v1788, %v1739
    %v2181 = vpack.c.b16 %v1789, %v1740
    %v2182 = vpack.c.b16 %v1790, %v1741
    %v2183 = vpack.c.b16 %v1791, %v1742
    %v2184 = vpack.c.b16 %v1792, %v1743
    %v2185 = vpack.c.b16 %v1793, %v1744
    %v2186 = vpack.c.b16 %v1794, %v1745
    %v2187 = vpack.c.b16 %v1795, %v1746
    %v2188 = vpack.c.b16 %v1796, %v1747
    %v2189 = vpack.c.b16 %v1797, %v1748
    %v2190 = vpack.c.b16 %v1798, %v1749
    %v2191 = vpack.c.b16 %v1799, %v1750
    %v2192 = vpack.c.b16 %v1800, %v1751
    %v2193 = vpack.c.b16 %v1801, %v1752
    %v2194 = vpack.c.b16 %v1802, %v1753
    %v2195 = vpack.c.b16 %v1803, %v1754
    %v2196 = vpack.c.b16 %v1804, %v1755
    %v2197 = vpack.c.b16 %v1805, %v1756
    %v2198 = vpack.c.b16 %v1806, %v1757
    %v2199 = vpack.c.b16 %v1807, %v1758
    %v2200 = vpack.c.b16 %v1808, %v1759
    %v2201 = vpack.c.b16 %v1809, %v1760
    %v2202 = vpack.c.b16 %v1810, %v1761
    %v2203 = vpack.c.b16 %v1811, %v1762
    %v2204 = vpack.c.b16 %v1812, %v1763
    %v2205 = vpack.c.b16 %v1813, %v1764
    %v2206 = vpack.c.b16 %v1814, %v1765
    %v2207 = vpack.c.b16 %v1815, %v1766
    %v2208 = vpack.c.b16 %v1816, %v1767
    %v2209 = vpack.c.b16 %v1817, %v1768
    %v2210 = vpack.c.b16 %v1818, %v1769
    %v2211 = vpack.c.b16 %v1819, %v1770
    %v2212 = vpack.c.b16 %v1820, %v1771
    %v2213 = vpack.c.b16 %v1821, %v1772
    %2606 = vmatpush.bf16.msra.mxu0 %v2165
    %2607 = vmatpush.bf16.msra.mxu0 %v2116
    %2608 = vmatpush.bf16.msra.mxu0 %v2067
    %2609 = vmatpush.bf16.msra.mxu0 %v2018
    %2610 = vmatpush.bf16.msra.mxu0 %v1969
    %2611 = vmatpush.bf16.msra.mxu0 %v1920
    %2612 = vmatpush.bf16.msra.mxu0 %v1871
    %2613 = vmatpush.bf16.msra.mxu0 %v1822
    %2614 = vmatmul.bf16.gmra.mxu0 %v125
    %v2615 = vpop.f32.mrf.mxu0
    %v2616 = vadd.f32 %v540, %v2615
    %v2617 = vpop.f32.mrf.mxu0
    %2618 = vdwg.mxu0
    %2619 = vmatpush.bf16.msra.mxu0 %v2166
    %2620 = vmatpush.bf16.msra.mxu0 %v2117
    %2621 = vmatpush.bf16.msra.mxu0 %v2068
    %2622 = vmatpush.bf16.msra.mxu0 %v2019
    %2623 = vmatpush.bf16.msra.mxu0 %v1970
    %2624 = vmatpush.bf16.msra.mxu0 %v1921
    %2625 = vmatpush.bf16.msra.mxu0 %v1872
    %2626 = vmatpush.bf16.msra.mxu0 %v1823
    %2627 = vmatmul.bf16.gmra.mxu0 %v125
    %v2628 = vpop.f32.mrf.mxu0
    %v2629 = vadd.f32 %v541, %v2628
    %v2630 = vpop.f32.mrf.mxu0
    %2631 = vdwg.mxu0
    %2632 = vmatpush.bf16.msra.mxu0 %v2167
    %2633 = vmatpush.bf16.msra.mxu0 %v2118
    %2634 = vmatpush.bf16.msra.mxu0 %v2069
    %2635 = vmatpush.bf16.msra.mxu0 %v2020
    %2636 = vmatpush.bf16.msra.mxu0 %v1971
    %2637 = vmatpush.bf16.msra.mxu0 %v1922
    %2638 = vmatpush.bf16.msra.mxu0 %v1873
    %2639 = vmatpush.bf16.msra.mxu0 %v1824
    %2640 = vmatmul.bf16.gmra.mxu0 %v125
    %v2641 = vpop.f32.mrf.mxu0
    %v2642 = vadd.f32 %v542, %v2641
    %v2643 = vpop.f32.mrf.mxu0
    %2644 = vdwg.mxu0
    %2645 = vmatpush.bf16.msra.mxu0 %v2168
    %2646 = vmatpush.bf16.msra.mxu0 %v2119
    %2647 = vmatpush.bf16.msra.mxu0 %v2070
    %2648 = vmatpush.bf16.msra.mxu0 %v2021
    %2649 = vmatpush.bf16.msra.mxu0 %v1972
    %2650 = vmatpush.bf16.msra.mxu0 %v1923
    %2651 = vmatpush.bf16.msra.mxu0 %v1874
    %2652 = vmatpush.bf16.msra.mxu0 %v1825
    %2653 = vmatmul.bf16.gmra.mxu0 %v125
    %v2654 = vpop.f32.mrf.mxu0
    %v2655 = vadd.f32 %v543, %v2654
    %v2656 = vpop.f32.mrf.mxu0
    %2657 = vdwg.mxu0
    %2658 = vmatpush.bf16.msra.mxu0 %v2169
    %2659 = vmatpush.bf16.msra.mxu0 %v2120
    %2660 = vmatpush.bf16.msra.mxu0 %v2071
    %2661 = vmatpush.bf16.msra.mxu0 %v2022
    %2662 = vmatpush.bf16.msra.mxu0 %v1973
    %2663 = vmatpush.bf16.msra.mxu0 %v1924
    %2664 = vmatpush.bf16.msra.mxu0 %v1875
    %2665 = vmatpush.bf16.msra.mxu0 %v1826
    %2666 = vmatmul.bf16.gmra.mxu0 %v125
    %v2667 = vpop.f32.mrf.mxu0
    %v2668 = vadd.f32 %v544, %v2667
    %v2669 = vpop.f32.mrf.mxu0
    %2670 = vdwg.mxu0
    %2671 = vmatpush.bf16.msra.mxu0 %v2170
    %2672 = vmatpush.bf16.msra.mxu0 %v2121
    %2673 = vmatpush.bf16.msra.mxu0 %v2072
    %2674 = vmatpush.bf16.msra.mxu0 %v2023
    %2675 = vmatpush.bf16.msra.mxu0 %v1974
    %2676 = vmatpush.bf16.msra.mxu0 %v1925
    %2677 = vmatpush.bf16.msra.mxu0 %v1876
    %2678 = vmatpush.bf16.msra.mxu0 %v1827
    %2679 = vmatmul.bf16.gmra.mxu0 %v125
    %v2680 = vpop.f32.mrf.mxu0
    %v2681 = vadd.f32 %v545, %v2680
    %v2682 = vpop.f32.mrf.mxu0
    %2683 = vdwg.mxu0
    %2684 = vmatpush.bf16.msra.mxu0 %v2171
    %2685 = vmatpush.bf16.msra.mxu0 %v2122
    %2686 = vmatpush.bf16.msra.mxu0 %v2073
    %2687 = vmatpush.bf16.msra.mxu0 %v2024
    %2688 = vmatpush.bf16.msra.mxu0 %v1975
    %2689 = vmatpush.bf16.msra.mxu0 %v1926
    %2690 = vmatpush.bf16.msra.mxu0 %v1877
    %2691 = vmatpush.bf16.msra.mxu0 %v1828
    %2692 = vmatmul.bf16.gmra.mxu0 %v125
    %v2693 = vpop.f32.mrf.mxu0
    %v2694 = vadd.f32 %v546, %v2693
    %v2695 = vpop.f32.mrf.mxu0
    %2696 = vdwg.mxu0
    %2697 = vmatpush.bf16.msra.mxu0 %v2172
    %2698 = vmatpush.bf16.msra.mxu0 %v2123
    %2699 = vmatpush.bf16.msra.mxu0 %v2074
    %2700 = vmatpush.bf16.msra.mxu0 %v2025
    %2701 = vmatpush.bf16.msra.mxu0 %v1976
    %2702 = vmatpush.bf16.msra.mxu0 %v1927
    %2703 = vmatpush.bf16.msra.mxu0 %v1878
    %2704 = vmatpush.bf16.msra.mxu0 %v1829
    %2705 = vmatmul.bf16.gmra.mxu0 %v125
    %v2706 = vpop.f32.mrf.mxu0
    %v2707 = vadd.f32 %v547, %v2706
    %v2708 = vpop.f32.mrf.mxu0
    %2709 = vdwg.mxu0
    %2710 = vmatpush.bf16.msra.mxu0 %v2173
    %2711 = vmatpush.bf16.msra.mxu0 %v2124
    %2712 = vmatpush.bf16.msra.mxu0 %v2075
    %2713 = vmatpush.bf16.msra.mxu0 %v2026
    %2714 = vmatpush.bf16.msra.mxu0 %v1977
    %2715 = vmatpush.bf16.msra.mxu0 %v1928
    %2716 = vmatpush.bf16.msra.mxu0 %v1879
    %2717 = vmatpush.bf16.msra.mxu0 %v1830
    %2718 = vmatmul.bf16.gmra.mxu0 %v125
    %v2719 = vpop.f32.mrf.mxu0
    %v2720 = vadd.f32 %v548, %v2719
    %v2721 = vpop.f32.mrf.mxu0
    %2722 = vdwg.mxu0
    %2723 = vmatpush.bf16.msra.mxu0 %v2174
    %2724 = vmatpush.bf16.msra.mxu0 %v2125
    %2725 = vmatpush.bf16.msra.mxu0 %v2076
    %2726 = vmatpush.bf16.msra.mxu0 %v2027
    %2727 = vmatpush.bf16.msra.mxu0 %v1978
    %2728 = vmatpush.bf16.msra.mxu0 %v1929
    %2729 = vmatpush.bf16.msra.mxu0 %v1880
    %2730 = vmatpush.bf16.msra.mxu0 %v1831
    %2731 = vmatmul.bf16.gmra.mxu0 %v125
    %v2732 = vpop.f32.mrf.mxu0
    %v2733 = vadd.f32 %v549, %v2732
    %v2734 = vpop.f32.mrf.mxu0
    %2735 = vdwg.mxu0
    %2736 = vmatpush.bf16.msra.mxu0 %v2175
    %2737 = vmatpush.bf16.msra.mxu0 %v2126
    %2738 = vmatpush.bf16.msra.mxu0 %v2077
    %2739 = vmatpush.bf16.msra.mxu0 %v2028
    %2740 = vmatpush.bf16.msra.mxu0 %v1979
    %2741 = vmatpush.bf16.msra.mxu0 %v1930
    %2742 = vmatpush.bf16.msra.mxu0 %v1881
    %2743 = vmatpush.bf16.msra.mxu0 %v1832
    %2744 = vmatmul.bf16.gmra.mxu0 %v125
    %v2745 = vpop.f32.mrf.mxu0
    %v2746 = vadd.f32 %v550, %v2745
    %v2747 = vpop.f32.mrf.mxu0
    %2748 = vdwg.mxu0
    %2749 = vmatpush.bf16.msra.mxu0 %v2176
    %2750 = vmatpush.bf16.msra.mxu0 %v2127
    %2751 = vmatpush.bf16.msra.mxu0 %v2078
    %2752 = vmatpush.bf16.msra.mxu0 %v2029
    %2753 = vmatpush.bf16.msra.mxu0 %v1980
    %2754 = vmatpush.bf16.msra.mxu0 %v1931
    %2755 = vmatpush.bf16.msra.mxu0 %v1882
    %2756 = vmatpush.bf16.msra.mxu0 %v1833
    %2757 = vmatmul.bf16.gmra.mxu0 %v125
    %v2758 = vpop.f32.mrf.mxu0
    %v2759 = vadd.f32 %v551, %v2758
    %v2760 = vpop.f32.mrf.mxu0
    %2761 = vdwg.mxu0
    %2762 = vmatpush.bf16.msra.mxu0 %v2177
    %2763 = vmatpush.bf16.msra.mxu0 %v2128
    %2764 = vmatpush.bf16.msra.mxu0 %v2079
    %2765 = vmatpush.bf16.msra.mxu0 %v2030
    %2766 = vmatpush.bf16.msra.mxu0 %v1981
    %2767 = vmatpush.bf16.msra.mxu0 %v1932
    %2768 = vmatpush.bf16.msra.mxu0 %v1883
    %2769 = vmatpush.bf16.msra.mxu0 %v1834
    %2770 = vmatmul.bf16.gmra.mxu0 %v125
    %v2771 = vpop.f32.mrf.mxu0
    %v2772 = vadd.f32 %v552, %v2771
    %v2773 = vpop.f32.mrf.mxu0
    %2774 = vdwg.mxu0
    %2775 = vmatpush.bf16.msra.mxu0 %v2178
    %2776 = vmatpush.bf16.msra.mxu0 %v2129
    %2777 = vmatpush.bf16.msra.mxu0 %v2080
    %2778 = vmatpush.bf16.msra.mxu0 %v2031
    %2779 = vmatpush.bf16.msra.mxu0 %v1982
    %2780 = vmatpush.bf16.msra.mxu0 %v1933
    %2781 = vmatpush.bf16.msra.mxu0 %v1884
    %2782 = vmatpush.bf16.msra.mxu0 %v1835
    %2783 = vmatmul.bf16.gmra.mxu0 %v125
    %v2784 = vpop.f32.mrf.mxu0
    %v2785 = vadd.f32 %v553, %v2784
    %v2786 = vpop.f32.mrf.mxu0
    %2787 = vdwg.mxu0
    %2788 = vmatpush.bf16.msra.mxu0 %v2179
    %2789 = vmatpush.bf16.msra.mxu0 %v2130
    %2790 = vmatpush.bf16.msra.mxu0 %v2081
    %2791 = vmatpush.bf16.msra.mxu0 %v2032
    %2792 = vmatpush.bf16.msra.mxu0 %v1983
    %2793 = vmatpush.bf16.msra.mxu0 %v1934
    %2794 = vmatpush.bf16.msra.mxu0 %v1885
    %2795 = vmatpush.bf16.msra.mxu0 %v1836
    %2796 = vmatmul.bf16.gmra.mxu0 %v125
    %v2797 = vpop.f32.mrf.mxu0
    %v2798 = vadd.f32 %v554, %v2797
    %v2799 = vpop.f32.mrf.mxu0
    %2800 = vdwg.mxu0
    %2801 = vmatpush.bf16.msra.mxu0 %v2180
    %2802 = vmatpush.bf16.msra.mxu0 %v2131
    %2803 = vmatpush.bf16.msra.mxu0 %v2082
    %2804 = vmatpush.bf16.msra.mxu0 %v2033
    %2805 = vmatpush.bf16.msra.mxu0 %v1984
    %2806 = vmatpush.bf16.msra.mxu0 %v1935
    %2807 = vmatpush.bf16.msra.mxu0 %v1886
    %2808 = vmatpush.bf16.msra.mxu0 %v1837
    %2809 = vmatmul.bf16.gmra.mxu0 %v125
    %v2810 = vpop.f32.mrf.mxu0
    %v2811 = vadd.f32 %v555, %v2810
    %v2812 = vpop.f32.mrf.mxu0
    %2813 = vdwg.mxu0
    %2814 = vmatpush.bf16.msra.mxu0 %v2181
    %2815 = vmatpush.bf16.msra.mxu0 %v2132
    %2816 = vmatpush.bf16.msra.mxu0 %v2083
    %2817 = vmatpush.bf16.msra.mxu0 %v2034
    %2818 = vmatpush.bf16.msra.mxu0 %v1985
    %2819 = vmatpush.bf16.msra.mxu0 %v1936
    %2820 = vmatpush.bf16.msra.mxu0 %v1887
    %2821 = vmatpush.bf16.msra.mxu0 %v1838
    %2822 = vmatmul.bf16.gmra.mxu0 %v125
    %v2823 = vpop.f32.mrf.mxu0
    %v2824 = vadd.f32 %v556, %v2823
    %v2825 = vpop.f32.mrf.mxu0
    %2826 = vdwg.mxu0
    %2827 = vmatpush.bf16.msra.mxu0 %v2182
    %2828 = vmatpush.bf16.msra.mxu0 %v2133
    %2829 = vmatpush.bf16.msra.mxu0 %v2084
    %2830 = vmatpush.bf16.msra.mxu0 %v2035
    %2831 = vmatpush.bf16.msra.mxu0 %v1986
    %2832 = vmatpush.bf16.msra.mxu0 %v1937
    %2833 = vmatpush.bf16.msra.mxu0 %v1888
    %2834 = vmatpush.bf16.msra.mxu0 %v1839
    %2835 = vmatmul.bf16.gmra.mxu0 %v125
    %v2836 = vpop.f32.mrf.mxu0
    %v2837 = vadd.f32 %v557, %v2836
    %v2838 = vpop.f32.mrf.mxu0
    %2839 = vdwg.mxu0
    %2840 = vmatpush.bf16.msra.mxu0 %v2183
    %2841 = vmatpush.bf16.msra.mxu0 %v2134
    %2842 = vmatpush.bf16.msra.mxu0 %v2085
    %2843 = vmatpush.bf16.msra.mxu0 %v2036
    %2844 = vmatpush.bf16.msra.mxu0 %v1987
    %2845 = vmatpush.bf16.msra.mxu0 %v1938
    %2846 = vmatpush.bf16.msra.mxu0 %v1889
    %2847 = vmatpush.bf16.msra.mxu0 %v1840
    %2848 = vmatmul.bf16.gmra.mxu0 %v125
    %v2849 = vpop.f32.mrf.mxu0
    %v2850 = vadd.f32 %v558, %v2849
    %v2851 = vpop.f32.mrf.mxu0
    %2852 = vdwg.mxu0
    %2853 = vmatpush.bf16.msra.mxu0 %v2184
    %2854 = vmatpush.bf16.msra.mxu0 %v2135
    %2855 = vmatpush.bf16.msra.mxu0 %v2086
    %2856 = vmatpush.bf16.msra.mxu0 %v2037
    %2857 = vmatpush.bf16.msra.mxu0 %v1988
    %2858 = vmatpush.bf16.msra.mxu0 %v1939
    %2859 = vmatpush.bf16.msra.mxu0 %v1890
    %2860 = vmatpush.bf16.msra.mxu0 %v1841
    %2861 = vmatmul.bf16.gmra.mxu0 %v125
    %v2862 = vpop.f32.mrf.mxu0
    %v2863 = vadd.f32 %v559, %v2862
    %v2864 = vpop.f32.mrf.mxu0
    %2865 = vdwg.mxu0
    %2866 = vmatpush.bf16.msra.mxu0 %v2185
    %2867 = vmatpush.bf16.msra.mxu0 %v2136
    %2868 = vmatpush.bf16.msra.mxu0 %v2087
    %2869 = vmatpush.bf16.msra.mxu0 %v2038
    %2870 = vmatpush.bf16.msra.mxu0 %v1989
    %2871 = vmatpush.bf16.msra.mxu0 %v1940
    %2872 = vmatpush.bf16.msra.mxu0 %v1891
    %2873 = vmatpush.bf16.msra.mxu0 %v1842
    %2874 = vmatmul.bf16.gmra.mxu0 %v125
    %v2875 = vpop.f32.mrf.mxu0
    %v2876 = vadd.f32 %v560, %v2875
    %v2877 = vpop.f32.mrf.mxu0
    %2878 = vdwg.mxu0
    %2879 = vmatpush.bf16.msra.mxu0 %v2186
    %2880 = vmatpush.bf16.msra.mxu0 %v2137
    %2881 = vmatpush.bf16.msra.mxu0 %v2088
    %2882 = vmatpush.bf16.msra.mxu0 %v2039
    %2883 = vmatpush.bf16.msra.mxu0 %v1990
    %2884 = vmatpush.bf16.msra.mxu0 %v1941
    %2885 = vmatpush.bf16.msra.mxu0 %v1892
    %2886 = vmatpush.bf16.msra.mxu0 %v1843
    %2887 = vmatmul.bf16.gmra.mxu0 %v125
    %v2888 = vpop.f32.mrf.mxu0
    %v2889 = vadd.f32 %v561, %v2888
    %v2890 = vpop.f32.mrf.mxu0
    %2891 = vdwg.mxu0
    %2892 = vmatpush.bf16.msra.mxu0 %v2187
    %2893 = vmatpush.bf16.msra.mxu0 %v2138
    %2894 = vmatpush.bf16.msra.mxu0 %v2089
    %2895 = vmatpush.bf16.msra.mxu0 %v2040
    %2896 = vmatpush.bf16.msra.mxu0 %v1991
    %2897 = vmatpush.bf16.msra.mxu0 %v1942
    %2898 = vmatpush.bf16.msra.mxu0 %v1893
    %2899 = vmatpush.bf16.msra.mxu0 %v1844
    %2900 = vmatmul.bf16.gmra.mxu0 %v125
    %v2901 = vpop.f32.mrf.mxu0
    %v2902 = vadd.f32 %v562, %v2901
    %v2903 = vpop.f32.mrf.mxu0
    %2904 = vdwg.mxu0
    %2905 = vmatpush.bf16.msra.mxu0 %v2188
    %2906 = vmatpush.bf16.msra.mxu0 %v2139
    %2907 = vmatpush.bf16.msra.mxu0 %v2090
    %2908 = vmatpush.bf16.msra.mxu0 %v2041
    %2909 = vmatpush.bf16.msra.mxu0 %v1992
    %2910 = vmatpush.bf16.msra.mxu0 %v1943
    %2911 = vmatpush.bf16.msra.mxu0 %v1894
    %2912 = vmatpush.bf16.msra.mxu0 %v1845
    %2913 = vmatmul.bf16.gmra.mxu0 %v125
    %v2914 = vpop.f32.mrf.mxu0
    %v2915 = vadd.f32 %v563, %v2914
    %v2916 = vpop.f32.mrf.mxu0
    %2917 = vdwg.mxu0
    %2918 = vmatpush.bf16.msra.mxu0 %v2189
    %2919 = vmatpush.bf16.msra.mxu0 %v2140
    %2920 = vmatpush.bf16.msra.mxu0 %v2091
    %2921 = vmatpush.bf16.msra.mxu0 %v2042
    %2922 = vmatpush.bf16.msra.mxu0 %v1993
    %2923 = vmatpush.bf16.msra.mxu0 %v1944
    %2924 = vmatpush.bf16.msra.mxu0 %v1895
    %2925 = vmatpush.bf16.msra.mxu0 %v1846
    %2926 = vmatmul.bf16.gmra.mxu0 %v125
    %v2927 = vpop.f32.mrf.mxu0
    %v2928 = vadd.f32 %v564, %v2927
    %v2929 = vpop.f32.mrf.mxu0
    %2930 = vdwg.mxu0
    %2931 = vmatpush.bf16.msra.mxu0 %v2190
    %2932 = vmatpush.bf16.msra.mxu0 %v2141
    %2933 = vmatpush.bf16.msra.mxu0 %v2092
    %2934 = vmatpush.bf16.msra.mxu0 %v2043
    %2935 = vmatpush.bf16.msra.mxu0 %v1994
    %2936 = vmatpush.bf16.msra.mxu0 %v1945
    %2937 = vmatpush.bf16.msra.mxu0 %v1896
    %2938 = vmatpush.bf16.msra.mxu0 %v1847
    %2939 = vmatmul.bf16.gmra.mxu0 %v125
    %v2940 = vpop.f32.mrf.mxu0
    %v2941 = vadd.f32 %v565, %v2940
    %v2942 = vpop.f32.mrf.mxu0
    %2943 = vdwg.mxu0
    %2944 = vmatpush.bf16.msra.mxu0 %v2191
    %2945 = vmatpush.bf16.msra.mxu0 %v2142
    %2946 = vmatpush.bf16.msra.mxu0 %v2093
    %2947 = vmatpush.bf16.msra.mxu0 %v2044
    %2948 = vmatpush.bf16.msra.mxu0 %v1995
    %2949 = vmatpush.bf16.msra.mxu0 %v1946
    %2950 = vmatpush.bf16.msra.mxu0 %v1897
    %2951 = vmatpush.bf16.msra.mxu0 %v1848
    %2952 = vmatmul.bf16.gmra.mxu0 %v125
    %v2953 = vpop.f32.mrf.mxu0
    %v2954 = vadd.f32 %v566, %v2953
    %v2955 = vpop.f32.mrf.mxu0
    %2956 = vdwg.mxu0
    %2957 = vmatpush.bf16.msra.mxu0 %v2192
    %2958 = vmatpush.bf16.msra.mxu0 %v2143
    %2959 = vmatpush.bf16.msra.mxu0 %v2094
    %2960 = vmatpush.bf16.msra.mxu0 %v2045
    %2961 = vmatpush.bf16.msra.mxu0 %v1996
    %2962 = vmatpush.bf16.msra.mxu0 %v1947
    %2963 = vmatpush.bf16.msra.mxu0 %v1898
    %2964 = vmatpush.bf16.msra.mxu0 %v1849
    %2965 = vmatmul.bf16.gmra.mxu0 %v125
    %v2966 = vpop.f32.mrf.mxu0
    %v2967 = vadd.f32 %v567, %v2966
    %v2968 = vpop.f32.mrf.mxu0
    %2969 = vdwg.mxu0
    %2970 = vmatpush.bf16.msra.mxu0 %v2193
    %2971 = vmatpush.bf16.msra.mxu0 %v2144
    %2972 = vmatpush.bf16.msra.mxu0 %v2095
    %2973 = vmatpush.bf16.msra.mxu0 %v2046
    %2974 = vmatpush.bf16.msra.mxu0 %v1997
    %2975 = vmatpush.bf16.msra.mxu0 %v1948
    %2976 = vmatpush.bf16.msra.mxu0 %v1899
    %2977 = vmatpush.bf16.msra.mxu0 %v1850
    %2978 = vmatmul.bf16.gmra.mxu0 %v125
    %v2979 = vpop.f32.mrf.mxu0
    %v2980 = vadd.f32 %v568, %v2979
    %v2981 = vpop.f32.mrf.mxu0
    %2982 = vdwg.mxu0
    %2983 = vmatpush.bf16.msra.mxu0 %v2194
    %2984 = vmatpush.bf16.msra.mxu0 %v2145
    %2985 = vmatpush.bf16.msra.mxu0 %v2096
    %2986 = vmatpush.bf16.msra.mxu0 %v2047
    %2987 = vmatpush.bf16.msra.mxu0 %v1998
    %2988 = vmatpush.bf16.msra.mxu0 %v1949
    %2989 = vmatpush.bf16.msra.mxu0 %v1900
    %2990 = vmatpush.bf16.msra.mxu0 %v1851
    %2991 = vmatmul.bf16.gmra.mxu0 %v125
    %v2992 = vpop.f32.mrf.mxu0
    %v2993 = vadd.f32 %v569, %v2992
    %v2994 = vpop.f32.mrf.mxu0
    %2995 = vdwg.mxu0
    %2996 = vmatpush.bf16.msra.mxu0 %v2195
    %2997 = vmatpush.bf16.msra.mxu0 %v2146
    %2998 = vmatpush.bf16.msra.mxu0 %v2097
    %2999 = vmatpush.bf16.msra.mxu0 %v2048
    %3000 = vmatpush.bf16.msra.mxu0 %v1999
    %3001 = vmatpush.bf16.msra.mxu0 %v1950
    %3002 = vmatpush.bf16.msra.mxu0 %v1901
    %3003 = vmatpush.bf16.msra.mxu0 %v1852
    %3004 = vmatmul.bf16.gmra.mxu0 %v125
    %v3005 = vpop.f32.mrf.mxu0
    %v3006 = vadd.f32 %v570, %v3005
    %v3007 = vpop.f32.mrf.mxu0
    %3008 = vdwg.mxu0
    %3009 = vmatpush.bf16.msra.mxu0 %v2196
    %3010 = vmatpush.bf16.msra.mxu0 %v2147
    %3011 = vmatpush.bf16.msra.mxu0 %v2098
    %3012 = vmatpush.bf16.msra.mxu0 %v2049
    %3013 = vmatpush.bf16.msra.mxu0 %v2000
    %3014 = vmatpush.bf16.msra.mxu0 %v1951
    %3015 = vmatpush.bf16.msra.mxu0 %v1902
    %3016 = vmatpush.bf16.msra.mxu0 %v1853
    %3017 = vmatmul.bf16.gmra.mxu0 %v125
    %v3018 = vpop.f32.mrf.mxu0
    %v3019 = vadd.f32 %v571, %v3018
    %v3020 = vpop.f32.mrf.mxu0
    %3021 = vdwg.mxu0
    %3022 = vmatpush.bf16.msra.mxu0 %v2197
    %3023 = vmatpush.bf16.msra.mxu0 %v2148
    %3024 = vmatpush.bf16.msra.mxu0 %v2099
    %3025 = vmatpush.bf16.msra.mxu0 %v2050
    %3026 = vmatpush.bf16.msra.mxu0 %v2001
    %3027 = vmatpush.bf16.msra.mxu0 %v1952
    %3028 = vmatpush.bf16.msra.mxu0 %v1903
    %3029 = vmatpush.bf16.msra.mxu0 %v1854
    %3030 = vmatmul.bf16.gmra.mxu0 %v125
    %v3031 = vpop.f32.mrf.mxu0
    %v3032 = vadd.f32 %v572, %v3031
    %v3033 = vpop.f32.mrf.mxu0
    %3034 = vdwg.mxu0
    %3035 = vmatpush.bf16.msra.mxu0 %v2198
    %3036 = vmatpush.bf16.msra.mxu0 %v2149
    %3037 = vmatpush.bf16.msra.mxu0 %v2100
    %3038 = vmatpush.bf16.msra.mxu0 %v2051
    %3039 = vmatpush.bf16.msra.mxu0 %v2002
    %3040 = vmatpush.bf16.msra.mxu0 %v1953
    %3041 = vmatpush.bf16.msra.mxu0 %v1904
    %3042 = vmatpush.bf16.msra.mxu0 %v1855
    %3043 = vmatmul.bf16.gmra.mxu0 %v125
    %v3044 = vpop.f32.mrf.mxu0
    %v3045 = vadd.f32 %v573, %v3044
    %v3046 = vpop.f32.mrf.mxu0
    %3047 = vdwg.mxu0
    %3048 = vmatpush.bf16.msra.mxu0 %v2199
    %3049 = vmatpush.bf16.msra.mxu0 %v2150
    %3050 = vmatpush.bf16.msra.mxu0 %v2101
    %3051 = vmatpush.bf16.msra.mxu0 %v2052
    %3052 = vmatpush.bf16.msra.mxu0 %v2003
    %3053 = vmatpush.bf16.msra.mxu0 %v1954
    %3054 = vmatpush.bf16.msra.mxu0 %v1905
    %3055 = vmatpush.bf16.msra.mxu0 %v1856
    %3056 = vmatmul.bf16.gmra.mxu0 %v125
    %v3057 = vpop.f32.mrf.mxu0
    %v3058 = vadd.f32 %v574, %v3057
    %v3059 = vpop.f32.mrf.mxu0
    %3060 = vdwg.mxu0
    %3061 = vmatpush.bf16.msra.mxu0 %v2200
    %3062 = vmatpush.bf16.msra.mxu0 %v2151
    %3063 = vmatpush.bf16.msra.mxu0 %v2102
    %3064 = vmatpush.bf16.msra.mxu0 %v2053
    %3065 = vmatpush.bf16.msra.mxu0 %v2004
    %3066 = vmatpush.bf16.msra.mxu0 %v1955
    %3067 = vmatpush.bf16.msra.mxu0 %v1906
    %3068 = vmatpush.bf16.msra.mxu0 %v1857
    %3069 = vmatmul.bf16.gmra.mxu0 %v125
    %v3070 = vpop.f32.mrf.mxu0
    %v3071 = vadd.f32 %v575, %v3070
    %v3072 = vpop.f32.mrf.mxu0
    %3073 = vdwg.mxu0
    %3074 = vmatpush.bf16.msra.mxu0 %v2201
    %3075 = vmatpush.bf16.msra.mxu0 %v2152
    %3076 = vmatpush.bf16.msra.mxu0 %v2103
    %3077 = vmatpush.bf16.msra.mxu0 %v2054
    %3078 = vmatpush.bf16.msra.mxu0 %v2005
    %3079 = vmatpush.bf16.msra.mxu0 %v1956
    %3080 = vmatpush.bf16.msra.mxu0 %v1907
    %3081 = vmatpush.bf16.msra.mxu0 %v1858
    %3082 = vmatmul.bf16.gmra.mxu0 %v125
    %v3083 = vpop.f32.mrf.mxu0
    %v3084 = vadd.f32 %v576, %v3083
    %v3085 = vpop.f32.mrf.mxu0
    %3086 = vdwg.mxu0
    %3087 = vmatpush.bf16.msra.mxu0 %v2202
    %3088 = vmatpush.bf16.msra.mxu0 %v2153
    %3089 = vmatpush.bf16.msra.mxu0 %v2104
    %3090 = vmatpush.bf16.msra.mxu0 %v2055
    %3091 = vmatpush.bf16.msra.mxu0 %v2006
    %3092 = vmatpush.bf16.msra.mxu0 %v1957
    %3093 = vmatpush.bf16.msra.mxu0 %v1908
    %3094 = vmatpush.bf16.msra.mxu0 %v1859
    %3095 = vmatmul.bf16.gmra.mxu0 %v125
    %v3096 = vpop.f32.mrf.mxu0
    %v3097 = vadd.f32 %v577, %v3096
    %v3098 = vpop.f32.mrf.mxu0
    %3099 = vdwg.mxu0
    %3100 = vmatpush.bf16.msra.mxu0 %v2203
    %3101 = vmatpush.bf16.msra.mxu0 %v2154
    %3102 = vmatpush.bf16.msra.mxu0 %v2105
    %3103 = vmatpush.bf16.msra.mxu0 %v2056
    %3104 = vmatpush.bf16.msra.mxu0 %v2007
    %3105 = vmatpush.bf16.msra.mxu0 %v1958
    %3106 = vmatpush.bf16.msra.mxu0 %v1909
    %3107 = vmatpush.bf16.msra.mxu0 %v1860
    %3108 = vmatmul.bf16.gmra.mxu0 %v125
    %v3109 = vpop.f32.mrf.mxu0
    %v3110 = vadd.f32 %v578, %v3109
    %v3111 = vpop.f32.mrf.mxu0
    %3112 = vdwg.mxu0
    %3113 = vmatpush.bf16.msra.mxu0 %v2204
    %3114 = vmatpush.bf16.msra.mxu0 %v2155
    %3115 = vmatpush.bf16.msra.mxu0 %v2106
    %3116 = vmatpush.bf16.msra.mxu0 %v2057
    %3117 = vmatpush.bf16.msra.mxu0 %v2008
    %3118 = vmatpush.bf16.msra.mxu0 %v1959
    %3119 = vmatpush.bf16.msra.mxu0 %v1910
    %3120 = vmatpush.bf16.msra.mxu0 %v1861
    %3121 = vmatmul.bf16.gmra.mxu0 %v125
    %v3122 = vpop.f32.mrf.mxu0
    %v3123 = vadd.f32 %v579, %v3122
    %v3124 = vpop.f32.mrf.mxu0
    %3125 = vdwg.mxu0
    %3126 = vmatpush.bf16.msra.mxu0 %v2205
    %3127 = vmatpush.bf16.msra.mxu0 %v2156
    %3128 = vmatpush.bf16.msra.mxu0 %v2107
    %3129 = vmatpush.bf16.msra.mxu0 %v2058
    %3130 = vmatpush.bf16.msra.mxu0 %v2009
    %3131 = vmatpush.bf16.msra.mxu0 %v1960
    %3132 = vmatpush.bf16.msra.mxu0 %v1911
    %3133 = vmatpush.bf16.msra.mxu0 %v1862
    %3134 = vmatmul.bf16.gmra.mxu0 %v125
    %v3135 = vpop.f32.mrf.mxu0
    %v3136 = vadd.f32 %v580, %v3135
    %v3137 = vpop.f32.mrf.mxu0
    %3138 = vdwg.mxu0
    %3139 = vmatpush.bf16.msra.mxu0 %v2206
    %3140 = vmatpush.bf16.msra.mxu0 %v2157
    %3141 = vmatpush.bf16.msra.mxu0 %v2108
    %3142 = vmatpush.bf16.msra.mxu0 %v2059
    %3143 = vmatpush.bf16.msra.mxu0 %v2010
    %3144 = vmatpush.bf16.msra.mxu0 %v1961
    %3145 = vmatpush.bf16.msra.mxu0 %v1912
    %3146 = vmatpush.bf16.msra.mxu0 %v1863
    %3147 = vmatmul.bf16.gmra.mxu0 %v125
    %v3148 = vpop.f32.mrf.mxu0
    %v3149 = vadd.f32 %v581, %v3148
    %v3150 = vpop.f32.mrf.mxu0
    %3151 = vdwg.mxu0
    %3152 = vmatpush.bf16.msra.mxu0 %v2207
    %3153 = vmatpush.bf16.msra.mxu0 %v2158
    %3154 = vmatpush.bf16.msra.mxu0 %v2109
    %3155 = vmatpush.bf16.msra.mxu0 %v2060
    %3156 = vmatpush.bf16.msra.mxu0 %v2011
    %3157 = vmatpush.bf16.msra.mxu0 %v1962
    %3158 = vmatpush.bf16.msra.mxu0 %v1913
    %3159 = vmatpush.bf16.msra.mxu0 %v1864
    %3160 = vmatmul.bf16.gmra.mxu0 %v125
    %v3161 = vpop.f32.mrf.mxu0
    %v3162 = vadd.f32 %v582, %v3161
    %v3163 = vpop.f32.mrf.mxu0
    %3164 = vdwg.mxu0
    %3165 = vmatpush.bf16.msra.mxu0 %v2208
    %3166 = vmatpush.bf16.msra.mxu0 %v2159
    %3167 = vmatpush.bf16.msra.mxu0 %v2110
    %3168 = vmatpush.bf16.msra.mxu0 %v2061
    %3169 = vmatpush.bf16.msra.mxu0 %v2012
    %3170 = vmatpush.bf16.msra.mxu0 %v1963
    %3171 = vmatpush.bf16.msra.mxu0 %v1914
    %3172 = vmatpush.bf16.msra.mxu0 %v1865
    %3173 = vmatmul.bf16.gmra.mxu0 %v125
    %v3174 = vpop.f32.mrf.mxu0
    %v3175 = vadd.f32 %v583, %v3174
    %v3176 = vpop.f32.mrf.mxu0
    %3177 = vdwg.mxu0
    %3178 = vmatpush.bf16.msra.mxu0 %v2209
    %3179 = vmatpush.bf16.msra.mxu0 %v2160
    %3180 = vmatpush.bf16.msra.mxu0 %v2111
    %3181 = vmatpush.bf16.msra.mxu0 %v2062
    %3182 = vmatpush.bf16.msra.mxu0 %v2013
    %3183 = vmatpush.bf16.msra.mxu0 %v1964
    %3184 = vmatpush.bf16.msra.mxu0 %v1915
    %3185 = vmatpush.bf16.msra.mxu0 %v1866
    %3186 = vmatmul.bf16.gmra.mxu0 %v125
    %v3187 = vpop.f32.mrf.mxu0
    %v3188 = vadd.f32 %v584, %v3187
    %v3189 = vpop.f32.mrf.mxu0
    %3190 = vdwg.mxu0
    %3191 = vmatpush.bf16.msra.mxu0 %v2210
    %3192 = vmatpush.bf16.msra.mxu0 %v2161
    %3193 = vmatpush.bf16.msra.mxu0 %v2112
    %3194 = vmatpush.bf16.msra.mxu0 %v2063
    %3195 = vmatpush.bf16.msra.mxu0 %v2014
    %3196 = vmatpush.bf16.msra.mxu0 %v1965
    %3197 = vmatpush.bf16.msra.mxu0 %v1916
    %3198 = vmatpush.bf16.msra.mxu0 %v1867
    %3199 = vmatmul.bf16.gmra.mxu0 %v125
    %v3200 = vpop.f32.mrf.mxu0
    %v3201 = vadd.f32 %v585, %v3200
    %v3202 = vpop.f32.mrf.mxu0
    %3203 = vdwg.mxu0
    %3204 = vmatpush.bf16.msra.mxu0 %v2211
    %3205 = vmatpush.bf16.msra.mxu0 %v2162
    %3206 = vmatpush.bf16.msra.mxu0 %v2113
    %3207 = vmatpush.bf16.msra.mxu0 %v2064
    %3208 = vmatpush.bf16.msra.mxu0 %v2015
    %3209 = vmatpush.bf16.msra.mxu0 %v1966
    %3210 = vmatpush.bf16.msra.mxu0 %v1917
    %3211 = vmatpush.bf16.msra.mxu0 %v1868
    %3212 = vmatmul.bf16.gmra.mxu0 %v125
    %v3213 = vpop.f32.mrf.mxu0
    %v3214 = vadd.f32 %v586, %v3213
    %v3215 = vpop.f32.mrf.mxu0
    %3216 = vdwg.mxu0
    %3217 = vmatpush.bf16.msra.mxu0 %v2212
    %3218 = vmatpush.bf16.msra.mxu0 %v2163
    %3219 = vmatpush.bf16.msra.mxu0 %v2114
    %3220 = vmatpush.bf16.msra.mxu0 %v2065
    %3221 = vmatpush.bf16.msra.mxu0 %v2016
    %3222 = vmatpush.bf16.msra.mxu0 %v1967
    %3223 = vmatpush.bf16.msra.mxu0 %v1918
    %3224 = vmatpush.bf16.msra.mxu0 %v1869
    %3225 = vmatmul.bf16.gmra.mxu0 %v125
    %v3226 = vpop.f32.mrf.mxu0
    %v3227 = vadd.f32 %v587, %v3226
    %v3228 = vpop.f32.mrf.mxu0
    %3229 = vdwg.mxu0
    %3230 = vmatpush.bf16.msra.mxu0 %v2213
    %3231 = vmatpush.bf16.msra.mxu0 %v2164
    %3232 = vmatpush.bf16.msra.mxu0 %v2115
    %3233 = vmatpush.bf16.msra.mxu0 %v2066
    %3234 = vmatpush.bf16.msra.mxu0 %v2017
    %3235 = vmatpush.bf16.msra.mxu0 %v1968
    %3236 = vmatpush.bf16.msra.mxu0 %v1919
    %3237 = vmatpush.bf16.msra.mxu0 %v1870
    %3238 = vmatmul.bf16.gmra.mxu0 %v125
    %v3239 = vpop.f32.mrf.mxu0
    %v3240 = vadd.f32 %v588, %v3239
    %v3241 = vpop.f32.mrf.mxu0
    %3242 = vdwg.mxu0
    %v3243 = vmax.f32 %v2616, 0.0
    %v3244 = vmax.f32 %v2629, 0.0
    %v3245 = vmax.f32 %v2642, 0.0
    %v3246 = vmax.f32 %v2655, 0.0
    %v3247 = vmax.f32 %v2668, 0.0
    %v3248 = vmax.f32 %v2681, 0.0
    %v3249 = vmax.f32 %v2694, 0.0
    %v3250 = vmax.f32 %v2707, 0.0
    %v3251 = vmax.f32 %v2720, 0.0
    %v3252 = vmax.f32 %v2733, 0.0
    %v3253 = vmax.f32 %v2746, 0.0
    %v3254 = vmax.f32 %v2759, 0.0
    %v3255 = vmax.f32 %v2772, 0.0
    %v3256 = vmax.f32 %v2785, 0.0
    %v3257 = vmax.f32 %v2798, 0.0
    %v3258 = vmax.f32 %v2811, 0.0
    %v3259 = vmax.f32 %v2824, 0.0
    %v3260 = vmax.f32 %v2837, 0.0
    %v3261 = vmax.f32 %v2850, 0.0
    %v3262 = vmax.f32 %v2863, 0.0
    %v3263 = vmax.f32 %v2876, 0.0
    %v3264 = vmax.f32 %v2889, 0.0
    %v3265 = vmax.f32 %v2902, 0.0
    %v3266 = vmax.f32 %v2915, 0.0
    %v3267 = vmax.f32 %v2928, 0.0
    %v3268 = vmax.f32 %v2941, 0.0
    %v3269 = vmax.f32 %v2954, 0.0
    %v3270 = vmax.f32 %v2967, 0.0
    %v3271 = vmax.f32 %v2980, 0.0
    %v3272 = vmax.f32 %v2993, 0.0
    %v3273 = vmax.f32 %v3006, 0.0
    %v3274 = vmax.f32 %v3019, 0.0
    %v3275 = vmax.f32 %v3032, 0.0
    %v3276 = vmax.f32 %v3045, 0.0
    %v3277 = vmax.f32 %v3058, 0.0
    %v3278 = vmax.f32 %v3071, 0.0
    %v3279 = vmax.f32 %v3084, 0.0
    %v3280 = vmax.f32 %v3097, 0.0
    %v3281 = vmax.f32 %v3110, 0.0
    %v3282 = vmax.f32 %v3123, 0.0
    %v3283 = vmax.f32 %v3136, 0.0
    %v3284 = vmax.f32 %v3149, 0.0
    %v3285 = vmax.f32 %v3162, 0.0
    %v3286 = vmax.f32 %v3175, 0.0
    %v3287 = vmax.f32 %v3188, 0.0
    %v3288 = vmax.f32 %v3201, 0.0
    %v3289 = vmax.f32 %v3214, 0.0
    %v3290 = vmax.f32 %v3227, 0.0
    %v3291 = vmax.f32 %v3240, 0.0
    %v3292 = vpack.c.bf16 %v3244, %v3243
    %v3293 = vpack.c.bf16 %v3246, %v3245
    %v3294 = vpack.c.bf16 %v3248, %v3247
    %v3295 = vpack.c.bf16 %v3250, %v3249
    %v3296 = vpack.c.bf16 %v3252, %v3251
    %v3297 = vpack.c.bf16 %v3254, %v3253
    %v3298 = vpack.c.bf16 %v3256, %v3255
    %v3299 = vpack.c.bf16 %v3258, %v3257
    %v3300 = vpack.c.bf16 %v3260, %v3259
    %v3301 = vpack.c.bf16 %v3262, %v3261
    %v3302 = vpack.c.bf16 %v3264, %v3263
    %v3303 = vpack.c.bf16 %v3266, %v3265
    %v3304 = vpack.c.bf16 %v3268, %v3267
    %v3305 = vpack.c.bf16 %v3270, %v3269
    %v3306 = vpack.c.bf16 %v3272, %v3271
    %v3307 = vpack.c.bf16 %v3274, %v3273
    %v3308 = vpack.c.bf16 %v3276, %v3275
    %v3309 = vpack.c.bf16 %v3278, %v3277
    %v3310 = vpack.c.bf16 %v3280, %v3279
    %v3311 = vpack.c.bf16 %v3282, %v3281
    %v3312 = vpack.c.bf16 %v3284, %v3283
    %v3313 = vpack.c.bf16 %v3286, %v3285
    %v3314 = vpack.c.bf16 %v3288, %v3287
    %v3315 = vpack.c.bf16 %v3290, %v3289
    %v3316 = vpack.c.bf16 %v3291, %v3291
    %v3342 = vrot.slane %v3292, 3
    %v3343 = vrot.slane %v3293, 6
    %v3344 = vrot.slane %v3293, 1
    %v3345 = vrot.slane %v3294, 4
    %v3346 = vrot.slane %v3294, 7
    %v3347 = vrot.slane %v3295, 2
    %v3348 = vrot.slane %v3295, 5
    %v3349 = vrot.slane %v3296, 3
    %v3350 = vrot.slane %v3297, 6
    %v3351 = vrot.slane %v3297, 1
    %v3352 = vrot.slane %v3298, 4
    %v3353 = vrot.slane %v3298, 7
    %v3354 = vrot.slane %v3299, 2
    %v3355 = vrot.slane %v3299, 5
    %v3356 = vrot.slane %v3300, 3
    %v3357 = vrot.slane %v3301, 6
    %v3358 = vrot.slane %v3301, 1
    %v3359 = vrot.slane %v3302, 4
    %v3360 = vrot.slane %v3302, 7
    %v3361 = vrot.slane %v3303, 2
    %v3362 = vrot.slane %v3303, 5
    %v3363 = vrot.slane %v3304, 3
    %v3364 = vrot.slane %v3305, 6
    %v3365 = vrot.slane %v3305, 1
    %v3366 = vrot.slane %v3306, 4
    %v3367 = vrot.slane %v3306, 7
    %v3368 = vrot.slane %v3307, 2
    %v3369 = vrot.slane %v3307, 5
    %v3370 = vrot.slane %v3308, 3
    %v3371 = vrot.slane %v3309, 6
    %v3372 = vrot.slane %v3309, 1
    %v3373 = vrot.slane %v3310, 4
    %v3374 = vrot.slane %v3310, 7
    %v3375 = vrot.slane %v3311, 2
    %v3376 = vrot.slane %v3311, 5
    %v3377 = vrot.slane %v3312, 3
    %v3378 = vrot.slane %v3313, 6
    %v3379 = vrot.slane %v3313, 1
    %v3380 = vrot.slane %v3314, 4
    %v3381 = vrot.slane %v3314, 7
    %v3382 = vrot.slane %v3315, 2
    %v3383 = vrot.slane %v3315, 5
    %v3384 = vrot.slane %v3316, 3
    %vm3385 = vcmask 1040384
    %v3388 = vsel %vm3385, %v3292, %v3342
    %vm3389 = vcmask 1042434
    %v3392 = vsel %vm3389, %v3343, %v3344
    %vm3393 = vcmask 1041408
    %v3394 = vsel %vm3393, %v3388, %v3392
    %vm3395 = vcmask 1044484
    %v3398 = vsel %vm3395, %v3345, %v3346
    %vm3399 = vcmask 1046534
    %v3402 = vsel %vm3399, %v3347, %v3348
    %vm3403 = vcmask 1045508
    %v3404 = vsel %vm3403, %v3398, %v3402
    %vm3405 = vcmask 1043456
    %v3406 = vsel %vm3405, %v3394, %v3404
    %v3409 = vsel %vm3385, %v3296, %v3349
    %v3412 = vsel %vm3389, %v3350, %v3351
    %v3413 = vsel %vm3393, %v3409, %v3412
    %v3416 = vsel %vm3395, %v3352, %v3353
    %v3419 = vsel %vm3399, %v3354, %v3355
    %v3420 = vsel %vm3403, %v3416, %v3419
    %v3421 = vsel %vm3405, %v3413, %v3420
    %v3424 = vsel %vm3385, %v3300, %v3356
    %v3427 = vsel %vm3389, %v3357, %v3358
    %v3428 = vsel %vm3393, %v3424, %v3427
    %v3431 = vsel %vm3395, %v3359, %v3360
    %v3434 = vsel %vm3399, %v3361, %v3362
    %v3435 = vsel %vm3403, %v3431, %v3434
    %v3436 = vsel %vm3405, %v3428, %v3435
    %v3439 = vsel %vm3385, %v3304, %v3363
    %v3442 = vsel %vm3389, %v3364, %v3365
    %v3443 = vsel %vm3393, %v3439, %v3442
    %v3446 = vsel %vm3395, %v3366, %v3367
    %v3449 = vsel %vm3399, %v3368, %v3369
    %v3450 = vsel %vm3403, %v3446, %v3449
    %v3451 = vsel %vm3405, %v3443, %v3450
    %v3454 = vsel %vm3385, %v3308, %v3370
    %v3457 = vsel %vm3389, %v3371, %v3372
    %v3458 = vsel %vm3393, %v3454, %v3457
    %v3461 = vsel %vm3395, %v3373, %v3374
    %v3464 = vsel %vm3399, %v3375, %v3376
    %v3465 = vsel %vm3403, %v3461, %v3464
    %v3466 = vsel %vm3405, %v3458, %v3465
    %v3469 = vsel %vm3385, %v3312, %v3377
    %v3472 = vsel %vm3389, %v3378, %v3379
    %v3473 = vsel %vm3393, %v3469, %v3472
    %v3476 = vsel %vm3395, %v3380, %v3381
    %v3479 = vsel %vm3399, %v3382, %v3383
    %v3480 = vsel %vm3403, %v3476, %v3479
    %v3481 = vsel %vm3405, %v3473, %v3480
    %v3484 = vsel %vm3385, %v3316, %v3384
    %3492 = vst [vmem:[%s5] sm:$0xff] %v3406
    %3493 = vst [vmem:[%s5 + $0x8] sm:$0xff] %v3421
    %3494 = vst [vmem:[%s5 + $0x10] sm:$0xff] %v3436
    %3495 = vst [vmem:[%s5 + $0x18] sm:$0xff] %v3451
    %3496 = vst [vmem:[%s5 + $0x20] sm:$0xff] %v3466
    %3497 = vst [vmem:[%s5 + $0x28] sm:$0xff] %v3481
    %3498 = vst [vmem:[%s5 + $0x30] sm:$0x1] %v3484
    // Predicated region
    $region42: #{conv_decoder_forward.3} parent=1 // pred_check
      _
    $region43: #{conv_decoder_forward.3} parent=1 // pred_check_branch
      %3500 = sbr.rel (0) target = $region45
    $region44: #{conv_decoder_forward.3} parent=1 // pred_region
      _
    $region45: #{conv_decoder_forward.3} parent=1 // pred_fallthru
      _
    // Predicated region
    $region46: #{conv_decoder_forward.3} parent=1 // pred_check
      _
    $region47: #{conv_decoder_forward.3} parent=1 // pred_check_branch
      %3502 = sbr.rel (0) target = $region49
    $region48: #{conv_decoder_forward.3} parent=1 // pred_region
      _
    $region49: #{conv_decoder_forward.3} parent=1 // pred_fallthru
      _
    %3503 = vsyncpa [#allocation3], 1
    %3504 = vsyncpa [#allocation5], 1
    %3505 = vsyncpa [#allocation8], 1

// kernel: conv_decoder_forward.5
$region0: #{conv_decoder_forward.5}
  #allocation0 [shape = 'u32[]', space=smem, size = 0x4, offset = 0x4, fixed_abs, tag = 'smem constant byte address 0x4 - core index']
  #allocation1 [shape = 'u32[72,128]{1,0:T(1,128)}', space=vmem, size = 0x9000, scoped, tag = 'internal scratch']
  %s0 = inlined_call_operand.vmem [shape: bf16[2,196,576], index: 0, kind: input, shape index: {}]
  %s1 = inlined_call_operand.vmem [shape: f32[2,196,4], index: 1, kind: input, shape index: {}]
  %s2 = inlined_call_operand.vmem [shape: bf16[576,128], index: 2, kind: input, shape index: {}]
  %s3 = inlined_call_operand.vmem [shape: f32[1,128], index: 3, kind: input, shape index: {}]
  %s4 = inlined_call_operand.vmem [shape: f32[2,1,128], index: 4, kind: output, shape index: {}]
  %s5 = sld [smem:[#allocation0]]
  $region49: #{conv_decoder_forward.5} parent=0
    _
  %s7 = ssub.s32 1, %s5
  %s8 = scalar_select 0, %s7, %s5
  loop: start=0, step=1, limit=4
  $region2: #{conv_decoder_forward.5} parent=0 // loop_pre_header
    _
  $region3: #{conv_decoder_forward.5} parent=0 // loop_header
    %s10 = sphi 0, %s14
    %p11 = scmp.ge.s32.totalorder %s10, 4
    %s20 = sphi 0, %s22
    %s23 = sphi 0, %s20
    %s24 = sphi 0, %s23
    %s40 = sphi 0, %s24
    %s46 = sphi 0, %s48
    %s49 = sphi 0, %s46
    %s50 = sphi 0, %s49
    %s66 = sphi 0, %s50
    %s70 = sphi 0, %s70
    %s72 = sphi 0, %s70
    %s73 = sphi 0, %s72
    %s87 = sphi 0, %s73
    %s91 = sphi 0, %s91
    %s93 = sphi 0, %s91
    %s94 = sphi 0, %s93
    %s108 = sphi 0, %s94
    %s114 = sphi 0, %s116
    %s117 = sphi 0, %s114
    %s118 = sphi 0, %s117
    %s134 = sphi 0, %s118
  $region4: #{conv_decoder_forward.5} parent=0 // loop_header_branch
    %13 = sbr.rel (%p11) target = $region8
  $region5: #{conv_decoder_forward.5} parent=0 // loop_body
    %s15 = ssub.s32 %s10, 1
    %s16 = ssub.s32 %s10, 2
    %s17 = sadd.s32 %s10, 1
    %s18 = ssub.s32 %s10, %s17
    %p19 = scmp.eq.s32.totalorder %s18, 0
    %s21 = sadd.s32 %s20, 1
    %s22 = scalar_select %p19, %s20, %s21
    %p25 = pneg %p19
    %p26 = scmp.eq.s32.totalorder %s10, 1
    %p27 = por %p25, %p26
    %p28 = scmp.ne.s32.totalorder %s20, %s23
    %p29 = scmp.eq.s32.totalorder %s10, 0
    %p30 = por %p28, %p29
    %p31 = scmp.ne.s32.totalorder %s20, %s23
    %p32 = scmp.eq.s32.totalorder %s15, 1
    %p33 = por %p31, %p32
    %p34 = scmp.ne.s32.totalorder %s23, %s24
    %p35 = scmp.eq.s32.totalorder %s15, 0
    %p36 = por %p34, %p35
    %p37 = scmp.ne.s32.totalorder %s23, %s24
    %p38 = scmp.eq.s32.totalorder %s16, 1
    %p39 = por %p37, %p38
    %p41 = scmp.ne.s32.totalorder %s24, %s40
    %p42 = scmp.eq.s32.totalorder %s16, 0
    %p43 = por %p41, %p42
    %s44 = ssub.s32 %s10, %s17
    %p45 = scmp.eq.s32.totalorder %s44, 0
    %s47 = sadd.s32 %s46, 1
    %s48 = scalar_select %p45, %s46, %s47
    %p51 = pneg %p45
    %p52 = scmp.eq.s32.totalorder %s10, 1
    %p53 = por %p51, %p52
    %p54 = scmp.ne.s32.totalorder %s46, %s49
    %p55 = scmp.eq.s32.totalorder %s10, 0
    %p56 = por %p54, %p55
    %p57 = scmp.ne.s32.totalorder %s46, %s49
    %p58 = scmp.eq.s32.totalorder %s15, 1
    %p59 = por %p57, %p58
    %p60 = scmp.ne.s32.totalorder %s49, %s50
    %p61 = scmp.eq.s32.totalorder %s15, 0
    %p62 = por %p60, %p61
    %p63 = scmp.ne.s32.totalorder %s49, %s50
    %p64 = scmp.eq.s32.totalorder %s16, 1
    %p65 = por %p63, %p64
    %p67 = scmp.ne.s32.totalorder %s50, %s66
    %p68 = scmp.eq.s32.totalorder %s16, 0
    %p69 = por %p67, %p68
    %s71 = sadd.s32 %s70, 1
    %p74 = scmp.eq.s32.totalorder %s10, 1
    %p75 = scmp.ne.s32.totalorder %s70, %s72
    %p76 = scmp.eq.s32.totalorder %s10, 0
    %p77 = por %p75, %p76
    %p78 = scmp.ne.s32.totalorder %s70, %s72
    %p79 = scmp.eq.s32.totalorder %s15, 1
    %p80 = por %p78, %p79
    %p81 = scmp.ne.s32.totalorder %s72, %s73
    %p82 = scmp.eq.s32.totalorder %s15, 0
    %p83 = por %p81, %p82
    %p84 = scmp.ne.s32.totalorder %s72, %s73
    %p85 = scmp.eq.s32.totalorder %s16, 1
    %p86 = por %p84, %p85
    %p88 = scmp.ne.s32.totalorder %s73, %s87
    %p89 = scmp.eq.s32.totalorder %s16, 0
    %p90 = por %p88, %p89
    %s92 = sadd.s32 %s91, 1
    %p95 = scmp.eq.s32.totalorder %s10, 1
    %p96 = scmp.ne.s32.totalorder %s91, %s93
    %p97 = scmp.eq.s32.totalorder %s10, 0
    %p98 = por %p96, %p97
    %p99 = scmp.ne.s32.totalorder %s91, %s93
    %p100 = scmp.eq.s32.totalorder %s15, 1
    %p101 = por %p99, %p100
    %p102 = scmp.ne.s32.totalorder %s93, %s94
    %p103 = scmp.eq.s32.totalorder %s15, 0
    %p104 = por %p102, %p103
    %p105 = scmp.ne.s32.totalorder %s93, %s94
    %p106 = scmp.eq.s32.totalorder %s16, 1
    %p107 = por %p105, %p106
    %p109 = scmp.ne.s32.totalorder %s94, %s108
    %p110 = scmp.eq.s32.totalorder %s16, 0
    %p111 = por %p109, %p110
    %s112 = ssub.s32 %s10, %s17
    %p113 = scmp.eq.s32.totalorder %s112, 0
    %s115 = sadd.s32 %s114, 1
    %s116 = scalar_select %p113, %s114, %s115
    %p119 = pneg %p113
    %p120 = scmp.eq.s32.totalorder %s10, 1
    %p121 = por %p119, %p120
    %p122 = scmp.ne.s32.totalorder %s114, %s117
    %p123 = scmp.eq.s32.totalorder %s10, 0
    %p124 = por %p122, %p123
    %p125 = scmp.ne.s32.totalorder %s114, %s117
    %p126 = scmp.eq.s32.totalorder %s15, 1
    %p127 = por %p125, %p126
    %p128 = scmp.ne.s32.totalorder %s117, %s118
    %p129 = scmp.eq.s32.totalorder %s15, 0
    %p130 = por %p128, %p129
    %p131 = scmp.ne.s32.totalorder %s117, %s118
    %p132 = scmp.eq.s32.totalorder %s16, 1
    %p133 = por %p131, %p132
    %p135 = scmp.ne.s32.totalorder %s118, %s134
    %p136 = scmp.eq.s32.totalorder %s16, 0
    %p137 = por %p135, %p136
    %p138 = scmp.le.s32.totalorder 1, %s10
    %p139 = scmp.lt.s32.totalorder %s10, 3
    %p140 = pnand %p138, %p139
    %p141 = pneg %p140
    // Predicated region
    $region9: #{conv_decoder_forward.5} parent=5 // pred_check
      _
    $region10: #{conv_decoder_forward.5} parent=5 // pred_check_branch
      %143 = sbr.rel (%p140) target = $region12
    $region11: #{conv_decoder_forward.5} parent=5 // pred_region
      %s144 = ssub.s32 %s10, 1
      // Predicated region
      $region13: #{conv_decoder_forward.5} parent=11 // pred_check
        %p145 = pneg %p83
      $region14: #{conv_decoder_forward.5} parent=11 // pred_check_branch
        %147 = sbr.rel (%p145) target = $region16
      $region15: #{conv_decoder_forward.5} parent=11 // pred_region
        _
      $region16: #{conv_decoder_forward.5} parent=11 // pred_fallthru
        _
      // Predicated region
      $region17: #{conv_decoder_forward.5} parent=11 // pred_check
        %p148 = pneg %p104
      $region18: #{conv_decoder_forward.5} parent=11 // pred_check_branch
        %150 = sbr.rel (%p148) target = $region20
      $region19: #{conv_decoder_forward.5} parent=11 // pred_region
        _
      $region20: #{conv_decoder_forward.5} parent=11 // pred_fallthru
        _
    $region12: #{conv_decoder_forward.5} parent=5 // pred_fallthru
      _
    %p151 = scmp.lt.s32.totalorder %s10, 2
    // Predicated region
    $region21: #{conv_decoder_forward.5} parent=5 // pred_check
      %p152 = pneg %p151
    $region22: #{conv_decoder_forward.5} parent=5 // pred_check_branch
      %154 = sbr.rel (%p152) target = $region24
    $region23: #{conv_decoder_forward.5} parent=5 // pred_region
      // Predicated region
      $region25: #{conv_decoder_forward.5} parent=23 // pred_check
        %p155 = pneg %p30
      $region26: #{conv_decoder_forward.5} parent=23 // pred_check_branch
        %157 = sbr.rel (%p155) target = $region28
      $region27: #{conv_decoder_forward.5} parent=23 // pred_region
        %p158 = scmp.lt.s32.totalorder %s10, 1
        %s159 = scalar_select %p158, %s10, 1
        %s160 = smul.addr %s159, 125
        %s161 = smul.addr %s160, 4
        %s162 = scalar_lea.vmem %s0, %s161
      $region28: #{conv_decoder_forward.5} parent=23 // pred_fallthru
        _
      // Predicated region
      $region29: #{conv_decoder_forward.5} parent=23 // pred_check
        %p163 = pneg %p56
      $region30: #{conv_decoder_forward.5} parent=23 // pred_check_branch
        %165 = sbr.rel (%p163) target = $region32
      $region31: #{conv_decoder_forward.5} parent=23 // pred_region
        %p166 = scmp.lt.s32.totalorder %s10, 1
        %s167 = scalar_select %p166, %s10, 1
        %s168 = smul.addr %s167, 25
        %s169 = smul.addr %s168, 8
        %s170 = scalar_lea.vmem %s1, %s169
      $region32: #{conv_decoder_forward.5} parent=23 // pred_fallthru
        _
    $region24: #{conv_decoder_forward.5} parent=5 // pred_fallthru
      _
    %p171 = scmp.le.s32.totalorder 1, %s10
    %p172 = scmp.lt.s32.totalorder %s10, 3
    %p173 = pnand %p171, %p172
    %p174 = pneg %p173
    // Predicated region
    $region33: #{conv_decoder_forward.5} parent=5 // pred_check
      _
    $region34: #{conv_decoder_forward.5} parent=5 // pred_check_branch
      %176 = sbr.rel (%p173) target = $region36
    $region35: #{conv_decoder_forward.5} parent=5 // pred_region
      %s177 = ssub.s32 %s10, 1
      %p178 = scmp.lt.s32.totalorder %s15, 1
      %s179 = scalar_select %p178, %s15, 1
      %s180 = smul.addr %s179, 125
      %s181 = smul.addr %s180, 4
      %s182 = scalar_lea.vmem %s0, %s181
      %p183 = pneg %p36
      %p184 = pneg %p33
      %p185 = scmp.lt.s32.totalorder %s15, 1
      %s186 = scalar_select %p185, %s15, 1
      %s187 = smul.addr %s186, 25
      %s188 = smul.addr %s187, 8
      %s189 = scalar_lea.vmem %s1, %s188
      %p190 = pneg %p62
      %p191 = pneg %p59
      %p192 = pneg %p83
      %p193 = pneg %p80
      %p194 = pneg %p104
      %p195 = pneg %p101
      %p196 = pneg %p130
      %p197 = pneg %p127
      %p198 = scmp.lt.s32.totalorder %s15, 1
      %s199 = scalar_select %p198, %s15, 1
      %s200 = scalar_lea.vmem %s4, %s199
      %p201 = scmp.lt.s32.totalorder %s15, 1
      %s202 = scalar_select %p201, %s15, 1
      %s203 = smul.addr %s202, 125
      %s204 = smul.addr %s203, 4
      %s205 = scalar_lea.vmem %s0, %s204
      %p206 = scmp.lt.s32.totalorder %s15, 1
      %s207 = scalar_select %p206, %s15, 1
      %s208 = smul.addr %s207, 25
      %s209 = smul.addr %s208, 8
      %s210 = scalar_lea.vmem %s1, %s209
      %p211 = scmp.lt.s32.totalorder %s15, 1
      %s212 = scalar_select %p211, %s15, 1
      %s213 = scalar_lea.vmem %s4, %s212
      %v215 = vld [vmem:[%s205] sm:$0xff]
      %v216 = vld [vmem:[%s205 + $0x8] sm:$0xff]
      %v217 = vld [vmem:[%s205 + $0x10] sm:$0xf]
      %v218 = vld [vmem:[%s205 + $0x14] sm:$0xff]
      %v219 = vld [vmem:[%s205 + $0x1c] sm:$0xff]
      %v220 = vld [vmem:[%s205 + $0x24] sm:$0xf]
      %v221 = vld [vmem:[%s205 + $0x28] sm:$0xff]
      %v222 = vld [vmem:[%s205 + $0x30] sm:$0xff]
      %v223 = vld [vmem:[%s205 + $0x38] sm:$0xf]
      %v224 = vld [vmem:[%s205 + $0x3c] sm:$0xff]
      %v225 = vld [vmem:[%s205 + $0x44] sm:$0xff]
      %v226 = vld [vmem:[%s205 + $0x4c] sm:$0xf]
      %v227 = vld [vmem:[%s205 + $0x50] sm:$0xff]
      %v228 = vld [vmem:[%s205 + $0x58] sm:$0xff]
      %v229 = vld [vmem:[%s205 + $0x60] sm:$0xf]
      %v230 = vld [vmem:[%s205 + $0x64] sm:$0xff]
      %v231 = vld [vmem:[%s205 + $0x6c] sm:$0xff]
      %v232 = vld [vmem:[%s205 + $0x74] sm:$0xf]
      %v233 = vld [vmem:[%s205 + $0x78] sm:$0xff]
      %v234 = vld [vmem:[%s205 + $0x80] sm:$0xff]
      %v235 = vld [vmem:[%s205 + $0x88] sm:$0xf]
      %v236 = vld [vmem:[%s205 + $0x8c] sm:$0xff]
      %v237 = vld [vmem:[%s205 + $0x94] sm:$0xff]
      %v238 = vld [vmem:[%s205 + $0x9c] sm:$0xf]
      %v239 = vld [vmem:[%s205 + $0xa0] sm:$0xff]
      %v240 = vld [vmem:[%s205 + $0xa8] sm:$0xff]
      %v241 = vld [vmem:[%s205 + $0xb0] sm:$0xf]
      %v242 = vld [vmem:[%s205 + $0xb4] sm:$0xff]
      %v243 = vld [vmem:[%s205 + $0xbc] sm:$0xff]
      %v244 = vld [vmem:[%s205 + $0xc4] sm:$0xf]
      %v245 = vld [vmem:[%s205 + $0xc8] sm:$0xff]
      %v246 = vld [vmem:[%s205 + $0xd0] sm:$0xff]
      %v247 = vld [vmem:[%s205 + $0xd8] sm:$0xf]
      %v248 = vld [vmem:[%s205 + $0xdc] sm:$0xff]
      %v249 = vld [vmem:[%s205 + $0xe4] sm:$0xff]
      %v250 = vld [vmem:[%s205 + $0xec] sm:$0xf]
      %v251 = vld [vmem:[%s205 + $0xf0] sm:$0xff]
      %v252 = vld [vmem:[%s205 + $0xf8] sm:$0xff]
      %v253 = vld [vmem:[%s205 + $0x100] sm:$0xf]
      %v254 = vld [vmem:[%s205 + $0x104] sm:$0xff]
      %v255 = vld [vmem:[%s205 + $0x10c] sm:$0xff]
      %v256 = vld [vmem:[%s205 + $0x114] sm:$0xf]
      %v257 = vld [vmem:[%s205 + $0x118] sm:$0xff]
      %v258 = vld [vmem:[%s205 + $0x120] sm:$0xff]
      %v259 = vld [vmem:[%s205 + $0x128] sm:$0xf]
      %v260 = vld [vmem:[%s205 + $0x12c] sm:$0xff]
      %v261 = vld [vmem:[%s205 + $0x134] sm:$0xff]
      %v262 = vld [vmem:[%s205 + $0x13c] sm:$0xf]
      %v263 = vld [vmem:[%s205 + $0x140] sm:$0xff]
      %v264 = vld [vmem:[%s205 + $0x148] sm:$0xff]
      %v265 = vld [vmem:[%s205 + $0x150] sm:$0xf]
      %v266 = vld [vmem:[%s205 + $0x154] sm:$0xff]
      %v267 = vld [vmem:[%s205 + $0x15c] sm:$0xff]
      %v268 = vld [vmem:[%s205 + $0x164] sm:$0xf]
      %v269 = vld [vmem:[%s205 + $0x168] sm:$0xff]
      %v270 = vld [vmem:[%s205 + $0x170] sm:$0xff]
      %v271 = vld [vmem:[%s205 + $0x178] sm:$0xf]
      %v272 = vld [vmem:[%s205 + $0x17c] sm:$0xff]
      %v273 = vld [vmem:[%s205 + $0x184] sm:$0xff]
      %v274 = vld [vmem:[%s205 + $0x18c] sm:$0xf]
      %v275 = vld [vmem:[%s205 + $0x190] sm:$0xff]
      %v276 = vld [vmem:[%s205 + $0x198] sm:$0xff]
      %v277 = vld [vmem:[%s205 + $0x1a0] sm:$0xf]
      %v278 = vld [vmem:[%s205 + $0x1a4] sm:$0xff]
      %v279 = vld [vmem:[%s205 + $0x1ac] sm:$0xff]
      %v280 = vld [vmem:[%s205 + $0x1b4] sm:$0xf]
      %v281 = vld [vmem:[%s205 + $0x1b8] sm:$0xff]
      %v282 = vld [vmem:[%s205 + $0x1c0] sm:$0xff]
      %v283 = vld [vmem:[%s205 + $0x1c8] sm:$0xf]
      %v284 = vld [vmem:[%s205 + $0x1cc] sm:$0xff]
      %v285 = vld [vmem:[%s205 + $0x1d4] sm:$0xff]
      %v286 = vld [vmem:[%s205 + $0x1dc] sm:$0xf]
      %v287 = vld [vmem:[%s205 + $0x1e0] sm:$0x33]
      %v288 = vld [vmem:[%s205 + $0x1e8] sm:$0x33]
      %v289 = vld [vmem:[%s205 + $0x1f0] sm:$0x3]
      %v290 = vld [vmem:[%s2] sm:$0xf]
      %v291 = vld [vmem:[%s2 + $0x4] sm:$0xf]
      %v292 = vld [vmem:[%s2 + $0x8] sm:$0xf]
      %v293 = vld [vmem:[%s2 + $0xc] sm:$0xf]
      %v294 = vld [vmem:[%s2 + $0x10] sm:$0xf]
      %v295 = vld [vmem:[%s2 + $0x14] sm:$0xf]
      %v296 = vld [vmem:[%s2 + $0x18] sm:$0xf]
      %v297 = vld [vmem:[%s2 + $0x1c] sm:$0xf]
      %v298 = vld [vmem:[%s2 + $0x20] sm:$0xf]
      %v299 = vld [vmem:[%s2 + $0x24] sm:$0xf]
      %v300 = vld [vmem:[%s2 + $0x28] sm:$0xf]
      %v301 = vld [vmem:[%s2 + $0x2c] sm:$0xf]
      %v302 = vld [vmem:[%s2 + $0x30] sm:$0xf]
      %v303 = vld [vmem:[%s2 + $0x34] sm:$0xf]
      %v304 = vld [vmem:[%s2 + $0x38] sm:$0xf]
      %v305 = vld [vmem:[%s2 + $0x3c] sm:$0xf]
      %v306 = vld [vmem:[%s2 + $0x40] sm:$0xf]
      %v307 = vld [vmem:[%s2 + $0x44] sm:$0xf]
      %v308 = vld [vmem:[%s2 + $0x48] sm:$0xf]
      %v309 = vld [vmem:[%s2 + $0x4c] sm:$0xf]
      %v310 = vld [vmem:[%s2 + $0x50] sm:$0xf]
      %v311 = vld [vmem:[%s2 + $0x54] sm:$0xf]
      %v312 = vld [vmem:[%s2 + $0x58] sm:$0xf]
      %v313 = vld [vmem:[%s2 + $0x5c] sm:$0xf]
      %v314 = vld [vmem:[%s2 + $0x60] sm:$0xf]
      %v315 = vld [vmem:[%s2 + $0x64] sm:$0xf]
      %v316 = vld [vmem:[%s2 + $0x68] sm:$0xf]
      %v317 = vld [vmem:[%s2 + $0x6c] sm:$0xf]
      %v318 = vld [vmem:[%s2 + $0x70] sm:$0xf]
      %v319 = vld [vmem:[%s2 + $0x74] sm:$0xf]
      %v320 = vld [vmem:[%s2 + $0x78] sm:$0xf]
      %v321 = vld [vmem:[%s2 + $0x7c] sm:$0xf]
      %v322 = vld [vmem:[%s2 + $0x80] sm:$0xf]
      %v323 = vld [vmem:[%s2 + $0x84] sm:$0xf]
      %v324 = vld [vmem:[%s2 + $0x88] sm:$0xf]
      %v325 = vld [vmem:[%s2 + $0x8c] sm:$0xf]
      %v326 = vld [vmem:[%s2 + $0x90] sm:$0xf]
      %v327 = vld [vmem:[%s2 + $0x94] sm:$0xf]
      %v328 = vld [vmem:[%s2 + $0x98] sm:$0xf]
      %v329 = vld [vmem:[%s2 + $0x9c] sm:$0xf]
      %v330 = vld [vmem:[%s2 + $0xa0] sm:$0xf]
      %v331 = vld [vmem:[%s2 + $0xa4] sm:$0xf]
      %v332 = vld [vmem:[%s2 + $0xa8] sm:$0xf]
      %v333 = vld [vmem:[%s2 + $0xac] sm:$0xf]
      %v334 = vld [vmem:[%s2 + $0xb0] sm:$0xf]
      %v335 = vld [vmem:[%s2 + $0xb4] sm:$0xf]
      %v336 = vld [vmem:[%s2 + $0xb8] sm:$0xf]
      %v337 = vld [vmem:[%s2 + $0xbc] sm:$0xf]
      %v338 = vld [vmem:[%s2 + $0xc0] sm:$0xf]
      %v339 = vld [vmem:[%s2 + $0xc4] sm:$0xf]
      %v340 = vld [vmem:[%s2 + $0xc8] sm:$0xf]
      %v341 = vld [vmem:[%s2 + $0xcc] sm:$0xf]
      %v342 = vld [vmem:[%s2 + $0xd0] sm:$0xf]
      %v343 = vld [vmem:[%s2 + $0xd4] sm:$0xf]
      %v344 = vld [vmem:[%s2 + $0xd8] sm:$0xf]
      %v345 = vld [vmem:[%s2 + $0xdc] sm:$0xf]
      %v346 = vld [vmem:[%s2 + $0xe0] sm:$0xf]
      %v347 = vld [vmem:[%s2 + $0xe4] sm:$0xf]
      %v348 = vld [vmem:[%s2 + $0xe8] sm:$0xf]
      %v349 = vld [vmem:[%s2 + $0xec] sm:$0xf]
      %v350 = vld [vmem:[%s2 + $0xf0] sm:$0xf]
      %v351 = vld [vmem:[%s2 + $0xf4] sm:$0xf]
      %v352 = vld [vmem:[%s2 + $0xf8] sm:$0xf]
      %v353 = vld [vmem:[%s2 + $0xfc] sm:$0xf]
      %v354 = vld [vmem:[%s2 + $0x100] sm:$0xf]
      %v355 = vld [vmem:[%s2 + $0x104] sm:$0xf]
      %v356 = vld [vmem:[%s2 + $0x108] sm:$0xf]
      %v357 = vld [vmem:[%s2 + $0x10c] sm:$0xf]
      %v358 = vld [vmem:[%s2 + $0x110] sm:$0xf]
      %v359 = vld [vmem:[%s2 + $0x114] sm:$0xf]
      %v360 = vld [vmem:[%s2 + $0x118] sm:$0xf]
      %v361 = vld [vmem:[%s2 + $0x11c] sm:$0xf]
      %v362 = vld [vmem:[%s3] sm:$0x1]
      %v364 = vperm.slane %v362, 0
      %v441 = vunpack.c.l.b16 %v215
      %v442 = vunpack.c.h.b16 %v215
      %v443 = vunpack.c.l.b16 %v216
      %v444 = vunpack.c.h.b16 %v216
      %v445 = vunpack.c.l.b16 %v217
      %v446 = vunpack.c.l.b16 %v218
      %v447 = vunpack.c.h.b16 %v218
      %v448 = vunpack.c.l.b16 %v219
      %v449 = vunpack.c.h.b16 %v219
      %v450 = vunpack.c.l.b16 %v220
      %v451 = vunpack.c.l.b16 %v221
      %v452 = vunpack.c.h.b16 %v221
      %v453 = vunpack.c.l.b16 %v222
      %v454 = vunpack.c.h.b16 %v222
      %v455 = vunpack.c.l.b16 %v223
      %v456 = vunpack.c.l.b16 %v224
      %v457 = vunpack.c.h.b16 %v224
      %v458 = vunpack.c.l.b16 %v225
      %v459 = vunpack.c.h.b16 %v225
      %v460 = vunpack.c.l.b16 %v226
      %v461 = vunpack.c.l.b16 %v227
      %v462 = vunpack.c.h.b16 %v227
      %v463 = vunpack.c.l.b16 %v228
      %v464 = vunpack.c.h.b16 %v228
      %v465 = vunpack.c.l.b16 %v229
      %v466 = vunpack.c.l.b16 %v230
      %v467 = vunpack.c.h.b16 %v230
      %v468 = vunpack.c.l.b16 %v231
      %v469 = vunpack.c.h.b16 %v231
      %v470 = vunpack.c.l.b16 %v232
      %v471 = vunpack.c.l.b16 %v233
      %v472 = vunpack.c.h.b16 %v233
      %v473 = vunpack.c.l.b16 %v234
      %v474 = vunpack.c.h.b16 %v234
      %v475 = vunpack.c.l.b16 %v235
      %v476 = vunpack.c.l.b16 %v236
      %v477 = vunpack.c.h.b16 %v236
      %v478 = vunpack.c.l.b16 %v237
      %v479 = vunpack.c.h.b16 %v237
      %v480 = vunpack.c.l.b16 %v238
      %v481 = vunpack.c.l.b16 %v239
      %v482 = vunpack.c.h.b16 %v239
      %v483 = vunpack.c.l.b16 %v240
      %v484 = vunpack.c.h.b16 %v240
      %v485 = vunpack.c.l.b16 %v241
      %v486 = vunpack.c.l.b16 %v242
      %v487 = vunpack.c.h.b16 %v242
      %v488 = vunpack.c.l.b16 %v243
      %v489 = vunpack.c.h.b16 %v243
      %v490 = vunpack.c.l.b16 %v244
      %v491 = vunpack.c.l.b16 %v245
      %v492 = vunpack.c.h.b16 %v245
      %v493 = vunpack.c.l.b16 %v246
      %v494 = vunpack.c.h.b16 %v246
      %v495 = vunpack.c.l.b16 %v247
      %v496 = vunpack.c.l.b16 %v248
      %v497 = vunpack.c.h.b16 %v248
      %v498 = vunpack.c.l.b16 %v249
      %v499 = vunpack.c.h.b16 %v249
      %v500 = vunpack.c.l.b16 %v250
      %v501 = vunpack.c.l.b16 %v251
      %v502 = vunpack.c.h.b16 %v251
      %v503 = vunpack.c.l.b16 %v252
      %v504 = vunpack.c.h.b16 %v252
      %v505 = vunpack.c.l.b16 %v253
      %v506 = vunpack.c.l.b16 %v254
      %v507 = vunpack.c.h.b16 %v254
      %v508 = vunpack.c.l.b16 %v255
      %v509 = vunpack.c.h.b16 %v255
      %v510 = vunpack.c.l.b16 %v256
      %v511 = vunpack.c.l.b16 %v257
      %v512 = vunpack.c.h.b16 %v257
      %v513 = vunpack.c.l.b16 %v258
      %v514 = vunpack.c.h.b16 %v258
      %v515 = vunpack.c.l.b16 %v259
      %v516 = vunpack.c.l.b16 %v260
      %v517 = vunpack.c.h.b16 %v260
      %v518 = vunpack.c.l.b16 %v261
      %v519 = vunpack.c.h.b16 %v261
      %v520 = vunpack.c.l.b16 %v262
      %v521 = vunpack.c.l.b16 %v263
      %v522 = vunpack.c.h.b16 %v263
      %v523 = vunpack.c.l.b16 %v264
      %v524 = vunpack.c.h.b16 %v264
      %v525 = vunpack.c.l.b16 %v265
      %v526 = vunpack.c.l.b16 %v266
      %v527 = vunpack.c.h.b16 %v266
      %v528 = vunpack.c.l.b16 %v267
      %v529 = vunpack.c.h.b16 %v267
      %v530 = vunpack.c.l.b16 %v268
      %v531 = vunpack.c.l.b16 %v269
      %v532 = vunpack.c.h.b16 %v269
      %v533 = vunpack.c.l.b16 %v270
      %v534 = vunpack.c.h.b16 %v270
      %v535 = vunpack.c.l.b16 %v271
      %v536 = vunpack.c.l.b16 %v272
      %v537 = vunpack.c.h.b16 %v272
      %v538 = vunpack.c.l.b16 %v273
      %v539 = vunpack.c.h.b16 %v273
      %v540 = vunpack.c.l.b16 %v274
      %v541 = vunpack.c.l.b16 %v275
      %v542 = vunpack.c.h.b16 %v275
      %v543 = vunpack.c.l.b16 %v276
      %v544 = vunpack.c.h.b16 %v276
      %v545 = vunpack.c.l.b16 %v277
      %v546 = vunpack.c.l.b16 %v278
      %v547 = vunpack.c.h.b16 %v278
      %v548 = vunpack.c.l.b16 %v279
      %v549 = vunpack.c.h.b16 %v279
      %v550 = vunpack.c.l.b16 %v280
      %v551 = vunpack.c.l.b16 %v281
      %v552 = vunpack.c.h.b16 %v281
      %v553 = vunpack.c.l.b16 %v282
      %v554 = vunpack.c.h.b16 %v282
      %v555 = vunpack.c.l.b16 %v283
      %v556 = vunpack.c.l.b16 %v284
      %v557 = vunpack.c.h.b16 %v284
      %v558 = vunpack.c.l.b16 %v285
      %v559 = vunpack.c.h.b16 %v285
      %v560 = vunpack.c.l.b16 %v286
      %v561 = vunpack.c.l.b16 %v287
      %v562 = vunpack.c.h.b16 %v287
      %v563 = vunpack.c.l.b16 %v288
      %v564 = vunpack.c.h.b16 %v288
      %v565 = vunpack.c.l.b16 %v289
      %v566 = vpack.c.b16 %v446, %v441
      %v567 = vpack.c.b16 %v447, %v442
      %v568 = vpack.c.b16 %v448, %v443
      %v569 = vpack.c.b16 %v449, %v444
      %v570 = vpack.c.b16 %v450, %v445
      %v571 = vpack.c.b16 %v456, %v451
      %v572 = vpack.c.b16 %v457, %v452
      %v573 = vpack.c.b16 %v458, %v453
      %v574 = vpack.c.b16 %v459, %v454
      %v575 = vpack.c.b16 %v460, %v455
      %v576 = vpack.c.b16 %v466, %v461
      %v577 = vpack.c.b16 %v467, %v462
      %v578 = vpack.c.b16 %v468, %v463
      %v579 = vpack.c.b16 %v469, %v464
      %v580 = vpack.c.b16 %v470, %v465
      %v581 = vpack.c.b16 %v476, %v471
      %v582 = vpack.c.b16 %v477, %v472
      %v583 = vpack.c.b16 %v478, %v473
      %v584 = vpack.c.b16 %v479, %v474
      %v585 = vpack.c.b16 %v480, %v475
      %v586 = vpack.c.b16 %v486, %v481
      %v587 = vpack.c.b16 %v487, %v482
      %v588 = vpack.c.b16 %v488, %v483
      %v589 = vpack.c.b16 %v489, %v484
      %v590 = vpack.c.b16 %v490, %v485
      %v591 = vpack.c.b16 %v496, %v491
      %v592 = vpack.c.b16 %v497, %v492
      %v593 = vpack.c.b16 %v498, %v493
      %v594 = vpack.c.b16 %v499, %v494
      %v595 = vpack.c.b16 %v500, %v495
      %v596 = vpack.c.b16 %v506, %v501
      %v597 = vpack.c.b16 %v507, %v502
      %v598 = vpack.c.b16 %v508, %v503
      %v599 = vpack.c.b16 %v509, %v504
      %v600 = vpack.c.b16 %v510, %v505
      %v601 = vpack.c.b16 %v516, %v511
      %v602 = vpack.c.b16 %v517, %v512
      %v603 = vpack.c.b16 %v518, %v513
      %v604 = vpack.c.b16 %v519, %v514
      %v605 = vpack.c.b16 %v520, %v515
      %v606 = vpack.c.b16 %v526, %v521
      %v607 = vpack.c.b16 %v527, %v522
      %v608 = vpack.c.b16 %v528, %v523
      %v609 = vpack.c.b16 %v529, %v524
      %v610 = vpack.c.b16 %v530, %v525
      %v611 = vpack.c.b16 %v536, %v531
      %v612 = vpack.c.b16 %v537, %v532
      %v613 = vpack.c.b16 %v538, %v533
      %v614 = vpack.c.b16 %v539, %v534
      %v615 = vpack.c.b16 %v540, %v535
      %v616 = vpack.c.b16 %v546, %v541
      %v617 = vpack.c.b16 %v547, %v542
      %v618 = vpack.c.b16 %v548, %v543
      %v619 = vpack.c.b16 %v549, %v544
      %v620 = vpack.c.b16 %v550, %v545
      %v621 = vpack.c.b16 %v556, %v551
      %v622 = vpack.c.b16 %v557, %v552
      %v623 = vpack.c.b16 %v558, %v553
      %v624 = vpack.c.b16 %v559, %v554
      %v625 = vpack.c.b16 %v560, %v555
      %v626 = vpack.c.b16 %v561, %v561
      %v627 = vpack.c.b16 %v562, %v562
      %v628 = vpack.c.b16 %v563, %v563
      %v629 = vpack.c.b16 %v564, %v564
      %v630 = vpack.c.b16 %v565, %v565
      %v755 = vunpack.c.l.b16 %v290
      %v756 = vunpack.c.l.b16 %v291
      %v757 = vunpack.c.l.b16 %v292
      %v758 = vunpack.c.l.b16 %v293
      %v759 = vunpack.c.l.b16 %v294
      %v760 = vunpack.c.l.b16 %v295
      %v761 = vunpack.c.l.b16 %v296
      %v762 = vunpack.c.l.b16 %v297
      %v763 = vunpack.c.l.b16 %v298
      %v764 = vunpack.c.l.b16 %v299
      %v765 = vunpack.c.l.b16 %v300
      %v766 = vunpack.c.l.b16 %v301
      %v767 = vunpack.c.l.b16 %v302
      %v768 = vunpack.c.l.b16 %v303
      %v769 = vunpack.c.l.b16 %v304
      %v770 = vunpack.c.l.b16 %v305
      %v771 = vunpack.c.l.b16 %v306
      %v772 = vunpack.c.l.b16 %v307
      %v773 = vunpack.c.l.b16 %v308
      %v774 = vunpack.c.l.b16 %v309
      %v775 = vunpack.c.l.b16 %v310
      %v776 = vunpack.c.l.b16 %v311
      %v777 = vunpack.c.l.b16 %v312
      %v778 = vunpack.c.l.b16 %v313
      %v779 = vunpack.c.l.b16 %v314
      %v780 = vunpack.c.l.b16 %v315
      %v781 = vunpack.c.l.b16 %v316
      %v782 = vunpack.c.l.b16 %v317
      %v783 = vunpack.c.l.b16 %v318
      %v784 = vunpack.c.l.b16 %v319
      %v785 = vunpack.c.l.b16 %v320
      %v786 = vunpack.c.l.b16 %v321
      %v787 = vunpack.c.l.b16 %v322
      %v788 = vunpack.c.l.b16 %v323
      %v789 = vunpack.c.l.b16 %v324
      %v790 = vunpack.c.l.b16 %v325
      %v791 = vunpack.c.l.b16 %v326
      %v792 = vunpack.c.l.b16 %v327
      %v793 = vunpack.c.l.b16 %v328
      %v794 = vunpack.c.l.b16 %v329
      %v795 = vunpack.c.l.b16 %v330
      %v796 = vunpack.c.l.b16 %v331
      %v797 = vunpack.c.l.b16 %v332
      %v798 = vunpack.c.l.b16 %v333
      %v799 = vunpack.c.l.b16 %v334
      %v800 = vunpack.c.l.b16 %v335
      %v801 = vunpack.c.l.b16 %v336
      %v802 = vunpack.c.l.b16 %v337
      %v803 = vunpack.c.l.b16 %v338
      %v804 = vunpack.c.l.b16 %v339
      %v805 = vunpack.c.l.b16 %v340
      %v806 = vunpack.c.l.b16 %v341
      %v807 = vunpack.c.l.b16 %v342
      %v808 = vunpack.c.l.b16 %v343
      %v809 = vunpack.c.l.b16 %v344
      %v810 = vunpack.c.l.b16 %v345
      %v811 = vunpack.c.l.b16 %v346
      %v812 = vunpack.c.l.b16 %v347
      %v813 = vunpack.c.l.b16 %v348
      %v814 = vunpack.c.l.b16 %v349
      %v815 = vunpack.c.l.b16 %v350
      %v816 = vunpack.c.l.b16 %v351
      %v817 = vunpack.c.l.b16 %v352
      %v818 = vunpack.c.l.b16 %v353
      %v819 = vunpack.c.l.b16 %v354
      %v820 = vunpack.c.l.b16 %v355
      %v821 = vunpack.c.l.b16 %v356
      %v822 = vunpack.c.l.b16 %v357
      %v823 = vunpack.c.l.b16 %v358
      %v824 = vunpack.c.l.b16 %v359
      %v825 = vunpack.c.l.b16 %v360
      %v826 = vunpack.c.l.b16 %v361
      %v827 = vpack.c.b16 %v756, %v755
      %v828 = vpack.c.b16 %v758, %v757
      %v829 = vpack.c.b16 %v760, %v759
      %v830 = vpack.c.b16 %v762, %v761
      %v831 = vpack.c.b16 %v764, %v763
      %v832 = vpack.c.b16 %v766, %v765
      %v833 = vpack.c.b16 %v768, %v767
      %v834 = vpack.c.b16 %v770, %v769
      %v835 = vpack.c.b16 %v772, %v771
      %v836 = vpack.c.b16 %v774, %v773
      %v837 = vpack.c.b16 %v776, %v775
      %v838 = vpack.c.b16 %v778, %v777
      %v839 = vpack.c.b16 %v780, %v779
      %v840 = vpack.c.b16 %v782, %v781
      %v841 = vpack.c.b16 %v784, %v783
      %v842 = vpack.c.b16 %v786, %v785
      %v843 = vpack.c.b16 %v788, %v787
      %v844 = vpack.c.b16 %v790, %v789
      %v845 = vpack.c.b16 %v792, %v791
      %v846 = vpack.c.b16 %v794, %v793
      %v847 = vpack.c.b16 %v796, %v795
      %v848 = vpack.c.b16 %v798, %v797
      %v849 = vpack.c.b16 %v800, %v799
      %v850 = vpack.c.b16 %v802, %v801
      %v851 = vpack.c.b16 %v804, %v803
      %v852 = vpack.c.b16 %v806, %v805
      %v853 = vpack.c.b16 %v808, %v807
      %v854 = vpack.c.b16 %v810, %v809
      %v855 = vpack.c.b16 %v812, %v811
      %v856 = vpack.c.b16 %v814, %v813
      %v857 = vpack.c.b16 %v816, %v815
      %v858 = vpack.c.b16 %v818, %v817
      %v859 = vpack.c.b16 %v820, %v819
      %v860 = vpack.c.b16 %v822, %v821
      %v861 = vpack.c.b16 %v824, %v823
      %v862 = vpack.c.b16 %v826, %v825
      %vm899 = vcmask 523264
      %v901 = vsel %vm899, %v570, 0
      %v904 = vsel %vm899, %v575, 0
      %v907 = vsel %vm899, %v580, 0
      %v910 = vsel %vm899, %v585, 0
      %v913 = vsel %vm899, %v590, 0
      %v916 = vsel %vm899, %v595, 0
      %v919 = vsel %vm899, %v600, 0
      %v922 = vsel %vm899, %v605, 0
      %v925 = vsel %vm899, %v610, 0
      %v928 = vsel %vm899, %v615, 0
      %v931 = vsel %vm899, %v620, 0
      %v934 = vsel %vm899, %v625, 0
      %v937 = vsel %vm899, %v630, 0
      %939 = vmatpush.bf16.msra.mxu0 %v834
      %940 = vmatpush.bf16.msra.mxu0 %v833
      %941 = vmatpush.bf16.msra.mxu0 %v832
      %942 = vmatpush.bf16.msra.mxu0 %v831
      %943 = vmatpush.bf16.msra.mxu0 %v830
      %944 = vmatpush.bf16.msra.mxu0 %v829
      %945 = vmatpush.bf16.msra.mxu0 %v828
      %946 = vmatpush.bf16.msra.mxu0 %v827
      %947 = vmatmul.bf16.gmra.mxu0 %v566
      %v948 = vpop.f32.mrf.mxu0
      %v949 = vadd.f32 %v364, %v948
      %v950 = vpop.f32.mrf.mxu0
      %v951 = vadd.f32 %v364, %v950
      %952 = vmatmul.bf16.gmra.mxu0 %v571
      %v953 = vpop.f32.mrf.mxu0
      %v954 = vadd.f32 %v364, %v953
      %v955 = vpop.f32.mrf.mxu0
      %v956 = vadd.f32 %v364, %v955
      %957 = vmatmul.bf16.gmra.mxu0 %v576
      %v958 = vpop.f32.mrf.mxu0
      %v959 = vadd.f32 %v364, %v958
      %v960 = vpop.f32.mrf.mxu0
      %v961 = vadd.f32 %v364, %v960
      %962 = vmatmul.bf16.gmra.mxu0 %v581
      %v963 = vpop.f32.mrf.mxu0
      %v964 = vadd.f32 %v364, %v963
      %v965 = vpop.f32.mrf.mxu0
      %v966 = vadd.f32 %v364, %v965
      %967 = vmatmul.bf16.gmra.mxu0 %v586
      %v968 = vpop.f32.mrf.mxu0
      %v969 = vadd.f32 %v364, %v968
      %v970 = vpop.f32.mrf.mxu0
      %v971 = vadd.f32 %v364, %v970
      %972 = vmatmul.bf16.gmra.mxu0 %v591
      %v973 = vpop.f32.mrf.mxu0
      %v974 = vadd.f32 %v364, %v973
      %v975 = vpop.f32.mrf.mxu0
      %v976 = vadd.f32 %v364, %v975
      %977 = vmatmul.bf16.gmra.mxu0 %v596
      %v978 = vpop.f32.mrf.mxu0
      %v979 = vadd.f32 %v364, %v978
      %v980 = vpop.f32.mrf.mxu0
      %v981 = vadd.f32 %v364, %v980
      %982 = vmatmul.bf16.gmra.mxu0 %v601
      %v983 = vpop.f32.mrf.mxu0
      %v984 = vadd.f32 %v364, %v983
      %v985 = vpop.f32.mrf.mxu0
      %v986 = vadd.f32 %v364, %v985
      %987 = vmatmul.bf16.gmra.mxu0 %v606
      %v988 = vpop.f32.mrf.mxu0
      %v989 = vadd.f32 %v364, %v988
      %v990 = vpop.f32.mrf.mxu0
      %v991 = vadd.f32 %v364, %v990
      %992 = vmatmul.bf16.gmra.mxu0 %v611
      %v993 = vpop.f32.mrf.mxu0
      %v994 = vadd.f32 %v364, %v993
      %v995 = vpop.f32.mrf.mxu0
      %v996 = vadd.f32 %v364, %v995
      %997 = vmatmul.bf16.gmra.mxu0 %v616
      %v998 = vpop.f32.mrf.mxu0
      %v999 = vadd.f32 %v364, %v998
      %v1000 = vpop.f32.mrf.mxu0
      %v1001 = vadd.f32 %v364, %v1000
      %1002 = vmatmul.bf16.gmra.mxu0 %v621
      %v1003 = vpop.f32.mrf.mxu0
      %v1004 = vadd.f32 %v364, %v1003
      %v1005 = vpop.f32.mrf.mxu0
      %v1006 = vadd.f32 %v364, %v1005
      %1007 = vmatmul.bf16.gmra.mxu0 %v626
      %v1008 = vpop.f32.mrf.mxu0
      %v1009 = vadd.f32 %v364, %v1008
      %v1010 = vpop.f32.mrf.mxu0
      %1011 = vdwg.mxu0
      %1012 = vmatpush.bf16.msra.mxu0 %v842
      %1013 = vmatpush.bf16.msra.mxu0 %v841
      %1014 = vmatpush.bf16.msra.mxu0 %v840
      %1015 = vmatpush.bf16.msra.mxu0 %v839
      %1016 = vmatpush.bf16.msra.mxu0 %v838
      %1017 = vmatpush.bf16.msra.mxu0 %v837
      %1018 = vmatpush.bf16.msra.mxu0 %v836
      %1019 = vmatpush.bf16.msra.mxu0 %v835
      %1020 = vmatmul.bf16.gmra.mxu0 %v567
      %v1021 = vpop.f32.mrf.mxu0
      %v1022 = vadd.f32 %v949, %v1021
      %v1023 = vpop.f32.mrf.mxu0
      %v1024 = vadd.f32 %v951, %v1023
      %1025 = vmatmul.bf16.gmra.mxu0 %v572
      %v1026 = vpop.f32.mrf.mxu0
      %v1027 = vadd.f32 %v954, %v1026
      %v1028 = vpop.f32.mrf.mxu0
      %v1029 = vadd.f32 %v956, %v1028
      %1030 = vmatmul.bf16.gmra.mxu0 %v577
      %v1031 = vpop.f32.mrf.mxu0
      %v1032 = vadd.f32 %v959, %v1031
      %v1033 = vpop.f32.mrf.mxu0
      %v1034 = vadd.f32 %v961, %v1033
      %1035 = vmatmul.bf16.gmra.mxu0 %v582
      %v1036 = vpop.f32.mrf.mxu0
      %v1037 = vadd.f32 %v964, %v1036
      %v1038 = vpop.f32.mrf.mxu0
      %v1039 = vadd.f32 %v966, %v1038
      %1040 = vmatmul.bf16.gmra.mxu0 %v587
      %v1041 = vpop.f32.mrf.mxu0
      %v1042 = vadd.f32 %v969, %v1041
      %v1043 = vpop.f32.mrf.mxu0
      %v1044 = vadd.f32 %v971, %v1043
      %1045 = vmatmul.bf16.gmra.mxu0 %v592
      %v1046 = vpop.f32.mrf.mxu0
      %v1047 = vadd.f32 %v974, %v1046
      %v1048 = vpop.f32.mrf.mxu0
      %v1049 = vadd.f32 %v976, %v1048
      %1050 = vmatmul.bf16.gmra.mxu0 %v597
      %v1051 = vpop.f32.mrf.mxu0
      %v1052 = vadd.f32 %v979, %v1051
      %v1053 = vpop.f32.mrf.mxu0
      %v1054 = vadd.f32 %v981, %v1053
      %1055 = vmatmul.bf16.gmra.mxu0 %v602
      %v1056 = vpop.f32.mrf.mxu0
      %v1057 = vadd.f32 %v984, %v1056
      %v1058 = vpop.f32.mrf.mxu0
      %v1059 = vadd.f32 %v986, %v1058
      %1060 = vmatmul.bf16.gmra.mxu0 %v607
      %v1061 = vpop.f32.mrf.mxu0
      %v1062 = vadd.f32 %v989, %v1061
      %v1063 = vpop.f32.mrf.mxu0
      %v1064 = vadd.f32 %v991, %v1063
      %1065 = vmatmul.bf16.gmra.mxu0 %v612
      %v1066 = vpop.f32.mrf.mxu0
      %v1067 = vadd.f32 %v994, %v1066
      %v1068 = vpop.f32.mrf.mxu0
      %v1069 = vadd.f32 %v996, %v1068
      %1070 = vmatmul.bf16.gmra.mxu0 %v617
      %v1071 = vpop.f32.mrf.mxu0
      %v1072 = vadd.f32 %v999, %v1071
      %v1073 = vpop.f32.mrf.mxu0
      %v1074 = vadd.f32 %v1001, %v1073
      %1075 = vmatmul.bf16.gmra.mxu0 %v622
      %v1076 = vpop.f32.mrf.mxu0
      %v1077 = vadd.f32 %v1004, %v1076
      %v1078 = vpop.f32.mrf.mxu0
      %v1079 = vadd.f32 %v1006, %v1078
      %1080 = vmatmul.bf16.gmra.mxu0 %v627
      %v1081 = vpop.f32.mrf.mxu0
      %v1082 = vadd.f32 %v1009, %v1081
      %v1083 = vpop.f32.mrf.mxu0
      %1084 = vdwg.mxu0
      %1085 = vmatpush.bf16.msra.mxu0 %v850
      %1086 = vmatpush.bf16.msra.mxu0 %v849
      %1087 = vmatpush.bf16.msra.mxu0 %v848
      %1088 = vmatpush.bf16.msra.mxu0 %v847
      %1089 = vmatpush.bf16.msra.mxu0 %v846
      %1090 = vmatpush.bf16.msra.mxu0 %v845
      %1091 = vmatpush.bf16.msra.mxu0 %v844
      %1092 = vmatpush.bf16.msra.mxu0 %v843
      %1093 = vmatmul.bf16.gmra.mxu0 %v568
      %v1094 = vpop.f32.mrf.mxu0
      %v1095 = vadd.f32 %v1022, %v1094
      %v1096 = vpop.f32.mrf.mxu0
      %v1097 = vadd.f32 %v1024, %v1096
      %1098 = vmatmul.bf16.gmra.mxu0 %v573
      %v1099 = vpop.f32.mrf.mxu0
      %v1100 = vadd.f32 %v1027, %v1099
      %v1101 = vpop.f32.mrf.mxu0
      %v1102 = vadd.f32 %v1029, %v1101
      %1103 = vmatmul.bf16.gmra.mxu0 %v578
      %v1104 = vpop.f32.mrf.mxu0
      %v1105 = vadd.f32 %v1032, %v1104
      %v1106 = vpop.f32.mrf.mxu0
      %v1107 = vadd.f32 %v1034, %v1106
      %1108 = vmatmul.bf16.gmra.mxu0 %v583
      %v1109 = vpop.f32.mrf.mxu0
      %v1110 = vadd.f32 %v1037, %v1109
      %v1111 = vpop.f32.mrf.mxu0
      %v1112 = vadd.f32 %v1039, %v1111
      %1113 = vmatmul.bf16.gmra.mxu0 %v588
      %v1114 = vpop.f32.mrf.mxu0
      %v1115 = vadd.f32 %v1042, %v1114
      %v1116 = vpop.f32.mrf.mxu0
      %v1117 = vadd.f32 %v1044, %v1116
      %1118 = vmatmul.bf16.gmra.mxu0 %v593
      %v1119 = vpop.f32.mrf.mxu0
      %v1120 = vadd.f32 %v1047, %v1119
      %v1121 = vpop.f32.mrf.mxu0
      %v1122 = vadd.f32 %v1049, %v1121
      %1123 = vmatmul.bf16.gmra.mxu0 %v598
      %v1124 = vpop.f32.mrf.mxu0
      %v1125 = vadd.f32 %v1052, %v1124
      %v1126 = vpop.f32.mrf.mxu0
      %v1127 = vadd.f32 %v1054, %v1126
      %1128 = vmatmul.bf16.gmra.mxu0 %v603
      %v1129 = vpop.f32.mrf.mxu0
      %v1130 = vadd.f32 %v1057, %v1129
      %v1131 = vpop.f32.mrf.mxu0
      %v1132 = vadd.f32 %v1059, %v1131
      %1133 = vmatmul.bf16.gmra.mxu0 %v608
      %v1134 = vpop.f32.mrf.mxu0
      %v1135 = vadd.f32 %v1062, %v1134
      %v1136 = vpop.f32.mrf.mxu0
      %v1137 = vadd.f32 %v1064, %v1136
      %1138 = vmatmul.bf16.gmra.mxu0 %v613
      %v1139 = vpop.f32.mrf.mxu0
      %v1140 = vadd.f32 %v1067, %v1139
      %v1141 = vpop.f32.mrf.mxu0
      %v1142 = vadd.f32 %v1069, %v1141
      %1143 = vmatmul.bf16.gmra.mxu0 %v618
      %v1144 = vpop.f32.mrf.mxu0
      %v1145 = vadd.f32 %v1072, %v1144
      %v1146 = vpop.f32.mrf.mxu0
      %v1147 = vadd.f32 %v1074, %v1146
      %1148 = vmatmul.bf16.gmra.mxu0 %v623
      %v1149 = vpop.f32.mrf.mxu0
      %v1150 = vadd.f32 %v1077, %v1149
      %v1151 = vpop.f32.mrf.mxu0
      %v1152 = vadd.f32 %v1079, %v1151
      %1153 = vmatmul.bf16.gmra.mxu0 %v628
      %v1154 = vpop.f32.mrf.mxu0
      %v1155 = vadd.f32 %v1082, %v1154
      %v1156 = vpop.f32.mrf.mxu0
      %1157 = vdwg.mxu0
      %1158 = vmatpush.bf16.msra.mxu0 %v858
      %1159 = vmatpush.bf16.msra.mxu0 %v857
      %1160 = vmatpush.bf16.msra.mxu0 %v856
      %1161 = vmatpush.bf16.msra.mxu0 %v855
      %1162 = vmatpush.bf16.msra.mxu0 %v854
      %1163 = vmatpush.bf16.msra.mxu0 %v853
      %1164 = vmatpush.bf16.msra.mxu0 %v852
      %1165 = vmatpush.bf16.msra.mxu0 %v851
      %1166 = vmatmul.bf16.gmra.mxu0 %v569
      %v1167 = vpop.f32.mrf.mxu0
      %v1168 = vadd.f32 %v1095, %v1167
      %v1169 = vpop.f32.mrf.mxu0
      %v1170 = vadd.f32 %v1097, %v1169
      %1171 = vmatmul.bf16.gmra.mxu0 %v574
      %v1172 = vpop.f32.mrf.mxu0
      %v1173 = vadd.f32 %v1100, %v1172
      %v1174 = vpop.f32.mrf.mxu0
      %v1175 = vadd.f32 %v1102, %v1174
      %1176 = vmatmul.bf16.gmra.mxu0 %v579
      %v1177 = vpop.f32.mrf.mxu0
      %v1178 = vadd.f32 %v1105, %v1177
      %v1179 = vpop.f32.mrf.mxu0
      %v1180 = vadd.f32 %v1107, %v1179
      %1181 = vmatmul.bf16.gmra.mxu0 %v584
      %v1182 = vpop.f32.mrf.mxu0
      %v1183 = vadd.f32 %v1110, %v1182
      %v1184 = vpop.f32.mrf.mxu0
      %v1185 = vadd.f32 %v1112, %v1184
      %1186 = vmatmul.bf16.gmra.mxu0 %v589
      %v1187 = vpop.f32.mrf.mxu0
      %v1188 = vadd.f32 %v1115, %v1187
      %v1189 = vpop.f32.mrf.mxu0
      %v1190 = vadd.f32 %v1117, %v1189
      %1191 = vmatmul.bf16.gmra.mxu0 %v594
      %v1192 = vpop.f32.mrf.mxu0
      %v1193 = vadd.f32 %v1120, %v1192
      %v1194 = vpop.f32.mrf.mxu0
      %v1195 = vadd.f32 %v1122, %v1194
      %1196 = vmatmul.bf16.gmra.mxu0 %v599
      %v1197 = vpop.f32.mrf.mxu0
      %v1198 = vadd.f32 %v1125, %v1197
      %v1199 = vpop.f32.mrf.mxu0
      %v1200 = vadd.f32 %v1127, %v1199
      %1201 = vmatmul.bf16.gmra.mxu0 %v604
      %v1202 = vpop.f32.mrf.mxu0
      %v1203 = vadd.f32 %v1130, %v1202
      %v1204 = vpop.f32.mrf.mxu0
      %v1205 = vadd.f32 %v1132, %v1204
      %1206 = vmatmul.bf16.gmra.mxu0 %v609
      %v1207 = vpop.f32.mrf.mxu0
      %v1208 = vadd.f32 %v1135, %v1207
      %v1209 = vpop.f32.mrf.mxu0
      %v1210 = vadd.f32 %v1137, %v1209
      %1211 = vmatmul.bf16.gmra.mxu0 %v614
      %v1212 = vpop.f32.mrf.mxu0
      %v1213 = vadd.f32 %v1140, %v1212
      %v1214 = vpop.f32.mrf.mxu0
      %v1215 = vadd.f32 %v1142, %v1214
      %1216 = vmatmul.bf16.gmra.mxu0 %v619
      %v1217 = vpop.f32.mrf.mxu0
      %v1218 = vadd.f32 %v1145, %v1217
      %v1219 = vpop.f32.mrf.mxu0
      %v1220 = vadd.f32 %v1147, %v1219
      %1221 = vmatmul.bf16.gmra.mxu0 %v624
      %v1222 = vpop.f32.mrf.mxu0
      %v1223 = vadd.f32 %v1150, %v1222
      %v1224 = vpop.f32.mrf.mxu0
      %v1225 = vadd.f32 %v1152, %v1224
      %1226 = vmatmul.bf16.gmra.mxu0 %v629
      %v1227 = vpop.f32.mrf.mxu0
      %v1228 = vadd.f32 %v1155, %v1227
      %v1229 = vpop.f32.mrf.mxu0
      %1230 = vdwg.mxu0
      %1231 = vmatpush.bf16.msra.mxu0 0
      %1232 = vmatpush.bf16.msra.mxu0 0
      %1233 = vmatpush.bf16.msra.mxu0 0
      %1234 = vmatpush.bf16.msra.mxu0 0
      %1235 = vmatpush.bf16.msra.mxu0 %v862
      %1236 = vmatpush.bf16.msra.mxu0 %v861
      %1237 = vmatpush.bf16.msra.mxu0 %v860
      %1238 = vmatpush.bf16.msra.mxu0 %v859
      %1239 = vmatmul.bf16.gmra.mxu0 %v901
      %v1240 = vpop.f32.mrf.mxu0
      %v1241 = vadd.f32 %v1168, %v1240
      %v1242 = vpop.f32.mrf.mxu0
      %v1243 = vadd.f32 %v1170, %v1242
      %1244 = vmatmul.bf16.gmra.mxu0 %v904
      %v1245 = vpop.f32.mrf.mxu0
      %v1246 = vadd.f32 %v1173, %v1245
      %v1247 = vpop.f32.mrf.mxu0
      %v1248 = vadd.f32 %v1175, %v1247
      %1249 = vmatmul.bf16.gmra.mxu0 %v907
      %v1250 = vpop.f32.mrf.mxu0
      %v1251 = vadd.f32 %v1178, %v1250
      %v1252 = vpop.f32.mrf.mxu0
      %v1253 = vadd.f32 %v1180, %v1252
      %1254 = vmatmul.bf16.gmra.mxu0 %v910
      %v1255 = vpop.f32.mrf.mxu0
      %v1256 = vadd.f32 %v1183, %v1255
      %v1257 = vpop.f32.mrf.mxu0
      %v1258 = vadd.f32 %v1185, %v1257
      %1259 = vmatmul.bf16.gmra.mxu0 %v913
      %v1260 = vpop.f32.mrf.mxu0
      %v1261 = vadd.f32 %v1188, %v1260
      %v1262 = vpop.f32.mrf.mxu0
      %v1263 = vadd.f32 %v1190, %v1262
      %1264 = vmatmul.bf16.gmra.mxu0 %v916
      %v1265 = vpop.f32.mrf.mxu0
      %v1266 = vadd.f32 %v1193, %v1265
      %v1267 = vpop.f32.mrf.mxu0
      %v1268 = vadd.f32 %v1195, %v1267
      %1269 = vmatmul.bf16.gmra.mxu0 %v919
      %v1270 = vpop.f32.mrf.mxu0
      %v1271 = vadd.f32 %v1198, %v1270
      %v1272 = vpop.f32.mrf.mxu0
      %v1273 = vadd.f32 %v1200, %v1272
      %1274 = vmatmul.bf16.gmra.mxu0 %v922
      %v1275 = vpop.f32.mrf.mxu0
      %v1276 = vadd.f32 %v1203, %v1275
      %v1277 = vpop.f32.mrf.mxu0
      %v1278 = vadd.f32 %v1205, %v1277
      %1279 = vmatmul.bf16.gmra.mxu0 %v925
      %v1280 = vpop.f32.mrf.mxu0
      %v1281 = vadd.f32 %v1208, %v1280
      %v1282 = vpop.f32.mrf.mxu0
      %v1283 = vadd.f32 %v1210, %v1282
      %1284 = vmatmul.bf16.gmra.mxu0 %v928
      %v1285 = vpop.f32.mrf.mxu0
      %v1286 = vadd.f32 %v1213, %v1285
      %v1287 = vpop.f32.mrf.mxu0
      %v1288 = vadd.f32 %v1215, %v1287
      %1289 = vmatmul.bf16.gmra.mxu0 %v931
      %v1290 = vpop.f32.mrf.mxu0
      %v1291 = vadd.f32 %v1218, %v1290
      %v1292 = vpop.f32.mrf.mxu0
      %v1293 = vadd.f32 %v1220, %v1292
      %1294 = vmatmul.bf16.gmra.mxu0 %v934
      %v1295 = vpop.f32.mrf.mxu0
      %v1296 = vadd.f32 %v1223, %v1295
      %v1297 = vpop.f32.mrf.mxu0
      %v1298 = vadd.f32 %v1225, %v1297
      %1299 = vmatmul.bf16.gmra.mxu0 %v937
      %v1300 = vpop.f32.mrf.mxu0
      %v1301 = vadd.f32 %v1228, %v1300
      %v1302 = vpop.f32.mrf.mxu0
      %1303 = vdwg.mxu0
      %v1304 = vld [vmem:[%s210] sm:$0xff]
      %v1305 = vld [vmem:[%s210 + $0x8] sm:$0xff]
      %v1306 = vld [vmem:[%s210 + $0x10] sm:$0xff]
      %v1307 = vld [vmem:[%s210 + $0x18] sm:$0xff]
      %v1308 = vld [vmem:[%s210 + $0x20] sm:$0xff]
      %v1309 = vld [vmem:[%s210 + $0x28] sm:$0xff]
      %v1310 = vld [vmem:[%s210 + $0x30] sm:$0xff]
      %v1311 = vld [vmem:[%s210 + $0x38] sm:$0xff]
      %v1312 = vld [vmem:[%s210 + $0x40] sm:$0xff]
      %v1313 = vld [vmem:[%s210 + $0x48] sm:$0xff]
      %v1314 = vld [vmem:[%s210 + $0x50] sm:$0xff]
      %v1315 = vld [vmem:[%s210 + $0x58] sm:$0xff]
      %v1316 = vld [vmem:[%s210 + $0x60] sm:$0xff]
      %v1317 = vld [vmem:[%s210 + $0x68] sm:$0xff]
      %v1318 = vld [vmem:[%s210 + $0x70] sm:$0xff]
      %v1319 = vld [vmem:[%s210 + $0x78] sm:$0xff]
      %v1320 = vld [vmem:[%s210 + $0x80] sm:$0xff]
      %v1321 = vld [vmem:[%s210 + $0x88] sm:$0xff]
      %v1322 = vld [vmem:[%s210 + $0x90] sm:$0xff]
      %v1323 = vld [vmem:[%s210 + $0x98] sm:$0xff]
      %v1324 = vld [vmem:[%s210 + $0xa0] sm:$0xff]
      %v1325 = vld [vmem:[%s210 + $0xa8] sm:$0xff]
      %v1326 = vld [vmem:[%s210 + $0xb0] sm:$0xff]
      %v1327 = vld [vmem:[%s210 + $0xb8] sm:$0xff]
      %v1328 = vld [vmem:[%s210 + $0xc0] sm:$0xf]
      %v1329 = vmax.f32 %v1241, 0.0
      %v1330 = vmax.f32 %v1243, 0.0
      %v1331 = vmax.f32 %v1246, 0.0
      %v1332 = vmax.f32 %v1248, 0.0
      %v1333 = vmax.f32 %v1251, 0.0
      %v1334 = vmax.f32 %v1253, 0.0
      %v1335 = vmax.f32 %v1256, 0.0
      %v1336 = vmax.f32 %v1258, 0.0
      %v1337 = vmax.f32 %v1261, 0.0
      %v1338 = vmax.f32 %v1263, 0.0
      %v1339 = vmax.f32 %v1266, 0.0
      %v1340 = vmax.f32 %v1268, 0.0
      %v1341 = vmax.f32 %v1271, 0.0
      %v1342 = vmax.f32 %v1273, 0.0
      %v1343 = vmax.f32 %v1276, 0.0
      %v1344 = vmax.f32 %v1278, 0.0
      %v1345 = vmax.f32 %v1281, 0.0
      %v1346 = vmax.f32 %v1283, 0.0
      %v1347 = vmax.f32 %v1286, 0.0
      %v1348 = vmax.f32 %v1288, 0.0
      %v1349 = vmax.f32 %v1291, 0.0
      %v1350 = vmax.f32 %v1293, 0.0
      %v1351 = vmax.f32 %v1296, 0.0
      %v1352 = vmax.f32 %v1298, 0.0
      %v1353 = vmax.f32 %v1301, 0.0
      %v1354 = vand.u32 2147483647, %v1241
      %v1355 = vand.u32 2147483647, %v1243
      %v1356 = vand.u32 2147483647, %v1246
      %v1357 = vand.u32 2147483647, %v1248
      %v1358 = vand.u32 2147483647, %v1251
      %v1359 = vand.u32 2147483647, %v1253
      %v1360 = vand.u32 2147483647, %v1256
      %v1361 = vand.u32 2147483647, %v1258
      %v1362 = vand.u32 2147483647, %v1261
      %v1363 = vand.u32 2147483647, %v1263
      %v1364 = vand.u32 2147483647, %v1266
      %v1365 = vand.u32 2147483647, %v1268
      %v1366 = vand.u32 2147483647, %v1271
      %v1367 = vand.u32 2147483647, %v1273
      %v1368 = vand.u32 2147483647, %v1276
      %v1369 = vand.u32 2147483647, %v1278
      %v1370 = vand.u32 2147483647, %v1281
      %v1371 = vand.u32 2147483647, %v1283
      %v1372 = vand.u32 2147483647, %v1286
      %v1373 = vand.u32 2147483647, %v1288
      %v1374 = vand.u32 2147483647, %v1291
      %v1375 = vand.u32 2147483647, %v1293
      %v1376 = vand.u32 2147483647, %v1296
      %v1377 = vand.u32 2147483647, %v1298
      %v1378 = vand.u32 2147483647, %v1301
      %v1379 = vsub.f32 0.0, %v1354
      %v1380 = vsub.f32 0.0, %v1355
      %v1381 = vsub.f32 0.0, %v1356
      %v1382 = vsub.f32 0.0, %v1357
      %v1383 = vsub.f32 0.0, %v1358
      %v1384 = vsub.f32 0.0, %v1359
      %v1385 = vsub.f32 0.0, %v1360
      %v1386 = vsub.f32 0.0, %v1361
      %v1387 = vsub.f32 0.0, %v1362
      %v1388 = vsub.f32 0.0, %v1363
      %v1389 = vsub.f32 0.0, %v1364
      %v1390 = vsub.f32 0.0, %v1365
      %v1391 = vsub.f32 0.0, %v1366
      %v1392 = vsub.f32 0.0, %v1367
      %v1393 = vsub.f32 0.0, %v1368
      %v1394 = vsub.f32 0.0, %v1369
      %v1395 = vsub.f32 0.0, %v1370
      %v1396 = vsub.f32 0.0, %v1371
      %v1397 = vsub.f32 0.0, %v1372
      %v1398 = vsub.f32 0.0, %v1373
      %v1399 = vsub.f32 0.0, %v1374
      %v1400 = vsub.f32 0.0, %v1375
      %v1401 = vsub.f32 0.0, %v1376
      %v1402 = vsub.f32 0.0, %v1377
      %v1403 = vsub.f32 0.0, %v1378
      %v1404 = vmul.f32 %v1379, 1.442695
      %v1405 = vpow.pop %v1404
      %v1406 = vmul.f32 %v1380, 1.442695
      %v1407 = vpow.pop %v1406
      %v1408 = vmul.f32 %v1381, 1.442695
      %v1409 = vpow.pop %v1408
      %v1410 = vmul.f32 %v1382, 1.442695
      %v1411 = vpow.pop %v1410
      %v1412 = vmul.f32 %v1383, 1.442695
      %v1413 = vpow.pop %v1412
      %v1414 = vmul.f32 %v1384, 1.442695
      %v1415 = vpow.pop %v1414
      %v1416 = vmul.f32 %v1385, 1.442695
      %v1417 = vpow.pop %v1416
      %v1418 = vmul.f32 %v1386, 1.442695
      %v1419 = vpow.pop %v1418
      %v1420 = vmul.f32 %v1387, 1.442695
      %v1421 = vpow.pop %v1420
      %v1422 = vmul.f32 %v1388, 1.442695
      %v1423 = vpow.pop %v1422
      %v1424 = vmul.f32 %v1389, 1.442695
      %v1425 = vpow.pop %v1424
      %v1426 = vmul.f32 %v1390, 1.442695
      %v1427 = vpow.pop %v1426
      %v1428 = vmul.f32 %v1391, 1.442695
      %v1429 = vpow.pop %v1428
      %v1430 = vmul.f32 %v1392, 1.442695
      %v1431 = vpow.pop %v1430
      %v1432 = vmul.f32 %v1393, 1.442695
      %v1433 = vpow.pop %v1432
      %v1434 = vmul.f32 %v1394, 1.442695
      %v1435 = vpow.pop %v1434
      %v1436 = vmul.f32 %v1395, 1.442695
      %v1437 = vpow.pop %v1436
      %v1438 = vmul.f32 %v1396, 1.442695
      %v1439 = vpow.pop %v1438
      %v1440 = vmul.f32 %v1397, 1.442695
      %v1441 = vpow.pop %v1440
      %v1442 = vmul.f32 %v1398, 1.442695
      %v1443 = vpow.pop %v1442
      %v1444 = vmul.f32 %v1399, 1.442695
      %v1445 = vpow.pop %v1444
      %v1446 = vmul.f32 %v1400, 1.442695
      %v1447 = vpow.pop %v1446
      %v1448 = vmul.f32 %v1401, 1.442695
      %v1449 = vpow.pop %v1448
      %v1450 = vmul.f32 %v1402, 1.442695
      %v1451 = vpow.pop %v1450
      %v1452 = vmul.f32 %v1403, 1.442695
      %v1453 = vpow.pop %v1452
      %v1454 = vadd.f32 %v1405, 1.0
      %v1455 = vadd.f32 %v1407, 1.0
      %v1456 = vadd.f32 %v1409, 1.0
      %v1457 = vadd.f32 %v1411, 1.0
      %v1458 = vadd.f32 %v1413, 1.0
      %v1459 = vadd.f32 %v1415, 1.0
      %v1460 = vadd.f32 %v1417, 1.0
      %v1461 = vadd.f32 %v1419, 1.0
      %v1462 = vadd.f32 %v1421, 1.0
      %v1463 = vadd.f32 %v1423, 1.0
      %v1464 = vadd.f32 %v1425, 1.0
      %v1465 = vadd.f32 %v1427, 1.0
      %v1466 = vadd.f32 %v1429, 1.0
      %v1467 = vadd.f32 %v1431, 1.0
      %v1468 = vadd.f32 %v1433, 1.0
      %v1469 = vadd.f32 %v1435, 1.0
      %v1470 = vadd.f32 %v1437, 1.0
      %v1471 = vadd.f32 %v1439, 1.0
      %v1472 = vadd.f32 %v1441, 1.0
      %v1473 = vadd.f32 %v1443, 1.0
      %v1474 = vadd.f32 %v1445, 1.0
      %v1475 = vadd.f32 %v1447, 1.0
      %v1476 = vadd.f32 %v1449, 1.0
      %v1477 = vadd.f32 %v1451, 1.0
      %v1478 = vadd.f32 %v1453, 1.0
      %v1479 = vlog2.pop %v1454
      %v1480 = vmul.f32 %v1479, 0.6931472
      %v1481 = vlog2.pop %v1455
      %v1482 = vmul.f32 %v1481, 0.6931472
      %v1483 = vlog2.pop %v1456
      %v1484 = vmul.f32 %v1483, 0.6931472
      %v1485 = vlog2.pop %v1457
      %v1486 = vmul.f32 %v1485, 0.6931472
      %v1487 = vlog2.pop %v1458
      %v1488 = vmul.f32 %v1487, 0.6931472
      %v1489 = vlog2.pop %v1459
      %v1490 = vmul.f32 %v1489, 0.6931472
      %v1491 = vlog2.pop %v1460
      %v1492 = vmul.f32 %v1491, 0.6931472
      %v1493 = vlog2.pop %v1461
      %v1494 = vmul.f32 %v1493, 0.6931472
      %v1495 = vlog2.pop %v1462
      %v1496 = vmul.f32 %v1495, 0.6931472
      %v1497 = vlog2.pop %v1463
      %v1498 = vmul.f32 %v1497, 0.6931472
      %v1499 = vlog2.pop %v1464
      %v1500 = vmul.f32 %v1499, 0.6931472
      %v1501 = vlog2.pop %v1465
      %v1502 = vmul.f32 %v1501, 0.6931472
      %v1503 = vlog2.pop %v1466
      %v1504 = vmul.f32 %v1503, 0.6931472
      %v1505 = vlog2.pop %v1467
      %v1506 = vmul.f32 %v1505, 0.6931472
      %v1507 = vlog2.pop %v1468
      %v1508 = vmul.f32 %v1507, 0.6931472
      %v1509 = vlog2.pop %v1469
      %v1510 = vmul.f32 %v1509, 0.6931472
      %v1511 = vlog2.pop %v1470
      %v1512 = vmul.f32 %v1511, 0.6931472
      %v1513 = vlog2.pop %v1471
      %v1514 = vmul.f32 %v1513, 0.6931472
      %v1515 = vlog2.pop %v1472
      %v1516 = vmul.f32 %v1515, 0.6931472
      %v1517 = vlog2.pop %v1473
      %v1518 = vmul.f32 %v1517, 0.6931472
      %v1519 = vlog2.pop %v1474
      %v1520 = vmul.f32 %v1519, 0.6931472
      %v1521 = vlog2.pop %v1475
      %v1522 = vmul.f32 %v1521, 0.6931472
      %v1523 = vlog2.pop %v1476
      %v1524 = vmul.f32 %v1523, 0.6931472
      %v1525 = vlog2.pop %v1477
      %v1526 = vmul.f32 %v1525, 0.6931472
      %v1527 = vlog2.pop %v1478
      %v1528 = vmul.f32 %v1527, 0.6931472
      %v1529 = vadd.f32 %v1329, %v1480
      %v1530 = vadd.f32 %v1330, %v1482
      %v1531 = vadd.f32 %v1331, %v1484
      %v1532 = vadd.f32 %v1332, %v1486
      %v1533 = vadd.f32 %v1333, %v1488
      %v1534 = vadd.f32 %v1334, %v1490
      %v1535 = vadd.f32 %v1335, %v1492
      %v1536 = vadd.f32 %v1336, %v1494
      %v1537 = vadd.f32 %v1337, %v1496
      %v1538 = vadd.f32 %v1338, %v1498
      %v1539 = vadd.f32 %v1339, %v1500
      %v1540 = vadd.f32 %v1340, %v1502
      %v1541 = vadd.f32 %v1341, %v1504
      %v1542 = vadd.f32 %v1342, %v1506
      %v1543 = vadd.f32 %v1343, %v1508
      %v1544 = vadd.f32 %v1344, %v1510
      %v1545 = vadd.f32 %v1345, %v1512
      %v1546 = vadd.f32 %v1346, %v1514
      %v1547 = vadd.f32 %v1347, %v1516
      %v1548 = vadd.f32 %v1348, %v1518
      %v1549 = vadd.f32 %v1349, %v1520
      %v1550 = vadd.f32 %v1350, %v1522
      %v1551 = vadd.f32 %v1351, %v1524
      %v1552 = vadd.f32 %v1352, %v1526
      %v1553 = vadd.f32 %v1353, %v1528
      %v1554 = vmul.f32 %v1304, %v1241
      %v1555 = vmul.f32 %v1305, %v1243
      %v1556 = vmul.f32 %v1306, %v1246
      %v1557 = vmul.f32 %v1307, %v1248
      %v1558 = vmul.f32 %v1308, %v1251
      %v1559 = vmul.f32 %v1309, %v1253
      %v1560 = vmul.f32 %v1310, %v1256
      %v1561 = vmul.f32 %v1311, %v1258
      %v1562 = vmul.f32 %v1312, %v1261
      %v1563 = vmul.f32 %v1313, %v1263
      %v1564 = vmul.f32 %v1314, %v1266
      %v1565 = vmul.f32 %v1315, %v1268
      %v1566 = vmul.f32 %v1316, %v1271
      %v1567 = vmul.f32 %v1317, %v1273
      %v1568 = vmul.f32 %v1318, %v1276
      %v1569 = vmul.f32 %v1319, %v1278
      %v1570 = vmul.f32 %v1320, %v1281
      %v1571 = vmul.f32 %v1321, %v1283
      %v1572 = vmul.f32 %v1322, %v1286
      %v1573 = vmul.f32 %v1323, %v1288
      %v1574 = vmul.f32 %v1324, %v1291
      %v1575 = vmul.f32 %v1325, %v1293
      %v1576 = vmul.f32 %v1326, %v1296
      %v1577 = vmul.f32 %v1327, %v1298
      %v1578 = vmul.f32 %v1328, %v1301
      %v1579 = vsub.f32 %v1554, %v1529
      %v1580 = vsub.f32 %v1555, %v1530
      %v1581 = vsub.f32 %v1556, %v1531
      %v1582 = vsub.f32 %v1557, %v1532
      %v1583 = vsub.f32 %v1558, %v1533
      %v1584 = vsub.f32 %v1559, %v1534
      %v1585 = vsub.f32 %v1560, %v1535
      %v1586 = vsub.f32 %v1561, %v1536
      %v1587 = vsub.f32 %v1562, %v1537
      %v1588 = vsub.f32 %v1563, %v1538
      %v1589 = vsub.f32 %v1564, %v1539
      %v1590 = vsub.f32 %v1565, %v1540
      %v1591 = vsub.f32 %v1566, %v1541
      %v1592 = vsub.f32 %v1567, %v1542
      %v1593 = vsub.f32 %v1568, %v1543
      %v1594 = vsub.f32 %v1569, %v1544
      %v1595 = vsub.f32 %v1570, %v1545
      %v1596 = vsub.f32 %v1571, %v1546
      %v1597 = vsub.f32 %v1572, %v1547
      %v1598 = vsub.f32 %v1573, %v1548
      %v1599 = vsub.f32 %v1574, %v1549
      %v1600 = vsub.f32 %v1575, %v1550
      %v1601 = vsub.f32 %v1576, %v1551
      %v1602 = vsub.f32 %v1577, %v1552
      %v1603 = vsub.f32 %v1578, %v1553
      %vm1604 = vcmask 31744
      %v1605 = vsel %vm1604, %v1579, 0.0
      %v1606 = vsel %vm1604, %v1580, 0.0
      %v1607 = vadd.f32 %v1605, %v1606
      %v1608 = vsel %vm1604, %v1581, 0.0
      %v1609 = vadd.f32 %v1607, %v1608
      %v1610 = vsel %vm1604, %v1582, 0.0
      %v1611 = vadd.f32 %v1609, %v1610
      %v1612 = vsel %vm1604, %v1583, 0.0
      %v1613 = vadd.f32 %v1611, %v1612
      %v1614 = vsel %vm1604, %v1584, 0.0
      %v1615 = vadd.f32 %v1613, %v1614
      %v1616 = vsel %vm1604, %v1585, 0.0
      %v1617 = vadd.f32 %v1615, %v1616
      %v1618 = vsel %vm1604, %v1586, 0.0
      %v1619 = vadd.f32 %v1617, %v1618
      %v1620 = vsel %vm1604, %v1587, 0.0
      %v1621 = vadd.f32 %v1619, %v1620
      %v1622 = vsel %vm1604, %v1588, 0.0
      %v1623 = vadd.f32 %v1621, %v1622
      %v1624 = vsel %vm1604, %v1589, 0.0
      %v1625 = vadd.f32 %v1623, %v1624
      %v1626 = vsel %vm1604, %v1590, 0.0
      %v1627 = vadd.f32 %v1625, %v1626
      %v1628 = vsel %vm1604, %v1591, 0.0
      %v1629 = vadd.f32 %v1627, %v1628
      %v1630 = vsel %vm1604, %v1592, 0.0
      %v1631 = vadd.f32 %v1629, %v1630
      %v1632 = vsel %vm1604, %v1593, 0.0
      %v1633 = vadd.f32 %v1631, %v1632
      %v1634 = vsel %vm1604, %v1594, 0.0
      %v1635 = vadd.f32 %v1633, %v1634
      %v1636 = vsel %vm1604, %v1595, 0.0
      %v1637 = vadd.f32 %v1635, %v1636
      %v1638 = vsel %vm1604, %v1596, 0.0
      %v1639 = vadd.f32 %v1637, %v1638
      %v1640 = vsel %vm1604, %v1597, 0.0
      %v1641 = vadd.f32 %v1639, %v1640
      %v1642 = vsel %vm1604, %v1598, 0.0
      %v1643 = vadd.f32 %v1641, %v1642
      %v1644 = vsel %vm1604, %v1599, 0.0
      %v1645 = vadd.f32 %v1643, %v1644
      %v1646 = vsel %vm1604, %v1600, 0.0
      %v1647 = vadd.f32 %v1645, %v1646
      %v1648 = vsel %vm1604, %v1601, 0.0
      %v1649 = vadd.f32 %v1647, %v1648
      %v1650 = vsel %vm1604, %v1602, 0.0
      %v1651 = vadd.f32 %v1649, %v1650
      %vm1652 = vcmask 27648
      %v1653 = vsel %vm1652, %v1603, 0.0
      %v1654 = vadd.f32 %v1651, %v1653
      %1655 = vadd.xlane.f32.xlu0 %v1654
      %v1656 = vpop.xlane.xlu0 %1655
      %v1657 = vrot.slane %v1656, 4
      %v1658 = vadd.f32 %v1656, %v1657
      %v1659 = vrot.slane %v1658, 2
      %v1660 = vadd.f32 %v1658, %v1659
      %v1661 = vrot.slane %v1660, 1
      %v1662 = vadd.f32 %v1660, %v1661
      %s1663 = vtos %v1662
      %v1664 = vstv %s1663
      %1665 = vst [vmem:[%s213] sm:$0x1] %v1664
      %p1666 = scmp.lt.s32.totalorder %s15, 1
      %s1667 = scalar_select %p1666, %s15, 1
      %s1668 = scalar_lea.vmem %s4, %s1667
      // Predicated region
      $region37: #{conv_decoder_forward.5} parent=35 // pred_check
        %p1669 = pneg %p127
      $region38: #{conv_decoder_forward.5} parent=35 // pred_check_branch
        %1671 = sbr.rel (%p1669) target = $region40
      $region39: #{conv_decoder_forward.5} parent=35 // pred_region
        _
      $region40: #{conv_decoder_forward.5} parent=35 // pred_fallthru
        _
    $region36: #{conv_decoder_forward.5} parent=5 // pred_fallthru
      _
    %p1672 = scmp.le.s32.totalorder 2, %s10
    // Predicated region
    $region41: #{conv_decoder_forward.5} parent=5 // pred_check
      %p1673 = pneg %p1672
    $region42: #{conv_decoder_forward.5} parent=5 // pred_check_branch
      %1675 = sbr.rel (%p1673) target = $region44
    $region43: #{conv_decoder_forward.5} parent=5 // pred_region
      %s1676 = ssub.s32 %s10, 2
      // Predicated region
      $region45: #{conv_decoder_forward.5} parent=43 // pred_check
        %p1677 = pneg %p133
      $region46: #{conv_decoder_forward.5} parent=43 // pred_check_branch
        %1679 = sbr.rel (%p1677) target = $region48
      $region47: #{conv_decoder_forward.5} parent=43 // pred_region
        %p1680 = scmp.lt.s32.totalorder %s16, 1
        %s1681 = scalar_select %p1680, %s16, 1
        %s1682 = scalar_lea.vmem %s4, %s1681
      $region48: #{conv_decoder_forward.5} parent=43 // pred_fallthru
        _
    $region44: #{conv_decoder_forward.5} parent=5 // pred_fallthru
      _
  $region6: #{conv_decoder_forward.5} parent=0 // loop_footer
    %s14 = sadd.s32 1, %s10
  $region7: #{conv_decoder_forward.5} parent=0 // loop_footer_branch
    %9 = sbr.rel target = $region3
  $region8: #{conv_decoder_forward.5} parent=0 // loop_exit
    _

</llo_original>
